<compile_context>
chip_gen: v6e
topology: v6e:2x2x1
jax: 0.10.0
libtpu: 0.0.40
codegen_flags: <defaults>
</compile_context>

<pallas_src>
import functools

import jax
import jax.numpy as jnp
from jax.experimental import pallas as pl
from jax.experimental.pallas import tpu as pltpu


HIDDEN = 256
GATES = 4 * HIDDEN


def _round_up(n, m):
    return ((n + m - 1) // m) * m


def _choose_time_chunk(T, Bp, gate_itemsize=2, budget_bytes=16 * 1024 * 1024):
    """Largest chunk in {32,16,8} whose double-buffered bf16 gates block fits the
    VMEM budget (leaves headroom for W_hh, classifier weights and h/c scratch,
    also on v7x's 64 MiB).  Prefers a chunk that divides T (no masked steps)."""
    cands = [tc for tc in (32, 16, 8)
             if 2 * Bp * tc * GATES * gate_itemsize <= budget_bytes]
    if not cands:
        cands = [8]
    for tc in cands:                      # exact division: no padded timesteps
        if tc <= T and T % tc == 0:
            return tc
    t_pad8 = _round_up(max(T, 8), 8)
    for tc in cands:                      # otherwise largest chunk <= padded T
        if tc <= t_pad8:
            return tc
    return t_pad8


# ----------------------------------------------------------------------------
# Kernel 1 (parallel over time chunks):
#   gates_x = LayerNorm(x) @ (gamma-folded W_ih^T) + (b_ih + b_hh + beta @ W_ih^T)
# Output is time-major (T, B, 4H) bf16 so the serial kernel reads dense tiles.
# ----------------------------------------------------------------------------
def _proj_kernel(x_ref, wih_ref, b_ref, gates_ref, *, eps):
    tc, Bp, D = x_ref.shape
    G = wih_ref.shape[1]
    x = x_ref[...].reshape(tc * Bp, D)          # leading-dim merge, no relayout

    # Single-pass LayerNorm statistics (biased variance, eps inside rsqrt).
    mean = jnp.mean(x, axis=-1, keepdims=True)
    mean_sq = jnp.mean(x * x, axis=-1, keepdims=True)
    var = jnp.maximum(mean_sq - mean * mean, 0.0)
    xn = (x - mean) * jax.lax.rsqrt(var + eps)

    # gamma/beta are folded into wih/b in the wrapper; bf16 operands, f32 acc.
    g = jnp.dot(xn.astype(jnp.bfloat16), wih_ref[...],
                preferred_element_type=jnp.float32) + b_ref[...]
    gates_ref[...] = g.astype(jnp.bfloat16).reshape(tc, Bp, G)


def _ln_input_projection(x_tm, wih_bf16, bias, *, tc, eps=1e-5):
    Tp, Bp, D = x_tm.shape
    G = wih_bf16.shape[1]
    return pl.pallas_call(
        functools.partial(_proj_kernel, eps=eps),
        out_shape=jax.ShapeDtypeStruct((Tp, Bp, G), jnp.bfloat16),
        grid_spec=pltpu.PrefetchScalarGridSpec(
            num_scalar_prefetch=0,
            grid=(Tp // tc,),
            in_specs=[
                pl.BlockSpec((tc, Bp, D), lambda i: (i, 0, 0)),   # x chunk (time-major)
                pl.BlockSpec((D, G), lambda i: (0, 0)),           # gamma-scaled W_ih^T (bf16)
                pl.BlockSpec((1, G), lambda i: (0, 0)),           # folded bias (f32)
            ],
            out_specs=pl.BlockSpec((tc, Bp, G), lambda i: (i, 0, 0)),
        ),
        compiler_params=pltpu.CompilerParams(
            dimension_semantics=("parallel",),
            vmem_limit_bytes=64 * 1024 * 1024),
    )(x_tm, wih_bf16, bias)


# ----------------------------------------------------------------------------
# Kernel 2 (grid = (batch_blocks [parallel], time_chunks [arbitrary])):
# sequential LSTM recurrence with h/c in VMEM scratch + fused MLP classifier.
# ----------------------------------------------------------------------------
def _recurrent_kernel(gates_ref, whh_ref, w1_ref, b1_ref, w2_ref, b2_ref,
                      w3_ref, b3_ref, out_ref, h_scr, c_scr, *, tc, rem):
    step_idx = pl.program_id(1)
    last_step = pl.num_programs(1) - 1

    @pl.when(step_idx == 0)
    def _():
        h_scr[...] = jnp.zeros_like(h_scr)
        c_scr[...] = jnp.zeros_like(c_scr)

    whh = whh_ref[...]                       # (H, 4H) bf16, constant-index block
    H = whh.shape[0]

    h = h_scr[...]
    c = c_scr[...]
    # Statically unrolled time loop: per step the serial path is one dense
    # (B, 4H) bf16 gates load, one bf16 MXU matmul (f32 acc) and the gates.
    for t in range(tc):
        gates = gates_ref[t].astype(jnp.float32) + jnp.dot(
            h.astype(jnp.bfloat16), whh, preferred_element_type=jnp.float32)
        i_g = jax.nn.sigmoid(gates[:, 0 * H:1 * H])
        f_g = jax.nn.sigmoid(gates[:, 1 * H:2 * H])
        g_g = jnp.tanh(gates[:, 2 * H:3 * H])
        o_g = jax.nn.sigmoid(gates[:, 3 * H:4 * H])
        c_new = f_g * c + i_g * g_g
        h_new = o_g * jnp.tanh(c_new)
        if rem and t >= rem:
            # Zero-padded timesteps (only in the last chunk): keep the state.
            valid = step_idx < last_step
            h = jnp.where(valid, h_new, h)
            c = jnp.where(valid, c_new, c)
        else:
            h, c = h_new, c_new
    h_scr[...] = h
    c_scr[...] = c

    # Classifier fused into the final-chunk epilogue (no extra kernel launch,
    # no HBM round-trip of the hidden state).
    @pl.when(step_idx == last_step)
    def _():
        def leaky(y):
            return jnp.where(y > 0, y, 0.01 * y)
        # TODO(synk): nn.Dropout layers are identity at inference; no RNG applied.
        y = leaky(jnp.dot(h, w1_ref[...], preferred_element_type=jnp.float32)
                  + b1_ref[...])
        y = leaky(jnp.dot(y, w2_ref[...], preferred_element_type=jnp.float32)
                  + b2_ref[...])
        y = (jnp.dot(y, w3_ref[...], preferred_element_type=jnp.float32)
             + b3_ref[...])
        out_ref[...] = y


def _lstm_classifier(gates, whh_bf16, w1_t, b1, w2_t, b2, w3_t, b3, *,
                     tc, rem, nb):
    Tp, Bp, G = gates.shape
    H = whh_bf16.shape[0]
    Bb = Bp // nb
    return pl.pallas_call(
        functools.partial(_recurrent_kernel, tc=tc, rem=rem),
        out_shape=jax.ShapeDtypeStruct((Bp, 1), jnp.float32),
        grid_spec=pltpu.PrefetchScalarGridSpec(
            num_scalar_prefetch=0,
            grid=(nb, Tp // tc),
            in_specs=[
                pl.BlockSpec((tc, Bb, G), lambda b, t: (t, b, 0)),   # gates chunk
                pl.BlockSpec((H, G), lambda b, t: (0, 0)),           # W_hh^T (bf16)
                pl.BlockSpec(w1_t.shape, lambda b, t: (0, 0)),
                pl.BlockSpec(b1.shape, lambda b, t: (0, 0)),
                pl.BlockSpec(w2_t.shape, lambda b, t: (0, 0)),
                pl.BlockSpec(b2.shape, lambda b, t: (0, 0)),
                pl.BlockSpec(w3_t.shape, lambda b, t: (0, 0)),
                pl.BlockSpec(b3.shape, lambda b, t: (0, 0)),
            ],
            out_specs=pl.BlockSpec((Bb, 1), lambda b, t: (b, 0)),
            scratch_shapes=[
                pltpu.VMEM((Bb, H), jnp.float32),   # h (f32 state)
                pltpu.VMEM((Bb, H), jnp.float32),   # c (f32 state)
            ],
        ),
        compiler_params=pltpu.CompilerParams(
            dimension_semantics=("parallel", "arbitrary"),
            vmem_limit_bytes=64 * 1024 * 1024),
    )(gates, whh_bf16, w1_t, b1, w2_t, b2, w3_t, b3)


# ----------------------------------------------------------------------------
# Parameter construction (deterministic, PyTorch-like uniform init).
# ----------------------------------------------------------------------------
def init_params(key, input_size, hidden=HIDDEN):
    ks = jax.random.split(key, 12)

    def u(k, shape, bound):
        return jax.random.uniform(k, shape, jnp.float32, -bound, bound)

    kH = 1.0 / jnp.sqrt(hidden)
    return dict(
        # LayerNorm
        gamma=jnp.ones((1, input_size), jnp.float32),
        beta=jnp.zeros((1, input_size), jnp.float32),
        # LSTM (stored transposed so gates = x @ W^T is x @ W_T)
        wih_t=u(ks[0], (input_size, 4 * hidden), kH),
        whh_t=u(ks[1], (hidden, 4 * hidden), kH),
        bias=(u(ks[2], (1, 4 * hidden), kH) + u(ks[3], (1, 4 * hidden), kH)),
        # Classifier (stored transposed)
        w1_t=u(ks[4], (hidden, 128), 1.0 / jnp.sqrt(hidden)),
        b1=u(ks[5], (1, 128), 1.0 / jnp.sqrt(hidden)),
        w2_t=u(ks[6], (128, 64), 1.0 / jnp.sqrt(128.0)),
        b2=u(ks[7], (1, 64), 1.0 / jnp.sqrt(128.0)),
        w3_t=u(ks[8], (64, 1), 1.0 / jnp.sqrt(64.0)),
        b3=u(ks[9], (1, 1), 1.0 / jnp.sqrt(64.0)),
    )


@jax.jit
def rnn_forward(x, params):
    # x: (B, 1, T, D) -> squeeze(1) -> (B, T, D).
    x = jnp.squeeze(x, axis=1).astype(jnp.float32)
    B, T, D = x.shape

    # Pad batch to a full sublane group; padded rows are independent.
    Bp = _round_up(max(B, 8), 8)
    tc = _choose_time_chunk(T, Bp)
    Tp = _round_up(max(T, tc), tc)
    rem = T % tc                               # 0 -> no masked timesteps

    # Time-major + pad.  Transposing x (not gates) costs ~D/4H of the gates
    # HBM traffic; the recurrence then reads dense (B, 4H) tiles per step.
    x_tm = jnp.transpose(x, (1, 0, 2))
    x_tm = jnp.pad(x_tm, ((0, Tp - T), (0, Bp - B), (0, 0)))

    # Fold the LayerNorm affine into the projection weights (tiny, per call):
    #   LN(x)*g+b applied to W_ih^T  ==  norm(x) @ (g-col-scaled W_ih^T) + b@W_ih^T.
    gamma_col = params["gamma"].reshape(D, 1)
    beta_row = params["beta"].reshape(1, D)
    wih_eff = (gamma_col * params["wih_t"]).astype(jnp.bfloat16)
    bias_eff = params["bias"] + beta_row @ params["wih_t"]

    gates = _ln_input_projection(x_tm, wih_eff, bias_eff, tc=tc, eps=1e-5)

    # Split the recurrence across 2 batch blocks (v7x megacore) when possible.
    nb = 2 if (Bp >= 16 and Bp % 16 == 0) else 1

    out = _lstm_classifier(
        gates, params["whh_t"].astype(jnp.bfloat16),
        params["w1_t"], params["b1"],
        params["w2_t"], params["b2"],
        params["w3_t"], params["b3"],
        tc=tc, rem=rem, nb=nb)

    return out[:B]  # (B, 1)


if __name__ == "__main__":
    B, T, D = 2, 8, 32
    key = jax.random.PRNGKey(0)
    k_x, k_p = jax.random.split(key)

    x = jax.random.normal(k_x, (B, 1, T, D), jnp.float32)
    params = init_params(k_p, input_size=D)

    out = rnn_forward(x, params)
    jax.block_until_ready(out)
    assert out.shape == (B, 1), out.shape
    print("KERNEL_OK")
</pallas_src>

<mosaic_0001>
module attributes {stable_mosaic.version = 11 : i64} {
  func.func @_proj_kernel(%arg0: i32, %arg1: memref<8x8x32xf32, #tpu.memory_space<vmem>>, %arg2: memref<32x1024xbf16, #tpu.memory_space<vmem>>, %arg3: memref<1x1024xf32, #tpu.memory_space<vmem>>, %arg4: memref<8x8x1024xbf16, #tpu.memory_space<vmem>>) attributes {dimension_semantics = [#tpu.dimension_semantics<parallel>], iteration_bounds = array<i64: 1>, scalar_prefetch = 0 : i64, scratch_operands = 0 : i64, tpu.core_type = #tpu.core_type<tc>, window_params = [{transform_indices = @transform_0, window_bounds = array<i64: 8, 8, 32>}, {pipeline_mode = #tpu.pipeline_mode<synchronous>, transform_indices = @transform_1, window_bounds = array<i64: 32, 1024>}, {pipeline_mode = #tpu.pipeline_mode<synchronous>, transform_indices = @transform_2, window_bounds = array<i64: 1, 1024>}, {transform_indices = @transform_3, window_bounds = array<i64: 8, 8, 1024>}]} {
    %c0 = arith.constant 0 : index
    %c0_0 = arith.constant 0 : index
    %c0_1 = arith.constant 0 : index
    %0 = vector.load %arg1[%c0, %c0_0, %c0_1] : memref<8x8x32xf32, #tpu.memory_space<vmem>>, vector<8x8x32xf32>
    %1 = vector.shape_cast %0 : vector<8x8x32xf32> to vector<64x32xf32>
    %cst = arith.constant dense<0.000000e+00> : vector<64xf32>
    %2 = vector.multi_reduction <add>, %1, %cst [1] : vector<64x32xf32> to vector<64xf32>
    %3 = vector.shape_cast %2 : vector<64xf32> to vector<64x1xf32>
    %cst_2 = arith.constant 3.200000e+01 : f32
    %4 = vector.broadcast %cst_2 : f32 to vector<64x1xf32>
    %5 = arith.divf %3, %4 : vector<64x1xf32>
    %6 = arith.mulf %1, %1 : vector<64x32xf32>
    %cst_3 = arith.constant dense<0.000000e+00> : vector<64xf32>
    %7 = vector.multi_reduction <add>, %6, %cst_3 [1] : vector<64x32xf32> to vector<64xf32>
    %8 = vector.shape_cast %7 : vector<64xf32> to vector<64x1xf32>
    %cst_4 = arith.constant 3.200000e+01 : f32
    %9 = vector.broadcast %cst_4 : f32 to vector<64x1xf32>
    %10 = arith.divf %8, %9 : vector<64x1xf32>
    %11 = arith.mulf %5, %5 : vector<64x1xf32>
    %12 = arith.subf %10, %11 : vector<64x1xf32>
    %cst_5 = arith.constant 0.000000e+00 : f32
    %13 = vector.broadcast %cst_5 : f32 to vector<64x1xf32>
    %14 = arith.maximumf %12, %13 : vector<64x1xf32>
    %15 = vector.broadcast %5 : vector<64x1xf32> to vector<64x32xf32>
    %16 = arith.subf %1, %15 : vector<64x32xf32>
    %cst_6 = arith.constant 9.99999974E-6 : f32
    %17 = vector.broadcast %cst_6 : f32 to vector<64x1xf32>
    %18 = arith.addf %14, %17 : vector<64x1xf32>
    %19 = math.rsqrt %18 : vector<64x1xf32>
    %20 = vector.broadcast %19 : vector<64x1xf32> to vector<64x32xf32>
    %21 = arith.mulf %16, %20 : vector<64x32xf32>
    %22 = arith.truncf %21 : vector<64x32xf32> to vector<64x32xbf16>
    %c0_7 = arith.constant 0 : index
    %c0_8 = arith.constant 0 : index
    %23 = vector.load %arg2[%c0_7, %c0_8] : memref<32x1024xbf16, #tpu.memory_space<vmem>>, vector<32x1024xbf16>
    %cst_9 = arith.constant dense<0.000000e+00> : vector<64x1024xf32>
    %24 = tpu.matmul %22, %23, %cst_9 {dimension_numbers = #tpu.dot_dimension_numbers<[1], [0], [0], [1], [0, 0, 1, 1], [], []>} : vector<64x32xbf16>, vector<32x1024xbf16>, vector<64x1024xf32> -> vector<64x1024xf32>
    %c0_10 = arith.constant 0 : index
    %c0_11 = arith.constant 0 : index
    %25 = vector.load %arg3[%c0_10, %c0_11] : memref<1x1024xf32, #tpu.memory_space<vmem>>, vector<1x1024xf32>
    %26 = vector.broadcast %25 : vector<1x1024xf32> to vector<64x1024xf32>
    %27 = arith.addf %24, %26 : vector<64x1024xf32>
    %28 = arith.truncf %27 : vector<64x1024xf32> to vector<64x1024xbf16>
    %29 = vector.shape_cast %28 : vector<64x1024xbf16> to vector<8x8x1024xbf16>
    %c0_12 = arith.constant 0 : index
    %c0_13 = arith.constant 0 : index
    %c0_14 = arith.constant 0 : index
    %30 = vector.load %arg4[%c0_12, %c0_13, %c0_14] : memref<8x8x1024xbf16, #tpu.memory_space<vmem>>, vector<8x8x1024xbf16>
    tpu.vector_store %arg4[%c0_12, %c0_13, %c0_14], %29 {strides = array<i32>} : memref<8x8x1024xbf16, #tpu.memory_space<vmem>>, vector<8x8x1024xbf16>,
    return
  }
  func.func @transform_0(%arg0: i32) -> (i32, i32, i32) {
    %c0_i32 = arith.constant 0 : i32
    %c0_i32_0 = arith.constant 0 : i32
    %c0_i32_1 = arith.constant 0 : i32
    return %arg0, %c0_i32, %c0_i32_0 : i32, i32, i32
  }
  func.func @transform_1(%arg0: i32) -> (i32, i32) {
    %c0_i32 = arith.constant 0 : i32
    %c0_i32_0 = arith.constant 0 : i32
    %c0_i32_1 = arith.constant 0 : i32
    return %c0_i32, %c0_i32_0 : i32, i32
  }
  func.func @transform_2(%arg0: i32) -> (i32, i32) {
    %c0_i32 = arith.constant 0 : i32
    %c0_i32_0 = arith.constant 0 : i32
    %c0_i32_1 = arith.constant 0 : i32
    return %c0_i32, %c0_i32_0 : i32, i32
  }
  func.func @transform_3(%arg0: i32) -> (i32, i32, i32) {
    %c0_i32 = arith.constant 0 : i32
    %c0_i32_0 = arith.constant 0 : i32
    %c0_i32_1 = arith.constant 0 : i32
    return %arg0, %c0_i32, %c0_i32_0 : i32, i32, i32
  }
}

module attributes {stable_mosaic.version = 11 : i64} {
  func.func @_recurrent_kernel(%arg0: i32, %arg1: i32, %arg2: memref<8x8x1024xbf16, #tpu.memory_space<vmem>>, %arg3: memref<256x1024xbf16, #tpu.memory_space<vmem>>, %arg4: memref<256x128xf32, #tpu.memory_space<vmem>>, %arg5: memref<1x128xf32, #tpu.memory_space<vmem>>, %arg6: memref<128x64xf32, #tpu.memory_space<vmem>>, %arg7: memref<1x64xf32, #tpu.memory_space<vmem>>, %arg8: memref<64x1xf32, #tpu.memory_space<vmem>>, %arg9: memref<1x1xf32, #tpu.memory_space<vmem>>, %arg10: memref<8x1xf32, #tpu.memory_space<vmem>>, %arg11: memref<8x256xf32, #tpu.memory_space<vmem>>, %arg12: memref<8x256xf32, #tpu.memory_space<vmem>>) attributes {dimension_semantics = [#tpu.dimension_semantics<parallel>, #tpu.dimension_semantics<arbitrary>], iteration_bounds = array<i64: 1, 1>, scalar_prefetch = 0 : i64, scratch_operands = 2 : i64, tpu.core_type = #tpu.core_type<tc>, window_params = [{transform_indices = @transform_0, window_bounds = array<i64: 8, 8, 1024>}, {pipeline_mode = #tpu.pipeline_mode<synchronous>, transform_indices = @transform_1, window_bounds = array<i64: 256, 1024>}, {pipeline_mode = #tpu.pipeline_mode<synchronous>, transform_indices = @transform_2, window_bounds = array<i64: 256, 128>}, {pipeline_mode = #tpu.pipeline_mode<synchronous>, transform_indices = @transform_3, window_bounds = array<i64: 1, 128>}, {pipeline_mode = #tpu.pipeline_mode<synchronous>, transform_indices = @transform_4, window_bounds = array<i64: 128, 64>}, {pipeline_mode = #tpu.pipeline_mode<synchronous>, transform_indices = @transform_5, window_bounds = array<i64: 1, 64>}, {pipeline_mode = #tpu.pipeline_mode<synchronous>, transform_indices = @transform_6, window_bounds = array<i64: 64, 1>}, {pipeline_mode = #tpu.pipeline_mode<synchronous>, transform_indices = @transform_7, window_bounds = array<i64: 1, 1>}, {transform_indices = @transform_8, window_bounds = array<i64: 8, 1>}]} {
    %c0_i32 = arith.constant 0 : i32
    %0 = arith.cmpi eq, %arg1, %c0_i32 : i32
    %1 = arith.extui %0 : i1 to i32
    %c0_i32_0 = arith.constant 0 : i32
    %2 = arith.cmpi ne, %1, %c0_i32_0 : i32
    scf.if %2 {
      %cst_60 = arith.constant 0.000000e+00 : f32
      %259 = vector.broadcast %cst_60 : f32 to vector<8x256xf32>
      %c0_61 = arith.constant 0 : index
      %c0_62 = arith.constant 0 : index
      %260 = vector.load %arg11[%c0_61, %c0_62] : memref<8x256xf32, #tpu.memory_space<vmem>>, vector<8x256xf32>
      tpu.vector_store %arg11[%c0_61, %c0_62], %259 {strides = array<i32>} : memref<8x256xf32, #tpu.memory_space<vmem>>, vector<8x256xf32>,
      %cst_63 = arith.constant 0.000000e+00 : f32
      %261 = vector.broadcast %cst_63 : f32 to vector<8x256xf32>
      %c0_64 = arith.constant 0 : index
      %c0_65 = arith.constant 0 : index
      %262 = vector.load %arg12[%c0_64, %c0_65] : memref<8x256xf32, #tpu.memory_space<vmem>>, vector<8x256xf32>
      tpu.vector_store %arg12[%c0_64, %c0_65], %261 {strides = array<i32>} : memref<8x256xf32, #tpu.memory_space<vmem>>, vector<8x256xf32>,
    } else {
    }
    %c0 = arith.constant 0 : index
    %c0_1 = arith.constant 0 : index
    %3 = vector.load %arg3[%c0, %c0_1] : memref<256x1024xbf16, #tpu.memory_space<vmem>>, vector<256x1024xbf16>
    %c0_2 = arith.constant 0 : index
    %c0_3 = arith.constant 0 : index
    %4 = vector.load %arg11[%c0_2, %c0_3] : memref<8x256xf32, #tpu.memory_space<vmem>>, vector<8x256xf32>
    %c0_4 = arith.constant 0 : index
    %c0_5 = arith.constant 0 : index
    %5 = vector.load %arg12[%c0_4, %c0_5] : memref<8x256xf32, #tpu.memory_space<vmem>>, vector<8x256xf32>
    %c0_6 = arith.constant 0 : index
    %c0_7 = arith.constant 0 : index
    %c0_8 = arith.constant 0 : index
    %6 = vector.load %arg2[%c0_6, %c0_7, %c0_8] : memref<8x8x1024xbf16, #tpu.memory_space<vmem>>, vector<1x8x1024xbf16>
    %7 = vector.shape_cast %6 : vector<1x8x1024xbf16> to vector<8x1024xbf16>
    %8 = arith.extf %7 : vector<8x1024xbf16> to vector<8x1024xf32>
    %9 = arith.truncf %4 : vector<8x256xf32> to vector<8x256xbf16>
    %cst = arith.constant dense<0.000000e+00> : vector<8x1024xf32>
    %10 = tpu.matmul %9, %3, %cst {dimension_numbers = #tpu.dot_dimension_numbers<[1], [0], [0], [1], [0, 0, 1, 1], [], []>} : vector<8x256xbf16>, vector<256x1024xbf16>, vector<8x1024xf32> -> vector<8x1024xf32>
    %11 = arith.addf %8, %10 : vector<8x1024xf32>
    %12 = vector.extract_strided_slice %11 {offsets = [0, 0], sizes = [8, 256], strides = [1, 1]} : vector<8x1024xf32> to vector<8x256xf32>
    %13 = arith.negf %12 : vector<8x256xf32>
    %14 = math.exp %13 : vector<8x256xf32>
    %cst_9 = arith.constant 1.000000e+00 : f32
    %15 = vector.broadcast %cst_9 : f32 to vector<8x256xf32>
    %16 = arith.addf %15, %14 : vector<8x256xf32>
    %17 = arith.divf %15, %16 : vector<8x256xf32>
    %18 = vector.extract_strided_slice %11 {offsets = [0, 256], sizes = [8, 256], strides = [1, 1]} : vector<8x1024xf32> to vector<8x256xf32>
    %19 = arith.negf %18 : vector<8x256xf32>
    %20 = math.exp %19 : vector<8x256xf32>
    %cst_10 = arith.constant 1.000000e+00 : f32
    %21 = vector.broadcast %cst_10 : f32 to vector<8x256xf32>
    %22 = arith.addf %21, %20 : vector<8x256xf32>
    %23 = arith.divf %21, %22 : vector<8x256xf32>
    %24 = vector.extract_strided_slice %11 {offsets = [0, 512], sizes = [8, 256], strides = [1, 1]} : vector<8x1024xf32> to vector<8x256xf32>
    %25 = math.tanh %24 : vector<8x256xf32>
    %26 = vector.extract_strided_slice %11 {offsets = [0, 768], sizes = [8, 256], strides = [1, 1]} : vector<8x1024xf32> to vector<8x256xf32>
    %27 = arith.negf %26 : vector<8x256xf32>
    %28 = math.exp %27 : vector<8x256xf32>
    %cst_11 = arith.constant 1.000000e+00 : f32
    %29 = vector.broadcast %cst_11 : f32 to vector<8x256xf32>
    %30 = arith.addf %29, %28 : vector<8x256xf32>
    %31 = arith.divf %29, %30 : vector<8x256xf32>
    %32 = arith.mulf %23, %5 : vector<8x256xf32>
    %33 = arith.mulf %17, %25 : vector<8x256xf32>
    %34 = arith.addf %32, %33 : vector<8x256xf32>
    %35 = math.tanh %34 : vector<8x256xf32>
    %36 = arith.mulf %31, %35 : vector<8x256xf32>
    %c1 = arith.constant 1 : index
    %c0_12 = arith.constant 0 : index
    %c0_13 = arith.constant 0 : index
    %37 = vector.load %arg2[%c1, %c0_12, %c0_13] : memref<8x8x1024xbf16, #tpu.memory_space<vmem>>, vector<1x8x1024xbf16>
    %38 = vector.shape_cast %37 : vector<1x8x1024xbf16> to vector<8x1024xbf16>
    %39 = arith.extf %38 : vector<8x1024xbf16> to vector<8x1024xf32>
    %40 = arith.truncf %36 : vector<8x256xf32> to vector<8x256xbf16>
    %cst_14 = arith.constant dense<0.000000e+00> : vector<8x1024xf32>
    %41 = tpu.matmul %40, %3, %cst_14 {dimension_numbers = #tpu.dot_dimension_numbers<[1], [0], [0], [1], [0, 0, 1, 1], [], []>} : vector<8x256xbf16>, vector<256x1024xbf16>, vector<8x1024xf32> -> vector<8x1024xf32>
    %42 = arith.addf %39, %41 : vector<8x1024xf32>
    %43 = vector.extract_strided_slice %42 {offsets = [0, 0], sizes = [8, 256], strides = [1, 1]} : vector<8x1024xf32> to vector<8x256xf32>
    %44 = arith.negf %43 : vector<8x256xf32>
    %45 = math.exp %44 : vector<8x256xf32>
    %cst_15 = arith.constant 1.000000e+00 : f32
    %46 = vector.broadcast %cst_15 : f32 to vector<8x256xf32>
    %47 = arith.addf %46, %45 : vector<8x256xf32>
    %48 = arith.divf %46, %47 : vector<8x256xf32>
    %49 = vector.extract_strided_slice %42 {offsets = [0, 256], sizes = [8, 256], strides = [1, 1]} : vector<8x1024xf32> to vector<8x256xf32>
    %50 = arith.negf %49 : vector<8x256xf32>
    %51 = math.exp %50 : vector<8x256xf32>
    %cst_16 = arith.constant 1.000000e+00 : f32
    %52 = vector.broadcast %cst_16 : f32 to vector<8x256xf32>
    %53 = arith.addf %52, %51 : vector<8x256xf32>
    %54 = arith.divf %52, %53 : vector<8x256xf32>
    %55 = vector.extract_strided_slice %42 {offsets = [0, 512], sizes = [8, 256], strides = [1, 1]} : vector<8x1024xf32> to vector<8x256xf32>
    %56 = math.tanh %55 : vector<8x256xf32>
    %57 = vector.extract_strided_slice %42 {offsets = [0, 768], sizes = [8, 256], strides = [1, 1]} : vector<8x1024xf32> to vector<8x256xf32>
    %58 = arith.negf %57 : vector<8x256xf32>
    %59 = math.exp %58 : vector<8x256xf32>
    %cst_17 = arith.constant 1.000000e+00 : f32
    %60 = vector.broadcast %cst_17 : f32 to vector<8x256xf32>
    %61 = arith.addf %60, %59 : vector<8x256xf32>
    %62 = arith.divf %60, %61 : vector<8x256xf32>
    %63 = arith.mulf %54, %34 : vector<8x256xf32>
    %64 = arith.mulf %48, %56 : vector<8x256xf32>
    %65 = arith.addf %63, %64 : vector<8x256xf32>
    %66 = math.tanh %65 : vector<8x256xf32>
    %67 = arith.mulf %62, %66 : vector<8x256xf32>
    %c2 = arith.constant 2 : index
    %c0_18 = arith.constant 0 : index
    %c0_19 = arith.constant 0 : index
    %68 = vector.load %arg2[%c2, %c0_18, %c0_19] : memref<8x8x1024xbf16, #tpu.memory_space<vmem>>, vector<1x8x1024xbf16>
    %69 = vector.shape_cast %68 : vector<1x8x1024xbf16> to vector<8x1024xbf16>
    %70 = arith.extf %69 : vector<8x1024xbf16> to vector<8x1024xf32>
    %71 = arith.truncf %67 : vector<8x256xf32> to vector<8x256xbf16>
    %cst_20 = arith.constant dense<0.000000e+00> : vector<8x1024xf32>
    %72 = tpu.matmul %71, %3, %cst_20 {dimension_numbers = #tpu.dot_dimension_numbers<[1], [0], [0], [1], [0, 0, 1, 1], [], []>} : vector<8x256xbf16>, vector<256x1024xbf16>, vector<8x1024xf32> -> vector<8x1024xf32>
    %73 = arith.addf %70, %72 : vector<8x1024xf32>
    %74 = vector.extract_strided_slice %73 {offsets = [0, 0], sizes = [8, 256], strides = [1, 1]} : vector<8x1024xf32> to vector<8x256xf32>
    %75 = arith.negf %74 : vector<8x256xf32>
    %76 = math.exp %75 : vector<8x256xf32>
    %cst_21 = arith.constant 1.000000e+00 : f32
    %77 = vector.broadcast %cst_21 : f32 to vector<8x256xf32>
    %78 = arith.addf %77, %76 : vector<8x256xf32>
    %79 = arith.divf %77, %78 : vector<8x256xf32>
    %80 = vector.extract_strided_slice %73 {offsets = [0, 256], sizes = [8, 256], strides = [1, 1]} : vector<8x1024xf32> to vector<8x256xf32>
    %81 = arith.negf %80 : vector<8x256xf32>
    %82 = math.exp %81 : vector<8x256xf32>
    %cst_22 = arith.constant 1.000000e+00 : f32
    %83 = vector.broadcast %cst_22 : f32 to vector<8x256xf32>
    %84 = arith.addf %83, %82 : vector<8x256xf32>
    %85 = arith.divf %83, %84 : vector<8x256xf32>
    %86 = vector.extract_strided_slice %73 {offsets = [0, 512], sizes = [8, 256], strides = [1, 1]} : vector<8x1024xf32> to vector<8x256xf32>
    %87 = math.tanh %86 : vector<8x256xf32>
    %88 = vector.extract_strided_slice %73 {offsets = [0, 768], sizes = [8, 256], strides = [1, 1]} : vector<8x1024xf32> to vector<8x256xf32>
    %89 = arith.negf %88 : vector<8x256xf32>
    %90 = math.exp %89 : vector<8x256xf32>
    %cst_23 = arith.constant 1.000000e+00 : f32
    %91 = vector.broadcast %cst_23 : f32 to vector<8x256xf32>
    %92 = arith.addf %91, %90 : vector<8x256xf32>
    %93 = arith.divf %91, %92 : vector<8x256xf32>
    %94 = arith.mulf %85, %65 : vector<8x256xf32>
    %95 = arith.mulf %79, %87 : vector<8x256xf32>
    %96 = arith.addf %94, %95 : vector<8x256xf32>
    %97 = math.tanh %96 : vector<8x256xf32>
    %98 = arith.mulf %93, %97 : vector<8x256xf32>
    %c3 = arith.constant 3 : index
    %c0_24 = arith.constant 0 : index
    %c0_25 = arith.constant 0 : index
    %99 = vector.load %arg2[%c3, %c0_24, %c0_25] : memref<8x8x1024xbf16, #tpu.memory_space<vmem>>, vector<1x8x1024xbf16>
    %100 = vector.shape_cast %99 : vector<1x8x1024xbf16> to vector<8x1024xbf16>
    %101 = arith.extf %100 : vector<8x1024xbf16> to vector<8x1024xf32>
    %102 = arith.truncf %98 : vector<8x256xf32> to vector<8x256xbf16>
    %cst_26 = arith.constant dense<0.000000e+00> : vector<8x1024xf32>
    %103 = tpu.matmul %102, %3, %cst_26 {dimension_numbers = #tpu.dot_dimension_numbers<[1], [0], [0], [1], [0, 0, 1, 1], [], []>} : vector<8x256xbf16>, vector<256x1024xbf16>, vector<8x1024xf32> -> vector<8x1024xf32>
    %104 = arith.addf %101, %103 : vector<8x1024xf32>
    %105 = vector.extract_strided_slice %104 {offsets = [0, 0], sizes = [8, 256], strides = [1, 1]} : vector<8x1024xf32> to vector<8x256xf32>
    %106 = arith.negf %105 : vector<8x256xf32>
    %107 = math.exp %106 : vector<8x256xf32>
    %cst_27 = arith.constant 1.000000e+00 : f32
    %108 = vector.broadcast %cst_27 : f32 to vector<8x256xf32>
    %109 = arith.addf %108, %107 : vector<8x256xf32>
    %110 = arith.divf %108, %109 : vector<8x256xf32>
    %111 = vector.extract_strided_slice %104 {offsets = [0, 256], sizes = [8, 256], strides = [1, 1]} : vector<8x1024xf32> to vector<8x256xf32>
    %112 = arith.negf %111 : vector<8x256xf32>
    %113 = math.exp %112 : vector<8x256xf32>
    %cst_28 = arith.constant 1.000000e+00 : f32
    %114 = vector.broadcast %cst_28 : f32 to vector<8x256xf32>
    %115 = arith.addf %114, %113 : vector<8x256xf32>
    %116 = arith.divf %114, %115 : vector<8x256xf32>
    %117 = vector.extract_strided_slice %104 {offsets = [0, 512], sizes = [8, 256], strides = [1, 1]} : vector<8x1024xf32> to vector<8x256xf32>
    %118 = math.tanh %117 : vector<8x256xf32>
    %119 = vector.extract_strided_slice %104 {offsets = [0, 768], sizes = [8, 256], strides = [1, 1]} : vector<8x1024xf32> to vector<8x256xf32>
    %120 = arith.negf %119 : vector<8x256xf32>
    %121 = math.exp %120 : vector<8x256xf32>
    %cst_29 = arith.constant 1.000000e+00 : f32
    %122 = vector.broadcast %cst_29 : f32 to vector<8x256xf32>
    %123 = arith.addf %122, %121 : vector<8x256xf32>
    %124 = arith.divf %122, %123 : vector<8x256xf32>
    %125 = arith.mulf %116, %96 : vector<8x256xf32>
    %126 = arith.mulf %110, %118 : vector<8x256xf32>
    %127 = arith.addf %125, %126 : vector<8x256xf32>
    %128 = math.tanh %127 : vector<8x256xf32>
    %129 = arith.mulf %124, %128 : vector<8x256xf32>
    %c4 = arith.constant 4 : index
    %c0_30 = arith.constant 0 : index
    %c0_31 = arith.constant 0 : index
    %130 = vector.load %arg2[%c4, %c0_30, %c0_31] : memref<8x8x1024xbf16, #tpu.memory_space<vmem>>, vector<1x8x1024xbf16>
    %131 = vector.shape_cast %130 : vector<1x8x1024xbf16> to vector<8x1024xbf16>
    %132 = arith.extf %131 : vector<8x1024xbf16> to vector<8x1024xf32>
    %133 = arith.truncf %129 : vector<8x256xf32> to vector<8x256xbf16>
    %cst_32 = arith.constant dense<0.000000e+00> : vector<8x1024xf32>
    %134 = tpu.matmul %133, %3, %cst_32 {dimension_numbers = #tpu.dot_dimension_numbers<[1], [0], [0], [1], [0, 0, 1, 1], [], []>} : vector<8x256xbf16>, vector<256x1024xbf16>, vector<8x1024xf32> -> vector<8x1024xf32>
    %135 = arith.addf %132, %134 : vector<8x1024xf32>
    %136 = vector.extract_strided_slice %135 {offsets = [0, 0], sizes = [8, 256], strides = [1, 1]} : vector<8x1024xf32> to vector<8x256xf32>
    %137 = arith.negf %136 : vector<8x256xf32>
    %138 = math.exp %137 : vector<8x256xf32>
    %cst_33 = arith.constant 1.000000e+00 : f32
    %139 = vector.broadcast %cst_33 : f32 to vector<8x256xf32>
    %140 = arith.addf %139, %138 : vector<8x256xf32>
    %141 = arith.divf %139, %140 : vector<8x256xf32>
    %142 = vector.extract_strided_slice %135 {offsets = [0, 256], sizes = [8, 256], strides = [1, 1]} : vector<8x1024xf32> to vector<8x256xf32>
    %143 = arith.negf %142 : vector<8x256xf32>
    %144 = math.exp %143 : vector<8x256xf32>
    %cst_34 = arith.constant 1.000000e+00 : f32
    %145 = vector.broadcast %cst_34 : f32 to vector<8x256xf32>
    %146 = arith.addf %145, %144 : vector<8x256xf32>
    %147 = arith.divf %145, %146 : vector<8x256xf32>
    %148 = vector.extract_strided_slice %135 {offsets = [0, 512], sizes = [8, 256], strides = [1, 1]} : vector<8x1024xf32> to vector<8x256xf32>
    %149 = math.tanh %148 : vector<8x256xf32>
    %150 = vector.extract_strided_slice %135 {offsets = [0, 768], sizes = [8, 256], strides = [1, 1]} : vector<8x1024xf32> to vector<8x256xf32>
    %151 = arith.negf %150 : vector<8x256xf32>
    %152 = math.exp %151 : vector<8x256xf32>
    %cst_35 = arith.constant 1.000000e+00 : f32
    %153 = vector.broadcast %cst_35 : f32 to vector<8x256xf32>
    %154 = arith.addf %153, %152 : vector<8x256xf32>
    %155 = arith.divf %153, %154 : vector<8x256xf32>
    %156 = arith.mulf %147, %127 : vector<8x256xf32>
    %157 = arith.mulf %141, %149 : vector<8x256xf32>
    %158 = arith.addf %156, %157 : vector<8x256xf32>
    %159 = math.tanh %158 : vector<8x256xf32>
    %160 = arith.mulf %155, %159 : vector<8x256xf32>
    %c5 = arith.constant 5 : index
    %c0_36 = arith.constant 0 : index
    %c0_37 = arith.constant 0 : index
    %161 = vector.load %arg2[%c5, %c0_36, %c0_37] : memref<8x8x1024xbf16, #tpu.memory_space<vmem>>, vector<1x8x1024xbf16>
    %162 = vector.shape_cast %161 : vector<1x8x1024xbf16> to vector<8x1024xbf16>
    %163 = arith.extf %162 : vector<8x1024xbf16> to vector<8x1024xf32>
    %164 = arith.truncf %160 : vector<8x256xf32> to vector<8x256xbf16>
    %cst_38 = arith.constant dense<0.000000e+00> : vector<8x1024xf32>
    %165 = tpu.matmul %164, %3, %cst_38 {dimension_numbers = #tpu.dot_dimension_numbers<[1], [0], [0], [1], [0, 0, 1, 1], [], []>} : vector<8x256xbf16>, vector<256x1024xbf16>, vector<8x1024xf32> -> vector<8x1024xf32>
    %166 = arith.addf %163, %165 : vector<8x1024xf32>
    %167 = vector.extract_strided_slice %166 {offsets = [0, 0], sizes = [8, 256], strides = [1, 1]} : vector<8x1024xf32> to vector<8x256xf32>
    %168 = arith.negf %167 : vector<8x256xf32>
    %169 = math.exp %168 : vector<8x256xf32>
    %cst_39 = arith.constant 1.000000e+00 : f32
    %170 = vector.broadcast %cst_39 : f32 to vector<8x256xf32>
    %171 = arith.addf %170, %169 : vector<8x256xf32>
    %172 = arith.divf %170, %171 : vector<8x256xf32>
    %173 = vector.extract_strided_slice %166 {offsets = [0, 256], sizes = [8, 256], strides = [1, 1]} : vector<8x1024xf32> to vector<8x256xf32>
    %174 = arith.negf %173 : vector<8x256xf32>
    %175 = math.exp %174 : vector<8x256xf32>
    %cst_40 = arith.constant 1.000000e+00 : f32
    %176 = vector.broadcast %cst_40 : f32 to vector<8x256xf32>
    %177 = arith.addf %176, %175 : vector<8x256xf32>
    %178 = arith.divf %176, %177 : vector<8x256xf32>
    %179 = vector.extract_strided_slice %166 {offsets = [0, 512], sizes = [8, 256], strides = [1, 1]} : vector<8x1024xf32> to vector<8x256xf32>
    %180 = math.tanh %179 : vector<8x256xf32>
    %181 = vector.extract_strided_slice %166 {offsets = [0, 768], sizes = [8, 256], strides = [1, 1]} : vector<8x1024xf32> to vector<8x256xf32>
    %182 = arith.negf %181 : vector<8x256xf32>
    %183 = math.exp %182 : vector<8x256xf32>
    %cst_41 = arith.constant 1.000000e+00 : f32
    %184 = vector.broadcast %cst_41 : f32 to vector<8x256xf32>
    %185 = arith.addf %184, %183 : vector<8x256xf32>
    %186 = arith.divf %184, %185 : vector<8x256xf32>
    %187 = arith.mulf %178, %158 : vector<8x256xf32>
    %188 = arith.mulf %172, %180 : vector<8x256xf32>
    %189 = arith.addf %187, %188 : vector<8x256xf32>
    %190 = math.tanh %189 : vector<8x256xf32>
    %191 = arith.mulf %186, %190 : vector<8x256xf32>
    %c6 = arith.constant 6 : index
    %c0_42 = arith.constant 0 : index
    %c0_43 = arith.constant 0 : index
    %192 = vector.load %arg2[%c6, %c0_42, %c0_43] : memref<8x8x1024xbf16, #tpu.memory_space<vmem>>, vector<1x8x1024xbf16>
    %193 = vector.shape_cast %192 : vector<1x8x1024xbf16> to vector<8x1024xbf16>
    %194 = arith.extf %193 : vector<8x1024xbf16> to vector<8x1024xf32>
    %195 = arith.truncf %191 : vector<8x256xf32> to vector<8x256xbf16>
    %cst_44 = arith.constant dense<0.000000e+00> : vector<8x1024xf32>
    %196 = tpu.matmul %195, %3, %cst_44 {dimension_numbers = #tpu.dot_dimension_numbers<[1], [0], [0], [1], [0, 0, 1, 1], [], []>} : vector<8x256xbf16>, vector<256x1024xbf16>, vector<8x1024xf32> -> vector<8x1024xf32>
    %197 = arith.addf %194, %196 : vector<8x1024xf32>
    %198 = vector.extract_strided_slice %197 {offsets = [0, 0], sizes = [8, 256], strides = [1, 1]} : vector<8x1024xf32> to vector<8x256xf32>
    %199 = arith.negf %198 : vector<8x256xf32>
    %200 = math.exp %199 : vector<8x256xf32>
    %cst_45 = arith.constant 1.000000e+00 : f32
    %201 = vector.broadcast %cst_45 : f32 to vector<8x256xf32>
    %202 = arith.addf %201, %200 : vector<8x256xf32>
    %203 = arith.divf %201, %202 : vector<8x256xf32>
    %204 = vector.extract_strided_slice %197 {offsets = [0, 256], sizes = [8, 256], strides = [1, 1]} : vector<8x1024xf32> to vector<8x256xf32>
    %205 = arith.negf %204 : vector<8x256xf32>
    %206 = math.exp %205 : vector<8x256xf32>
    %cst_46 = arith.constant 1.000000e+00 : f32
    %207 = vector.broadcast %cst_46 : f32 to vector<8x256xf32>
    %208 = arith.addf %207, %206 : vector<8x256xf32>
    %209 = arith.divf %207, %208 : vector<8x256xf32>
    %210 = vector.extract_strided_slice %197 {offsets = [0, 512], sizes = [8, 256], strides = [1, 1]} : vector<8x1024xf32> to vector<8x256xf32>
    %211 = math.tanh %210 : vector<8x256xf32>
    %212 = vector.extract_strided_slice %197 {offsets = [0, 768], sizes = [8, 256], strides = [1, 1]} : vector<8x1024xf32> to vector<8x256xf32>
    %213 = arith.negf %212 : vector<8x256xf32>
    %214 = math.exp %213 : vector<8x256xf32>
    %cst_47 = arith.constant 1.000000e+00 : f32
    %215 = vector.broadcast %cst_47 : f32 to vector<8x256xf32>
    %216 = arith.addf %215, %214 : vector<8x256xf32>
    %217 = arith.divf %215, %216 : vector<8x256xf32>
    %218 = arith.mulf %209, %189 : vector<8x256xf32>
    %219 = arith.mulf %203, %211 : vector<8x256xf32>
    %220 = arith.addf %218, %219 : vector<8x256xf32>
    %221 = math.tanh %220 : vector<8x256xf32>
    %222 = arith.mulf %217, %221 : vector<8x256xf32>
    %c7 = arith.constant 7 : index
    %c0_48 = arith.constant 0 : index
    %c0_49 = arith.constant 0 : index
    %223 = vector.load %arg2[%c7, %c0_48, %c0_49] : memref<8x8x1024xbf16, #tpu.memory_space<vmem>>, vector<1x8x1024xbf16>
    %224 = vector.shape_cast %223 : vector<1x8x1024xbf16> to vector<8x1024xbf16>
    %225 = arith.extf %224 : vector<8x1024xbf16> to vector<8x1024xf32>
    %226 = arith.truncf %222 : vector<8x256xf32> to vector<8x256xbf16>
    %cst_50 = arith.constant dense<0.000000e+00> : vector<8x1024xf32>
    %227 = tpu.matmul %226, %3, %cst_50 {dimension_numbers = #tpu.dot_dimension_numbers<[1], [0], [0], [1], [0, 0, 1, 1], [], []>} : vector<8x256xbf16>, vector<256x1024xbf16>, vector<8x1024xf32> -> vector<8x1024xf32>
    %228 = arith.addf %225, %227 : vector<8x1024xf32>
    %229 = vector.extract_strided_slice %228 {offsets = [0, 0], sizes = [8, 256], strides = [1, 1]} : vector<8x1024xf32> to vector<8x256xf32>
    %230 = arith.negf %229 : vector<8x256xf32>
    %231 = math.exp %230 : vector<8x256xf32>
    %cst_51 = arith.constant 1.000000e+00 : f32
    %232 = vector.broadcast %cst_51 : f32 to vector<8x256xf32>
    %233 = arith.addf %232, %231 : vector<8x256xf32>
    %234 = arith.divf %232, %233 : vector<8x256xf32>
    %235 = vector.extract_strided_slice %228 {offsets = [0, 256], sizes = [8, 256], strides = [1, 1]} : vector<8x1024xf32> to vector<8x256xf32>
    %236 = arith.negf %235 : vector<8x256xf32>
    %237 = math.exp %236 : vector<8x256xf32>
    %cst_52 = arith.constant 1.000000e+00 : f32
    %238 = vector.broadcast %cst_52 : f32 to vector<8x256xf32>
    %239 = arith.addf %238, %237 : vector<8x256xf32>
    %240 = arith.divf %238, %239 : vector<8x256xf32>
    %241 = vector.extract_strided_slice %228 {offsets = [0, 512], sizes = [8, 256], strides = [1, 1]} : vector<8x1024xf32> to vector<8x256xf32>
    %242 = math.tanh %241 : vector<8x256xf32>
    %243 = vector.extract_strided_slice %228 {offsets = [0, 768], sizes = [8, 256], strides = [1, 1]} : vector<8x1024xf32> to vector<8x256xf32>
    %244 = arith.negf %243 : vector<8x256xf32>
    %245 = math.exp %244 : vector<8x256xf32>
    %cst_53 = arith.constant 1.000000e+00 : f32
    %246 = vector.broadcast %cst_53 : f32 to vector<8x256xf32>
    %247 = arith.addf %246, %245 : vector<8x256xf32>
    %248 = arith.divf %246, %247 : vector<8x256xf32>
    %249 = arith.mulf %240, %220 : vector<8x256xf32>
    %250 = arith.mulf %234, %242 : vector<8x256xf32>
    %251 = arith.addf %249, %250 : vector<8x256xf32>
    %252 = math.tanh %251 : vector<8x256xf32>
    %253 = arith.mulf %248, %252 : vector<8x256xf32>
    %c0_54 = arith.constant 0 : index
    %c0_55 = arith.constant 0 : index
    %254 = vector.load %arg11[%c0_54, %c0_55] : memref<8x256xf32, #tpu.memory_space<vmem>>, vector<8x256xf32>
    tpu.vector_store %arg11[%c0_54, %c0_55], %253 {strides = array<i32>} : memref<8x256xf32, #tpu.memory_space<vmem>>, vector<8x256xf32>,
    %c0_56 = arith.constant 0 : index
    %c0_57 = arith.constant 0 : index
    %255 = vector.load %arg12[%c0_56, %c0_57] : memref<8x256xf32, #tpu.memory_space<vmem>>, vector<8x256xf32>
    tpu.vector_store %arg12[%c0_56, %c0_57], %251 {strides = array<i32>} : memref<8x256xf32, #tpu.memory_space<vmem>>, vector<8x256xf32>,
    %c0_i32_58 = arith.constant 0 : i32
    %256 = arith.cmpi eq, %arg1, %c0_i32_58 : i32
    %257 = arith.extui %256 : i1 to i32
    %c0_i32_59 = arith.constant 0 : i32
    %258 = arith.cmpi ne, %257, %c0_i32_59 : i32
    scf.if %258 {
      %c0_60 = arith.constant 0 : index
      %c0_61 = arith.constant 0 : index
      %259 = vector.load %arg4[%c0_60, %c0_61] : memref<256x128xf32, #tpu.memory_space<vmem>>, vector<256x128xf32>
      %cst_62 = arith.constant dense<0.000000e+00> : vector<8x128xf32>
      %260 = tpu.matmul %253, %259, %cst_62 {dimension_numbers = #tpu.dot_dimension_numbers<[1], [0], [0], [1], [0, 0, 1, 1], [], []>} : vector<8x256xf32>, vector<256x128xf32>, vector<8x128xf32> -> vector<8x128xf32>
      %c0_63 = arith.constant 0 : index
      %c0_64 = arith.constant 0 : index
      %261 = vector.load %arg5[%c0_63, %c0_64] : memref<1x128xf32, #tpu.memory_space<vmem>>, vector<1x128xf32>
      %262 = vector.broadcast %261 : vector<1x128xf32> to vector<8x128xf32>
      %263 = arith.addf %260, %262 : vector<8x128xf32>
      %cst_65 = arith.constant 0.000000e+00 : f32
      %264 = vector.broadcast %cst_65 : f32 to vector<8x128xf32>
      %265 = arith.cmpf ogt, %263, %264 : vector<8x128xf32>
      %cst_66 = arith.constant 0.00999999977 : f32
      %266 = vector.broadcast %cst_66 : f32 to vector<8x128xf32>
      %267 = arith.mulf %266, %263 : vector<8x128xf32>
      %268 = arith.select %265, %263, %267 : vector<8x128xi1>, vector<8x128xf32>
      %c0_67 = arith.constant 0 : index
      %c0_68 = arith.constant 0 : index
      %269 = vector.load %arg6[%c0_67, %c0_68] : memref<128x64xf32, #tpu.memory_space<vmem>>, vector<128x64xf32>
      %cst_69 = arith.constant dense<0.000000e+00> : vector<8x64xf32>
      %270 = tpu.matmul %268, %269, %cst_69 {dimension_numbers = #tpu.dot_dimension_numbers<[1], [0], [0], [1], [0, 0, 1, 1], [], []>} : vector<8x128xf32>, vector<128x64xf32>, vector<8x64xf32> -> vector<8x64xf32>
      %c0_70 = arith.constant 0 : index
      %c0_71 = arith.constant 0 : index
      %271 = vector.load %arg7[%c0_70, %c0_71] : memref<1x64xf32, #tpu.memory_space<vmem>>, vector<1x64xf32>
      %272 = vector.broadcast %271 : vector<1x64xf32> to vector<8x64xf32>
      %273 = arith.addf %270, %272 : vector<8x64xf32>
      %cst_72 = arith.constant 0.000000e+00 : f32
      %274 = vector.broadcast %cst_72 : f32 to vector<8x64xf32>
      %275 = arith.cmpf ogt, %273, %274 : vector<8x64xf32>
      %cst_73 = arith.constant 0.00999999977 : f32
      %276 = vector.broadcast %cst_73 : f32 to vector<8x64xf32>
      %277 = arith.mulf %276, %273 : vector<8x64xf32>
      %278 = arith.select %275, %273, %277 : vector<8x64xi1>, vector<8x64xf32>
      %c0_74 = arith.constant 0 : index
      %c0_75 = arith.constant 0 : index
      %279 = vector.load %arg8[%c0_74, %c0_75] : memref<64x1xf32, #tpu.memory_space<vmem>>, vector<64x1xf32>
      %cst_76 = arith.constant dense<0.000000e+00> : vector<8x1xf32>
      %280 = tpu.matmul %278, %279, %cst_76 {dimension_numbers = #tpu.dot_dimension_numbers<[1], [0], [0], [1], [0, 0, 1, 1], [], []>} : vector<8x64xf32>, vector<64x1xf32>, vector<8x1xf32> -> vector<8x1xf32>
      %c0_77 = arith.constant 0 : index
      %c0_78 = arith.constant 0 : index
      %281 = vector.load %arg9[%c0_77, %c0_78] : memref<1x1xf32, #tpu.memory_space<vmem>>, vector<1x1xf32>
      %282 = vector.broadcast %281 : vector<1x1xf32> to vector<8x1xf32>
      %283 = arith.addf %280, %282 : vector<8x1xf32>
      %c0_79 = arith.constant 0 : index
      %c0_80 = arith.constant 0 : index
      %284 = vector.load %arg10[%c0_79, %c0_80] : memref<8x1xf32, #tpu.memory_space<vmem>>, vector<8x1xf32>
      tpu.vector_store %arg10[%c0_79, %c0_80], %283 {strides = array<i32>} : memref<8x1xf32, #tpu.memory_space<vmem>>, vector<8x1xf32>,
    } else {
    }
    return
  }
  func.func @transform_0(%arg0: i32, %arg1: i32) -> (i32, i32, i32) {
    %c0_i32 = arith.constant 0 : i32
    %c0_i32_0 = arith.constant 0 : i32
    return %arg1, %arg0, %c0_i32 : i32, i32, i32
  }
  func.func @transform_1(%arg0: i32, %arg1: i32) -> (i32, i32) {
    %c0_i32 = arith.constant 0 : i32
    %c0_i32_0 = arith.constant 0 : i32
    %c0_i32_1 = arith.constant 0 : i32
    return %c0_i32, %c0_i32_0 : i32, i32
  }
  func.func @transform_2(%arg0: i32, %arg1: i32) -> (i32, i32) {
    %c0_i32 = arith.constant 0 : i32
    %c0_i32_0 = arith.constant 0 : i32
    %c0_i32_1 = arith.constant 0 : i32
    return %c0_i32, %c0_i32_0 : i32, i32
  }
  func.func @transform_3(%arg0: i32, %arg1: i32) -> (i32, i32) {
    %c0_i32 = arith.constant 0 : i32
    %c0_i32_0 = arith.constant 0 : i32
    %c0_i32_1 = arith.constant 0 : i32
    return %c0_i32, %c0_i32_0 : i32, i32
  }
  func.func @transform_4(%arg0: i32, %arg1: i32) -> (i32, i32) {
    %c0_i32 = arith.constant 0 : i32
    %c0_i32_0 = arith.constant 0 : i32
    %c0_i32_1 = arith.constant 0 : i32
    return %c0_i32, %c0_i32_0 : i32, i32
  }
  func.func @transform_5(%arg0: i32, %arg1: i32) -> (i32, i32) {
    %c0_i32 = arith.constant 0 : i32
    %c0_i32_0 = arith.constant 0 : i32
    %c0_i32_1 = arith.constant 0 : i32
    return %c0_i32, %c0_i32_0 : i32, i32
  }
  func.func @transform_6(%arg0: i32, %arg1: i32) -> (i32, i32) {
    %c0_i32 = arith.constant 0 : i32
    %c0_i32_0 = arith.constant 0 : i32
    %c0_i32_1 = arith.constant 0 : i32
    return %c0_i32, %c0_i32_0 : i32, i32
  }
  func.func @transform_7(%arg0: i32, %arg1: i32) -> (i32, i32) {
    %c0_i32 = arith.constant 0 : i32
    %c0_i32_0 = arith.constant 0 : i32
    %c0_i32_1 = arith.constant 0 : i32
    return %c0_i32, %c0_i32_0 : i32, i32
  }
  func.func @transform_8(%arg0: i32, %arg1: i32) -> (i32, i32) {
    %c0_i32 = arith.constant 0 : i32
    %c0_i32_0 = arith.constant 0 : i32
    return %arg0, %c0_i32 : i32, i32
  }
}

</mosaic_0001>

<llo_original>
// kernel: rnn_forward.2
$region0: #{rnn_forward.2}
  #allocation0 [shape = 'u32[]', space=smem, size = 0x4, offset = 0x4, fixed_abs, tag = 'smem constant byte address 0x4 - core index']
  #allocation1 [shape = 'u32[144,128]{1,0:T(1,128)}', space=vmem, size = 0x12000, scoped, tag = 'internal scratch']
  %s0 = inlined_call_operand.vmem [shape: f32[8,8,32], index: 0, kind: input, shape index: {}]
  %s1 = inlined_call_operand.vmem [shape: bf16[32,1024], index: 1, kind: input, shape index: {}]
  %s2 = inlined_call_operand.vmem [shape: f32[1,1024], index: 2, kind: input, shape index: {}]
  %s3 = inlined_call_operand.vmem [shape: bf16[8,8,1024], index: 3, kind: output, shape index: {}]
  %s4 = sld [smem:[#allocation0]]
  $region22: #{rnn_forward.2} parent=0
    _
  %s6 = ssub.s32 1, %s4
  %s7 = scalar_select 0, %s6, %s4
  // Predicated region
  $region2: #{rnn_forward.2} parent=0 // pred_check
    _
  $region3: #{rnn_forward.2} parent=0 // pred_check_branch
    %9 = sbr.rel (0) target = $region5
  $region4: #{rnn_forward.2} parent=0 // pred_region
    _
  $region5: #{rnn_forward.2} parent=0 // pred_fallthru
    _
  // Predicated region
  $region6: #{rnn_forward.2} parent=0 // pred_check
    _
  $region7: #{rnn_forward.2} parent=0 // pred_check_branch
    %11 = sbr.rel (0) target = $region9
  $region8: #{rnn_forward.2} parent=0 // pred_region
    _
  $region9: #{rnn_forward.2} parent=0 // pred_fallthru
    _
  // Predicated region
  $region10: #{rnn_forward.2} parent=0 // pred_check
    _
  $region11: #{rnn_forward.2} parent=0 // pred_check_branch
    %13 = sbr.rel (0) target = $region13
  $region12: #{rnn_forward.2} parent=0 // pred_region
    _
  $region13: #{rnn_forward.2} parent=0 // pred_fallthru
    _
  %v15 = vld [vmem:[%s0] sm:$0xff]
  %v16 = vld [vmem:[%s0 + $0x8] sm:$0xff]
  %v17 = vld [vmem:[%s0 + $0x10] sm:$0xff]
  %v18 = vld [vmem:[%s0 + $0x18] sm:$0xff]
  %v19 = vld [vmem:[%s0 + $0x20] sm:$0xff]
  %v20 = vld [vmem:[%s0 + $0x28] sm:$0xff]
  %v21 = vld [vmem:[%s0 + $0x30] sm:$0xff]
  %v22 = vld [vmem:[%s0 + $0x38] sm:$0xff]
  %vm23 = vcmask 261120
  %v24 = vsel %vm23, %v15, 0.0
  %25 = vadd.xlane.f32.xlu0 %v24
  %v26 = vpop.xlane.xlu0 %25
  %v27 = vsel %vm23, %v16, 0.0
  %28 = vadd.xlane.f32.xlu0 %v27
  %v29 = vpop.xlane.xlu0 %28
  %v30 = vsel %vm23, %v17, 0.0
  %31 = vadd.xlane.f32.xlu0 %v30
  %v32 = vpop.xlane.xlu0 %31
  %v33 = vsel %vm23, %v18, 0.0
  %34 = vadd.xlane.f32.xlu0 %v33
  %v35 = vpop.xlane.xlu0 %34
  %v36 = vsel %vm23, %v19, 0.0
  %37 = vadd.xlane.f32.xlu0 %v36
  %v38 = vpop.xlane.xlu0 %37
  %v39 = vsel %vm23, %v20, 0.0
  %40 = vadd.xlane.f32.xlu0 %v39
  %v41 = vpop.xlane.xlu0 %40
  %v42 = vsel %vm23, %v21, 0.0
  %43 = vadd.xlane.f32.xlu0 %v42
  %v44 = vpop.xlane.xlu0 %43
  %v45 = vsel %vm23, %v22, 0.0
  %46 = vadd.xlane.f32.xlu0 %v45
  %v47 = vpop.xlane.xlu0 %46
  %v48 = vrcp.pop 32.0
  %v49 = vmul.f32 %v26, %v48
  %v50 = vmul.f32 %v29, %v48
  %v51 = vmul.f32 %v32, %v48
  %v52 = vmul.f32 %v35, %v48
  %v53 = vmul.f32 %v38, %v48
  %v54 = vmul.f32 %v41, %v48
  %v55 = vmul.f32 %v44, %v48
  %v56 = vmul.f32 %v47, %v48
  %v57 = vmul.f32 %v15, %v15
  %v58 = vmul.f32 %v16, %v16
  %v59 = vmul.f32 %v17, %v17
  %v60 = vmul.f32 %v18, %v18
  %v61 = vmul.f32 %v19, %v19
  %v62 = vmul.f32 %v20, %v20
  %v63 = vmul.f32 %v21, %v21
  %v64 = vmul.f32 %v22, %v22
  %v65 = vsel %vm23, %v57, 0.0
  %66 = vadd.xlane.f32.xlu0 %v65
  %v67 = vpop.xlane.xlu0 %66
  %v68 = vsel %vm23, %v58, 0.0
  %69 = vadd.xlane.f32.xlu0 %v68
  %v70 = vpop.xlane.xlu0 %69
  %v71 = vsel %vm23, %v59, 0.0
  %72 = vadd.xlane.f32.xlu0 %v71
  %v73 = vpop.xlane.xlu0 %72
  %v74 = vsel %vm23, %v60, 0.0
  %75 = vadd.xlane.f32.xlu0 %v74
  %v76 = vpop.xlane.xlu0 %75
  %v77 = vsel %vm23, %v61, 0.0
  %78 = vadd.xlane.f32.xlu0 %v77
  %v79 = vpop.xlane.xlu0 %78
  %v80 = vsel %vm23, %v62, 0.0
  %81 = vadd.xlane.f32.xlu0 %v80
  %v82 = vpop.xlane.xlu0 %81
  %v83 = vsel %vm23, %v63, 0.0
  %84 = vadd.xlane.f32.xlu0 %v83
  %v85 = vpop.xlane.xlu0 %84
  %v86 = vsel %vm23, %v64, 0.0
  %87 = vadd.xlane.f32.xlu0 %v86
  %v88 = vpop.xlane.xlu0 %87
  %v89 = vmul.f32 %v67, %v48
  %v90 = vmul.f32 %v70, %v48
  %v91 = vmul.f32 %v73, %v48
  %v92 = vmul.f32 %v76, %v48
  %v93 = vmul.f32 %v79, %v48
  %v94 = vmul.f32 %v82, %v48
  %v95 = vmul.f32 %v85, %v48
  %v96 = vmul.f32 %v88, %v48
  %v97 = vmul.f32 %v49, %v49
  %v98 = vmul.f32 %v50, %v50
  %v99 = vmul.f32 %v51, %v51
  %v100 = vmul.f32 %v52, %v52
  %v101 = vmul.f32 %v53, %v53
  %v102 = vmul.f32 %v54, %v54
  %v103 = vmul.f32 %v55, %v55
  %v104 = vmul.f32 %v56, %v56
  %v105 = vsub.f32 %v89, %v97
  %v106 = vsub.f32 %v90, %v98
  %v107 = vsub.f32 %v91, %v99
  %v108 = vsub.f32 %v92, %v100
  %v109 = vsub.f32 %v93, %v101
  %v110 = vsub.f32 %v94, %v102
  %v111 = vsub.f32 %v95, %v103
  %v112 = vsub.f32 %v96, %v104
  %v113 = vmax.f32 %v105, 0.0
  %v114 = vmax.f32 %v106, 0.0
  %v115 = vmax.f32 %v107, 0.0
  %v116 = vmax.f32 %v108, 0.0
  %v117 = vmax.f32 %v109, 0.0
  %v118 = vmax.f32 %v110, 0.0
  %v119 = vmax.f32 %v111, 0.0
  %v120 = vmax.f32 %v112, 0.0
  %v121 = vsub.f32 %v15, %v49
  %v122 = vsub.f32 %v16, %v50
  %v123 = vsub.f32 %v17, %v51
  %v124 = vsub.f32 %v18, %v52
  %v125 = vsub.f32 %v19, %v53
  %v126 = vsub.f32 %v20, %v54
  %v127 = vsub.f32 %v21, %v55
  %v128 = vsub.f32 %v22, %v56
  %v129 = vadd.f32 %v113, 1e-05
  %v130 = vadd.f32 %v114, 1e-05
  %v131 = vadd.f32 %v115, 1e-05
  %v132 = vadd.f32 %v116, 1e-05
  %v133 = vadd.f32 %v117, 1e-05
  %v134 = vadd.f32 %v118, 1e-05
  %v135 = vadd.f32 %v119, 1e-05
  %v136 = vadd.f32 %v120, 1e-05
  %v137 = vrsqrt.pop %v129
  %v138 = vrsqrt.pop %v130
  %v139 = vrsqrt.pop %v131
  %v140 = vrsqrt.pop %v132
  %v141 = vrsqrt.pop %v133
  %v142 = vrsqrt.pop %v134
  %v143 = vrsqrt.pop %v135
  %v144 = vrsqrt.pop %v136
  %v145 = vmul.f32 %v121, %v137
  %v146 = vmul.f32 %v122, %v138
  %v147 = vmul.f32 %v123, %v139
  %v148 = vmul.f32 %v124, %v140
  %v149 = vmul.f32 %v125, %v141
  %v150 = vmul.f32 %v126, %v142
  %v151 = vmul.f32 %v127, %v143
  %v152 = vmul.f32 %v128, %v144
  %v153 = vpack.c.bf16 %v146, %v145
  %v154 = vpack.c.bf16 %v148, %v147
  %v155 = vpack.c.bf16 %v150, %v149
  %v156 = vpack.c.bf16 %v152, %v151
  %v157 = vld [vmem:[%s1] sm:$0xff]
  %v158 = vld [vmem:[%s1 + $0x8] sm:$0xff]
  %v159 = vld [vmem:[%s1 + $0x10] sm:$0xff]
  %v160 = vld [vmem:[%s1 + $0x18] sm:$0xff]
  %v161 = vld [vmem:[%s1 + $0x20] sm:$0xff]
  %v162 = vld [vmem:[%s1 + $0x28] sm:$0xff]
  %v163 = vld [vmem:[%s1 + $0x30] sm:$0xff]
  %v164 = vld [vmem:[%s1 + $0x38] sm:$0xff]
  %v165 = vld [vmem:[%s1 + $0x40] sm:$0xff]
  %v166 = vld [vmem:[%s1 + $0x48] sm:$0xff]
  %v167 = vld [vmem:[%s1 + $0x50] sm:$0xff]
  %v168 = vld [vmem:[%s1 + $0x58] sm:$0xff]
  %v169 = vld [vmem:[%s1 + $0x60] sm:$0xff]
  %v170 = vld [vmem:[%s1 + $0x68] sm:$0xff]
  %v171 = vld [vmem:[%s1 + $0x70] sm:$0xff]
  %v172 = vld [vmem:[%s1 + $0x78] sm:$0xff]
  %v173 = vld [vmem:[%s2] sm:$0xff]
  %v175 = vlaneseq
  %v176 = vshrl.u32 %v175, 7
  %v177 = vsub.s32 0, %v176
  %v178 = vrot.slane %v173, %v177
  %v179 = vlaneseq
  %v180 = vshrl.u32 %v179, 7
  %v181 = vsub.s32 1, %v180
  %v182 = vrot.slane %v173, %v181
  %v183 = vlaneseq
  %v184 = vshrl.u32 %v183, 7
  %v185 = vsub.s32 2, %v184
  %v186 = vrot.slane %v173, %v185
  %v187 = vlaneseq
  %v188 = vshrl.u32 %v187, 7
  %v189 = vsub.s32 3, %v188
  %v190 = vrot.slane %v173, %v189
  %v191 = vlaneseq
  %v192 = vshrl.u32 %v191, 7
  %v193 = vsub.s32 4, %v192
  %v194 = vrot.slane %v173, %v193
  %v195 = vlaneseq
  %v196 = vshrl.u32 %v195, 7
  %v197 = vsub.s32 5, %v196
  %v198 = vrot.slane %v173, %v197
  %v199 = vlaneseq
  %v200 = vshrl.u32 %v199, 7
  %v201 = vsub.s32 6, %v200
  %v202 = vrot.slane %v173, %v201
  %v203 = vlaneseq
  %v204 = vshrl.u32 %v203, 7
  %v205 = vsub.s32 7, %v204
  %v206 = vrot.slane %v173, %v205
  %v231 = vunpack.c.l.b16 %v157
  %v232 = vunpack.c.h.b16 %v157
  %v233 = vunpack.c.l.b16 %v158
  %v234 = vunpack.c.h.b16 %v158
  %v235 = vunpack.c.l.b16 %v159
  %v236 = vunpack.c.h.b16 %v159
  %v237 = vunpack.c.l.b16 %v160
  %v238 = vunpack.c.h.b16 %v160
  %v239 = vunpack.c.l.b16 %v161
  %v240 = vunpack.c.h.b16 %v161
  %v241 = vunpack.c.l.b16 %v162
  %v242 = vunpack.c.h.b16 %v162
  %v243 = vunpack.c.l.b16 %v163
  %v244 = vunpack.c.h.b16 %v163
  %v245 = vunpack.c.l.b16 %v164
  %v246 = vunpack.c.h.b16 %v164
  %v247 = vunpack.c.l.b16 %v165
  %v248 = vunpack.c.h.b16 %v165
  %v249 = vunpack.c.l.b16 %v166
  %v250 = vunpack.c.h.b16 %v166
  %v251 = vunpack.c.l.b16 %v167
  %v252 = vunpack.c.h.b16 %v167
  %v253 = vunpack.c.l.b16 %v168
  %v254 = vunpack.c.h.b16 %v168
  %v255 = vunpack.c.l.b16 %v169
  %v256 = vunpack.c.h.b16 %v169
  %v257 = vunpack.c.l.b16 %v170
  %v258 = vunpack.c.h.b16 %v170
  %v259 = vunpack.c.l.b16 %v171
  %v260 = vunpack.c.h.b16 %v171
  %v261 = vunpack.c.l.b16 %v172
  %v262 = vunpack.c.h.b16 %v172
  %v263 = vpack.c.b16 %v239, %v231
  %v264 = vpack.c.b16 %v240, %v232
  %v265 = vpack.c.b16 %v241, %v233
  %v266 = vpack.c.b16 %v242, %v234
  %v267 = vpack.c.b16 %v243, %v235
  %v268 = vpack.c.b16 %v244, %v236
  %v269 = vpack.c.b16 %v245, %v237
  %v270 = vpack.c.b16 %v246, %v238
  %v271 = vpack.c.b16 %v255, %v247
  %v272 = vpack.c.b16 %v256, %v248
  %v273 = vpack.c.b16 %v257, %v249
  %v274 = vpack.c.b16 %v258, %v250
  %v275 = vpack.c.b16 %v259, %v251
  %v276 = vpack.c.b16 %v260, %v252
  %v277 = vpack.c.b16 %v261, %v253
  %v278 = vpack.c.b16 %v262, %v254
  %v296 = vsel %vm23, %v153, 0
  %v299 = vsel %vm23, %v154, 0
  %v302 = vsel %vm23, %v155, 0
  %v305 = vsel %vm23, %v156, 0
  %307 = vmatprep.subr.bf16.mxu0 0
  %308 = vmatpush1.bf16.msra.mxu0 0
  %309 = vmatprep.subr.bf16.mxu0 0
  %310 = vmatpush1.bf16.msra.mxu0 0
  %311 = vmatprep.subr.bf16.mxu0 0
  %312 = vmatpush1.bf16.msra.mxu0 0
  %313 = vmatprep.subr.bf16.mxu0 0
  %314 = vmatpush1.bf16.msra.mxu0 0
  %315 = vmatprep.subr.bf16.mxu0 0
  %316 = vmatpush1.bf16.msra.mxu0 0
  %317 = vmatprep.subr.bf16.mxu0 0
  %318 = vmatpush1.bf16.msra.mxu0 0
  %319 = vmatprep.subr.bf16.mxu0 %v272
  %320 = vmatpush1.bf16.msra.mxu0 %v271
  %321 = vmatprep.subr.bf16.mxu0 %v264
  %322 = vmatpush1.bf16.msra.mxu0 %v263
  %323 = vmatprep.subr.bf16.mxu0 0
  %324 = vmatpush2.bf16.msra.mxu0 0
  %325 = vmatprep.subr.bf16.mxu0 0
  %326 = vmatpush2.bf16.msra.mxu0 0
  %327 = vmatprep.subr.bf16.mxu0 0
  %328 = vmatpush2.bf16.msra.mxu0 0
  %329 = vmatprep.subr.bf16.mxu0 0
  %330 = vmatpush2.bf16.msra.mxu0 0
  %331 = vmatprep.subr.bf16.mxu0 0
  %332 = vmatpush2.bf16.msra.mxu0 0
  %333 = vmatprep.subr.bf16.mxu0 0
  %334 = vmatpush2.bf16.msra.mxu0 0
  %335 = vmatprep.subr.bf16.mxu0 0
  %336 = vmatpush2.bf16.msra.mxu0 0
  %337 = vmatprep.subr.bf16.mxu0 0
  %338 = vmatpush2.bf16.msra.mxu0 0
  %339 = vmatprep.mubr.bf16.mxu0 0
  %340 = vmatmul.mubr.bf16.gmra.mxu0 %v296
  %v341 = vpop.f32.mrf.mxu0
  %v342 = vadd.f32 %v178, %v341
  %v343 = vpop.f32.mrf.mxu0
  %v344 = vadd.f32 %v182, %v343
  %v345 = vpop.f32.mrf.mxu0
  %v346 = vadd.f32 %v178, %v345
  %v347 = vpop.f32.mrf.mxu0
  %v348 = vadd.f32 %v182, %v347
  %349 = vmatprep.mubr.bf16.mxu0 0
  %350 = vmatmul.mubr.bf16.gmra.mxu0 %v299
  %v351 = vpop.f32.mrf.mxu0
  %v352 = vadd.f32 %v178, %v351
  %v353 = vpop.f32.mrf.mxu0
  %v354 = vadd.f32 %v182, %v353
  %v355 = vpop.f32.mrf.mxu0
  %v356 = vadd.f32 %v178, %v355
  %v357 = vpop.f32.mrf.mxu0
  %v358 = vadd.f32 %v182, %v357
  %359 = vmatprep.mubr.bf16.mxu0 0
  %360 = vmatmul.mubr.bf16.gmra.mxu0 %v302
  %v361 = vpop.f32.mrf.mxu0
  %v362 = vadd.f32 %v178, %v361
  %v363 = vpop.f32.mrf.mxu0
  %v364 = vadd.f32 %v182, %v363
  %v365 = vpop.f32.mrf.mxu0
  %v366 = vadd.f32 %v178, %v365
  %v367 = vpop.f32.mrf.mxu0
  %v368 = vadd.f32 %v182, %v367
  %369 = vmatprep.mubr.bf16.mxu0 0
  %370 = vmatmul.mubr.bf16.gmra.mxu0 %v305
  %v371 = vpop.f32.mrf.mxu0
  %v372 = vadd.f32 %v178, %v371
  %v373 = vpop.f32.mrf.mxu0
  %v374 = vadd.f32 %v182, %v373
  %v375 = vpop.f32.mrf.mxu0
  %v376 = vadd.f32 %v178, %v375
  %v377 = vpop.f32.mrf.mxu0
  %v378 = vadd.f32 %v182, %v377
  %379 = vdwg.mxu0
  %380 = vmatprep.subr.bf16.mxu0 0
  %381 = vmatpush1.bf16.msra.mxu0 0
  %382 = vmatprep.subr.bf16.mxu0 0
  %383 = vmatpush1.bf16.msra.mxu0 0
  %384 = vmatprep.subr.bf16.mxu0 0
  %385 = vmatpush1.bf16.msra.mxu0 0
  %386 = vmatprep.subr.bf16.mxu0 0
  %387 = vmatpush1.bf16.msra.mxu0 0
  %388 = vmatprep.subr.bf16.mxu0 0
  %389 = vmatpush1.bf16.msra.mxu0 0
  %390 = vmatprep.subr.bf16.mxu0 0
  %391 = vmatpush1.bf16.msra.mxu0 0
  %392 = vmatprep.subr.bf16.mxu0 %v274
  %393 = vmatpush1.bf16.msra.mxu0 %v273
  %394 = vmatprep.subr.bf16.mxu0 %v266
  %395 = vmatpush1.bf16.msra.mxu0 %v265
  %396 = vmatprep.subr.bf16.mxu0 0
  %397 = vmatpush2.bf16.msra.mxu0 0
  %398 = vmatprep.subr.bf16.mxu0 0
  %399 = vmatpush2.bf16.msra.mxu0 0
  %400 = vmatprep.subr.bf16.mxu0 0
  %401 = vmatpush2.bf16.msra.mxu0 0
  %402 = vmatprep.subr.bf16.mxu0 0
  %403 = vmatpush2.bf16.msra.mxu0 0
  %404 = vmatprep.subr.bf16.mxu0 0
  %405 = vmatpush2.bf16.msra.mxu0 0
  %406 = vmatprep.subr.bf16.mxu0 0
  %407 = vmatpush2.bf16.msra.mxu0 0
  %408 = vmatprep.subr.bf16.mxu0 0
  %409 = vmatpush2.bf16.msra.mxu0 0
  %410 = vmatprep.subr.bf16.mxu0 0
  %411 = vmatpush2.bf16.msra.mxu0 0
  %412 = vmatprep.mubr.bf16.mxu0 0
  %413 = vmatmul.mubr.bf16.gmra.mxu0 %v296
  %v414 = vpop.f32.mrf.mxu0
  %v415 = vadd.f32 %v186, %v414
  %v416 = vpop.f32.mrf.mxu0
  %v417 = vadd.f32 %v190, %v416
  %v418 = vpop.f32.mrf.mxu0
  %v419 = vadd.f32 %v186, %v418
  %v420 = vpop.f32.mrf.mxu0
  %v421 = vadd.f32 %v190, %v420
  %422 = vmatprep.mubr.bf16.mxu0 0
  %423 = vmatmul.mubr.bf16.gmra.mxu0 %v299
  %v424 = vpop.f32.mrf.mxu0
  %v425 = vadd.f32 %v186, %v424
  %v426 = vpop.f32.mrf.mxu0
  %v427 = vadd.f32 %v190, %v426
  %v428 = vpop.f32.mrf.mxu0
  %v429 = vadd.f32 %v186, %v428
  %v430 = vpop.f32.mrf.mxu0
  %v431 = vadd.f32 %v190, %v430
  %432 = vmatprep.mubr.bf16.mxu0 0
  %433 = vmatmul.mubr.bf16.gmra.mxu0 %v302
  %v434 = vpop.f32.mrf.mxu0
  %v435 = vadd.f32 %v186, %v434
  %v436 = vpop.f32.mrf.mxu0
  %v437 = vadd.f32 %v190, %v436
  %v438 = vpop.f32.mrf.mxu0
  %v439 = vadd.f32 %v186, %v438
  %v440 = vpop.f32.mrf.mxu0
  %v441 = vadd.f32 %v190, %v440
  %442 = vmatprep.mubr.bf16.mxu0 0
  %443 = vmatmul.mubr.bf16.gmra.mxu0 %v305
  %v444 = vpop.f32.mrf.mxu0
  %v445 = vadd.f32 %v186, %v444
  %v446 = vpop.f32.mrf.mxu0
  %v447 = vadd.f32 %v190, %v446
  %v448 = vpop.f32.mrf.mxu0
  %v449 = vadd.f32 %v186, %v448
  %v450 = vpop.f32.mrf.mxu0
  %v451 = vadd.f32 %v190, %v450
  %452 = vdwg.mxu0
  %453 = vmatprep.subr.bf16.mxu0 0
  %454 = vmatpush1.bf16.msra.mxu0 0
  %455 = vmatprep.subr.bf16.mxu0 0
  %456 = vmatpush1.bf16.msra.mxu0 0
  %457 = vmatprep.subr.bf16.mxu0 0
  %458 = vmatpush1.bf16.msra.mxu0 0
  %459 = vmatprep.subr.bf16.mxu0 0
  %460 = vmatpush1.bf16.msra.mxu0 0
  %461 = vmatprep.subr.bf16.mxu0 0
  %462 = vmatpush1.bf16.msra.mxu0 0
  %463 = vmatprep.subr.bf16.mxu0 0
  %464 = vmatpush1.bf16.msra.mxu0 0
  %465 = vmatprep.subr.bf16.mxu0 %v276
  %466 = vmatpush1.bf16.msra.mxu0 %v275
  %467 = vmatprep.subr.bf16.mxu0 %v268
  %468 = vmatpush1.bf16.msra.mxu0 %v267
  %469 = vmatprep.subr.bf16.mxu0 0
  %470 = vmatpush2.bf16.msra.mxu0 0
  %471 = vmatprep.subr.bf16.mxu0 0
  %472 = vmatpush2.bf16.msra.mxu0 0
  %473 = vmatprep.subr.bf16.mxu0 0
  %474 = vmatpush2.bf16.msra.mxu0 0
  %475 = vmatprep.subr.bf16.mxu0 0
  %476 = vmatpush2.bf16.msra.mxu0 0
  %477 = vmatprep.subr.bf16.mxu0 0
  %478 = vmatpush2.bf16.msra.mxu0 0
  %479 = vmatprep.subr.bf16.mxu0 0
  %480 = vmatpush2.bf16.msra.mxu0 0
  %481 = vmatprep.subr.bf16.mxu0 0
  %482 = vmatpush2.bf16.msra.mxu0 0
  %483 = vmatprep.subr.bf16.mxu0 0
  %484 = vmatpush2.bf16.msra.mxu0 0
  %485 = vmatprep.mubr.bf16.mxu0 0
  %486 = vmatmul.mubr.bf16.gmra.mxu0 %v296
  %v487 = vpop.f32.mrf.mxu0
  %v488 = vadd.f32 %v194, %v487
  %v489 = vpop.f32.mrf.mxu0
  %v490 = vadd.f32 %v198, %v489
  %v491 = vpop.f32.mrf.mxu0
  %v492 = vadd.f32 %v194, %v491
  %v493 = vpop.f32.mrf.mxu0
  %v494 = vadd.f32 %v198, %v493
  %495 = vmatprep.mubr.bf16.mxu0 0
  %496 = vmatmul.mubr.bf16.gmra.mxu0 %v299
  %v497 = vpop.f32.mrf.mxu0
  %v498 = vadd.f32 %v194, %v497
  %v499 = vpop.f32.mrf.mxu0
  %v500 = vadd.f32 %v198, %v499
  %v501 = vpop.f32.mrf.mxu0
  %v502 = vadd.f32 %v194, %v501
  %v503 = vpop.f32.mrf.mxu0
  %v504 = vadd.f32 %v198, %v503
  %505 = vmatprep.mubr.bf16.mxu0 0
  %506 = vmatmul.mubr.bf16.gmra.mxu0 %v302
  %v507 = vpop.f32.mrf.mxu0
  %v508 = vadd.f32 %v194, %v507
  %v509 = vpop.f32.mrf.mxu0
  %v510 = vadd.f32 %v198, %v509
  %v511 = vpop.f32.mrf.mxu0
  %v512 = vadd.f32 %v194, %v511
  %v513 = vpop.f32.mrf.mxu0
  %v514 = vadd.f32 %v198, %v513
  %515 = vmatprep.mubr.bf16.mxu0 0
  %516 = vmatmul.mubr.bf16.gmra.mxu0 %v305
  %v517 = vpop.f32.mrf.mxu0
  %v518 = vadd.f32 %v194, %v517
  %v519 = vpop.f32.mrf.mxu0
  %v520 = vadd.f32 %v198, %v519
  %v521 = vpop.f32.mrf.mxu0
  %v522 = vadd.f32 %v194, %v521
  %v523 = vpop.f32.mrf.mxu0
  %v524 = vadd.f32 %v198, %v523
  %525 = vdwg.mxu0
  %526 = vmatprep.subr.bf16.mxu0 0
  %527 = vmatpush1.bf16.msra.mxu0 0
  %528 = vmatprep.subr.bf16.mxu0 0
  %529 = vmatpush1.bf16.msra.mxu0 0
  %530 = vmatprep.subr.bf16.mxu0 0
  %531 = vmatpush1.bf16.msra.mxu0 0
  %532 = vmatprep.subr.bf16.mxu0 0
  %533 = vmatpush1.bf16.msra.mxu0 0
  %534 = vmatprep.subr.bf16.mxu0 0
  %535 = vmatpush1.bf16.msra.mxu0 0
  %536 = vmatprep.subr.bf16.mxu0 0
  %537 = vmatpush1.bf16.msra.mxu0 0
  %538 = vmatprep.subr.bf16.mxu0 %v278
  %539 = vmatpush1.bf16.msra.mxu0 %v277
  %540 = vmatprep.subr.bf16.mxu0 %v270
  %541 = vmatpush1.bf16.msra.mxu0 %v269
  %542 = vmatprep.subr.bf16.mxu0 0
  %543 = vmatpush2.bf16.msra.mxu0 0
  %544 = vmatprep.subr.bf16.mxu0 0
  %545 = vmatpush2.bf16.msra.mxu0 0
  %546 = vmatprep.subr.bf16.mxu0 0
  %547 = vmatpush2.bf16.msra.mxu0 0
  %548 = vmatprep.subr.bf16.mxu0 0
  %549 = vmatpush2.bf16.msra.mxu0 0
  %550 = vmatprep.subr.bf16.mxu0 0
  %551 = vmatpush2.bf16.msra.mxu0 0
  %552 = vmatprep.subr.bf16.mxu0 0
  %553 = vmatpush2.bf16.msra.mxu0 0
  %554 = vmatprep.subr.bf16.mxu0 0
  %555 = vmatpush2.bf16.msra.mxu0 0
  %556 = vmatprep.subr.bf16.mxu0 0
  %557 = vmatpush2.bf16.msra.mxu0 0
  %558 = vmatprep.mubr.bf16.mxu0 0
  %559 = vmatmul.mubr.bf16.gmra.mxu0 %v296
  %v560 = vpop.f32.mrf.mxu0
  %v561 = vadd.f32 %v202, %v560
  %v562 = vpop.f32.mrf.mxu0
  %v563 = vadd.f32 %v206, %v562
  %v564 = vpop.f32.mrf.mxu0
  %v565 = vadd.f32 %v202, %v564
  %v566 = vpop.f32.mrf.mxu0
  %v567 = vadd.f32 %v206, %v566
  %568 = vmatprep.mubr.bf16.mxu0 0
  %569 = vmatmul.mubr.bf16.gmra.mxu0 %v299
  %v570 = vpop.f32.mrf.mxu0
  %v571 = vadd.f32 %v202, %v570
  %v572 = vpop.f32.mrf.mxu0
  %v573 = vadd.f32 %v206, %v572
  %v574 = vpop.f32.mrf.mxu0
  %v575 = vadd.f32 %v202, %v574
  %v576 = vpop.f32.mrf.mxu0
  %v577 = vadd.f32 %v206, %v576
  %578 = vmatprep.mubr.bf16.mxu0 0
  %579 = vmatmul.mubr.bf16.gmra.mxu0 %v302
  %v580 = vpop.f32.mrf.mxu0
  %v581 = vadd.f32 %v202, %v580
  %v582 = vpop.f32.mrf.mxu0
  %v583 = vadd.f32 %v206, %v582
  %v584 = vpop.f32.mrf.mxu0
  %v585 = vadd.f32 %v202, %v584
  %v586 = vpop.f32.mrf.mxu0
  %v587 = vadd.f32 %v206, %v586
  %588 = vmatprep.mubr.bf16.mxu0 0
  %589 = vmatmul.mubr.bf16.gmra.mxu0 %v305
  %v590 = vpop.f32.mrf.mxu0
  %v591 = vadd.f32 %v202, %v590
  %v592 = vpop.f32.mrf.mxu0
  %v593 = vadd.f32 %v206, %v592
  %v594 = vpop.f32.mrf.mxu0
  %v595 = vadd.f32 %v202, %v594
  %v596 = vpop.f32.mrf.mxu0
  %v597 = vadd.f32 %v206, %v596
  %598 = vdwg.mxu0
  %v599 = vpack.c.bf16 %v346, %v342
  %v600 = vpack.c.bf16 %v348, %v344
  %v601 = vpack.c.bf16 %v419, %v415
  %v602 = vpack.c.bf16 %v421, %v417
  %v603 = vpack.c.bf16 %v492, %v488
  %v604 = vpack.c.bf16 %v494, %v490
  %v605 = vpack.c.bf16 %v565, %v561
  %v606 = vpack.c.bf16 %v567, %v563
  %v607 = vpack.c.bf16 %v356, %v352
  %v608 = vpack.c.bf16 %v358, %v354
  %v609 = vpack.c.bf16 %v429, %v425
  %v610 = vpack.c.bf16 %v431, %v427
  %v611 = vpack.c.bf16 %v502, %v498
  %v612 = vpack.c.bf16 %v504, %v500
  %v613 = vpack.c.bf16 %v575, %v571
  %v614 = vpack.c.bf16 %v577, %v573
  %v615 = vpack.c.bf16 %v366, %v362
  %v616 = vpack.c.bf16 %v368, %v364
  %v617 = vpack.c.bf16 %v439, %v435
  %v618 = vpack.c.bf16 %v441, %v437
  %v619 = vpack.c.bf16 %v512, %v508
  %v620 = vpack.c.bf16 %v514, %v510
  %v621 = vpack.c.bf16 %v585, %v581
  %v622 = vpack.c.bf16 %v587, %v583
  %v623 = vpack.c.bf16 %v376, %v372
  %v624 = vpack.c.bf16 %v378, %v374
  %v625 = vpack.c.bf16 %v449, %v445
  %v626 = vpack.c.bf16 %v451, %v447
  %v627 = vpack.c.bf16 %v522, %v518
  %v628 = vpack.c.bf16 %v524, %v520
  %v629 = vpack.c.bf16 %v595, %v591
  %v630 = vpack.c.bf16 %v597, %v593
  %v663 = vunpack.c.l.b16 %v599
  %v664 = vunpack.c.l.b16 %v600
  %v665 = vunpack.c.l.b16 %v601
  %v666 = vunpack.c.l.b16 %v602
  %v667 = vunpack.c.l.b16 %v603
  %v668 = vunpack.c.l.b16 %v604
  %v669 = vunpack.c.l.b16 %v605
  %v670 = vunpack.c.l.b16 %v606
  %v671 = vunpack.c.h.b16 %v599
  %v672 = vunpack.c.h.b16 %v600
  %v673 = vunpack.c.h.b16 %v601
  %v674 = vunpack.c.h.b16 %v602
  %v675 = vunpack.c.h.b16 %v603
  %v676 = vunpack.c.h.b16 %v604
  %v677 = vunpack.c.h.b16 %v605
  %v678 = vunpack.c.h.b16 %v606
  %v679 = vunpack.c.l.b16 %v607
  %v680 = vunpack.c.l.b16 %v608
  %v681 = vunpack.c.l.b16 %v609
  %v682 = vunpack.c.l.b16 %v610
  %v683 = vunpack.c.l.b16 %v611
  %v684 = vunpack.c.l.b16 %v612
  %v685 = vunpack.c.l.b16 %v613
  %v686 = vunpack.c.l.b16 %v614
  %v687 = vunpack.c.h.b16 %v607
  %v688 = vunpack.c.h.b16 %v608
  %v689 = vunpack.c.h.b16 %v609
  %v690 = vunpack.c.h.b16 %v610
  %v691 = vunpack.c.h.b16 %v611
  %v692 = vunpack.c.h.b16 %v612
  %v693 = vunpack.c.h.b16 %v613
  %v694 = vunpack.c.h.b16 %v614
  %v695 = vunpack.c.l.b16 %v615
  %v696 = vunpack.c.l.b16 %v616
  %v697 = vunpack.c.l.b16 %v617
  %v698 = vunpack.c.l.b16 %v618
  %v699 = vunpack.c.l.b16 %v619
  %v700 = vunpack.c.l.b16 %v620
  %v701 = vunpack.c.l.b16 %v621
  %v702 = vunpack.c.l.b16 %v622
  %v703 = vunpack.c.h.b16 %v615
  %v704 = vunpack.c.h.b16 %v616
  %v705 = vunpack.c.h.b16 %v617
  %v706 = vunpack.c.h.b16 %v618
  %v707 = vunpack.c.h.b16 %v619
  %v708 = vunpack.c.h.b16 %v620
  %v709 = vunpack.c.h.b16 %v621
  %v710 = vunpack.c.h.b16 %v622
  %v711 = vunpack.c.l.b16 %v623
  %v712 = vunpack.c.l.b16 %v624
  %v713 = vunpack.c.l.b16 %v625
  %v714 = vunpack.c.l.b16 %v626
  %v715 = vunpack.c.l.b16 %v627
  %v716 = vunpack.c.l.b16 %v628
  %v717 = vunpack.c.l.b16 %v629
  %v718 = vunpack.c.l.b16 %v630
  %v719 = vunpack.c.h.b16 %v623
  %v720 = vunpack.c.h.b16 %v624
  %v721 = vunpack.c.h.b16 %v625
  %v722 = vunpack.c.h.b16 %v626
  %v723 = vunpack.c.h.b16 %v627
  %v724 = vunpack.c.h.b16 %v628
  %v725 = vunpack.c.h.b16 %v629
  %v726 = vunpack.c.h.b16 %v630
  %v727 = vpack.c.b16 %v664, %v663
  %v728 = vpack.c.b16 %v666, %v665
  %v729 = vpack.c.b16 %v668, %v667
  %v730 = vpack.c.b16 %v670, %v669
  %v731 = vpack.c.b16 %v672, %v671
  %v732 = vpack.c.b16 %v674, %v673
  %v733 = vpack.c.b16 %v676, %v675
  %v734 = vpack.c.b16 %v678, %v677
  %v735 = vpack.c.b16 %v680, %v679
  %v736 = vpack.c.b16 %v682, %v681
  %v737 = vpack.c.b16 %v684, %v683
  %v738 = vpack.c.b16 %v686, %v685
  %v739 = vpack.c.b16 %v688, %v687
  %v740 = vpack.c.b16 %v690, %v689
  %v741 = vpack.c.b16 %v692, %v691
  %v742 = vpack.c.b16 %v694, %v693
  %v743 = vpack.c.b16 %v696, %v695
  %v744 = vpack.c.b16 %v698, %v697
  %v745 = vpack.c.b16 %v700, %v699
  %v746 = vpack.c.b16 %v702, %v701
  %v747 = vpack.c.b16 %v704, %v703
  %v748 = vpack.c.b16 %v706, %v705
  %v749 = vpack.c.b16 %v708, %v707
  %v750 = vpack.c.b16 %v710, %v709
  %v751 = vpack.c.b16 %v712, %v711
  %v752 = vpack.c.b16 %v714, %v713
  %v753 = vpack.c.b16 %v716, %v715
  %v754 = vpack.c.b16 %v718, %v717
  %v755 = vpack.c.b16 %v720, %v719
  %v756 = vpack.c.b16 %v722, %v721
  %v757 = vpack.c.b16 %v724, %v723
  %v758 = vpack.c.b16 %v726, %v725
  %791 = vst [vmem:[%s3] sm:$0xff] %v727
  %792 = vst [vmem:[%s3 + $0x8] sm:$0xff] %v728
  %793 = vst [vmem:[%s3 + $0x10] sm:$0xff] %v729
  %794 = vst [vmem:[%s3 + $0x18] sm:$0xff] %v730
  %795 = vst [vmem:[%s3 + $0x20] sm:$0xff] %v731
  %796 = vst [vmem:[%s3 + $0x28] sm:$0xff] %v732
  %797 = vst [vmem:[%s3 + $0x30] sm:$0xff] %v733
  %798 = vst [vmem:[%s3 + $0x38] sm:$0xff] %v734
  %799 = vst [vmem:[%s3 + $0x40] sm:$0xff] %v735
  %800 = vst [vmem:[%s3 + $0x48] sm:$0xff] %v736
  %801 = vst [vmem:[%s3 + $0x50] sm:$0xff] %v737
  %802 = vst [vmem:[%s3 + $0x58] sm:$0xff] %v738
  %803 = vst [vmem:[%s3 + $0x60] sm:$0xff] %v739
  %804 = vst [vmem:[%s3 + $0x68] sm:$0xff] %v740
  %805 = vst [vmem:[%s3 + $0x70] sm:$0xff] %v741
  %806 = vst [vmem:[%s3 + $0x78] sm:$0xff] %v742
  %807 = vst [vmem:[%s3 + $0x80] sm:$0xff] %v743
  %808 = vst [vmem:[%s3 + $0x88] sm:$0xff] %v744
  %809 = vst [vmem:[%s3 + $0x90] sm:$0xff] %v745
  %810 = vst [vmem:[%s3 + $0x98] sm:$0xff] %v746
  %811 = vst [vmem:[%s3 + $0xa0] sm:$0xff] %v747
  %812 = vst [vmem:[%s3 + $0xa8] sm:$0xff] %v748
  %813 = vst [vmem:[%s3 + $0xb0] sm:$0xff] %v749
  %814 = vst [vmem:[%s3 + $0xb8] sm:$0xff] %v750
  %815 = vst [vmem:[%s3 + $0xc0] sm:$0xff] %v751
  %816 = vst [vmem:[%s3 + $0xc8] sm:$0xff] %v752
  %817 = vst [vmem:[%s3 + $0xd0] sm:$0xff] %v753
  %818 = vst [vmem:[%s3 + $0xd8] sm:$0xff] %v754
  %819 = vst [vmem:[%s3 + $0xe0] sm:$0xff] %v755
  %820 = vst [vmem:[%s3 + $0xe8] sm:$0xff] %v756
  %821 = vst [vmem:[%s3 + $0xf0] sm:$0xff] %v757
  %822 = vst [vmem:[%s3 + $0xf8] sm:$0xff] %v758
  // Predicated region
  $region14: #{rnn_forward.2} parent=0 // pred_check
    _
  $region15: #{rnn_forward.2} parent=0 // pred_check_branch
    %824 = sbr.rel (0) target = $region17
  $region16: #{rnn_forward.2} parent=0 // pred_region
    _
  $region17: #{rnn_forward.2} parent=0 // pred_fallthru
    _
  // Predicated region
  $region18: #{rnn_forward.2} parent=0 // pred_check
    _
  $region19: #{rnn_forward.2} parent=0 // pred_check_branch
    %826 = sbr.rel (0) target = $region21
  $region20: #{rnn_forward.2} parent=0 // pred_region
    _
  $region21: #{rnn_forward.2} parent=0 // pred_fallthru
    _

// kernel: rnn_forward.3
$region0: #{rnn_forward.3}
  #allocation0 [shape = 'u32[]', space=smem, size = 0x4, offset = 0x4, fixed_abs, tag = 'smem constant byte address 0x4 - core index']
  #allocation1 [shape = 'u32[144,128]{1,0:T(1,128)}', space=vmem, size = 0x12000, scoped, tag = 'internal scratch']
  #allocation2 [shape = 'f32[8,256]{1,0:T(8,128)}', space=vmem, size = 0x2000, scoped, tag = 'scratch operand']
  #allocation3 [shape = 'f32[8,256]{1,0:T(8,128)}', space=vmem, size = 0x2000, scoped, tag = 'scratch operand']
  #allocation4 [shape = 'f32[1,1]{1,0:T(1,128)S(1)}', space=vmem, size = 0x200, scoped, tag = 'scoped memory for rnn_forward.3']
  %s0 = inlined_call_operand.vmem [shape: bf16[8,8,1024], index: 0, kind: input, shape index: {}]
  %s1 = inlined_call_operand.vmem [shape: bf16[256,1024], index: 1, kind: input, shape index: {}]
  %s2 = inlined_call_operand.vmem [shape: f32[256,128], index: 2, kind: input, shape index: {}]
  %s3 = inlined_call_operand.vmem [shape: f32[1,128], index: 3, kind: input, shape index: {}]
  %s4 = inlined_call_operand.vmem [shape: f32[128,64], index: 4, kind: input, shape index: {}]
  %s5 = inlined_call_operand.vmem [shape: f32[1,64], index: 5, kind: input, shape index: {}]
  %s6 = inlined_call_operand.vmem [shape: f32[64,1], index: 6, kind: input, shape index: {}]
  %s7 = inlined_call_operand.<no memory space> [shape: f32[1,1], index: 7, kind: input, shape index: {}]
  %s8 = inlined_call_operand.vmem [shape: f32[8,1], index: 8, kind: output, shape index: {}]
  %s9 = sld [smem:[#allocation0]]
  $region50: #{rnn_forward.3} parent=0
    _
  %s11 = ssub.s32 1, %s9
  %s12 = scalar_select 0, %s11, %s9
  %v13 = vstv %s7
  %14 = vst [vmem:[#allocation4] sm:$0x1] %v13
  // Predicated region
  $region2: #{rnn_forward.3} parent=0 // pred_check
    _
  $region3: #{rnn_forward.3} parent=0 // pred_check_branch
    %16 = sbr.rel (0) target = $region5
  $region4: #{rnn_forward.3} parent=0 // pred_region
    _
  $region5: #{rnn_forward.3} parent=0 // pred_fallthru
    _
  // Predicated region
  $region6: #{rnn_forward.3} parent=0 // pred_check
    _
  $region7: #{rnn_forward.3} parent=0 // pred_check_branch
    %18 = sbr.rel (0) target = $region9
  $region8: #{rnn_forward.3} parent=0 // pred_region
    _
  $region9: #{rnn_forward.3} parent=0 // pred_fallthru
    _
  // Predicated region
  $region10: #{rnn_forward.3} parent=0 // pred_check
    _
  $region11: #{rnn_forward.3} parent=0 // pred_check_branch
    %20 = sbr.rel (0) target = $region13
  $region12: #{rnn_forward.3} parent=0 // pred_region
    _
  $region13: #{rnn_forward.3} parent=0 // pred_fallthru
    _
  // Predicated region
  $region14: #{rnn_forward.3} parent=0 // pred_check
    _
  $region15: #{rnn_forward.3} parent=0 // pred_check_branch
    %22 = sbr.rel (0) target = $region17
  $region16: #{rnn_forward.3} parent=0 // pred_region
    _
  $region17: #{rnn_forward.3} parent=0 // pred_fallthru
    _
  // Predicated region
  $region18: #{rnn_forward.3} parent=0 // pred_check
    _
  $region19: #{rnn_forward.3} parent=0 // pred_check_branch
    %24 = sbr.rel (0) target = $region21
  $region20: #{rnn_forward.3} parent=0 // pred_region
    _
  $region21: #{rnn_forward.3} parent=0 // pred_fallthru
    _
  // Predicated region
  $region22: #{rnn_forward.3} parent=0 // pred_check
    _
  $region23: #{rnn_forward.3} parent=0 // pred_check_branch
    %26 = sbr.rel (0) target = $region25
  $region24: #{rnn_forward.3} parent=0 // pred_region
    _
  $region25: #{rnn_forward.3} parent=0 // pred_fallthru
    _
  // Predicated region
  $region26: #{rnn_forward.3} parent=0 // pred_check
    _
  $region27: #{rnn_forward.3} parent=0 // pred_check_branch
    %28 = sbr.rel (0) target = $region29
  $region28: #{rnn_forward.3} parent=0 // pred_region
    _
  $region29: #{rnn_forward.3} parent=0 // pred_fallthru
    _
  // Predicated region
  $region30: #{rnn_forward.3} parent=0 // pred_check
    _
  $region31: #{rnn_forward.3} parent=0 // pred_check_branch
    %30 = sbr.rel (0) target = $region33
  $region32: #{rnn_forward.3} parent=0 // pred_region
    _
  $region33: #{rnn_forward.3} parent=0 // pred_fallthru
    _
  %p31 = scmp.eq.s32.totalorder 0, 0
  // Predicated region
  $region34: #{rnn_forward.3} parent=0 // pred_check
    %p32 = pneg %p31
  $region35: #{rnn_forward.3} parent=0 // pred_check_branch
    %34 = sbr.rel (%p32) target = $region37
  $region36: #{rnn_forward.3} parent=0 // pred_region
    %35 = vst [vmem:[#allocation2] sm:$0xff] 0.0
    %36 = vst [vmem:[#allocation2 + $0x8] sm:$0xff] 0.0
    %37 = vst [vmem:[#allocation3] sm:$0xff] 0.0
    %38 = vst [vmem:[#allocation3 + $0x8] sm:$0xff] 0.0
  $region37: #{rnn_forward.3} parent=0 // pred_fallthru
    _
  %v39 = vld [vmem:[%s1] sm:$0xff]
  %v40 = vld [vmem:[%s1 + $0x8] sm:$0xff]
  %v41 = vld [vmem:[%s1 + $0x10] sm:$0xff]
  %v42 = vld [vmem:[%s1 + $0x18] sm:$0xff]
  %v43 = vld [vmem:[%s1 + $0x20] sm:$0xff]
  %v44 = vld [vmem:[%s1 + $0x28] sm:$0xff]
  %v45 = vld [vmem:[%s1 + $0x30] sm:$0xff]
  %v46 = vld [vmem:[%s1 + $0x38] sm:$0xff]
  %v47 = vld [vmem:[%s1 + $0x40] sm:$0xff]
  %v48 = vld [vmem:[%s1 + $0x48] sm:$0xff]
  %v49 = vld [vmem:[%s1 + $0x50] sm:$0xff]
  %v50 = vld [vmem:[%s1 + $0x58] sm:$0xff]
  %v51 = vld [vmem:[%s1 + $0x60] sm:$0xff]
  %v52 = vld [vmem:[%s1 + $0x68] sm:$0xff]
  %v53 = vld [vmem:[%s1 + $0x70] sm:$0xff]
  %v54 = vld [vmem:[%s1 + $0x78] sm:$0xff]
  %v55 = vld [vmem:[%s1 + $0x80] sm:$0xff]
  %v56 = vld [vmem:[%s1 + $0x88] sm:$0xff]
  %v57 = vld [vmem:[%s1 + $0x90] sm:$0xff]
  %v58 = vld [vmem:[%s1 + $0x98] sm:$0xff]
  %v59 = vld [vmem:[%s1 + $0xa0] sm:$0xff]
  %v60 = vld [vmem:[%s1 + $0xa8] sm:$0xff]
  %v61 = vld [vmem:[%s1 + $0xb0] sm:$0xff]
  %v62 = vld [vmem:[%s1 + $0xb8] sm:$0xff]
  %v63 = vld [vmem:[%s1 + $0xc0] sm:$0xff]
  %v64 = vld [vmem:[%s1 + $0xc8] sm:$0xff]
  %v65 = vld [vmem:[%s1 + $0xd0] sm:$0xff]
  %v66 = vld [vmem:[%s1 + $0xd8] sm:$0xff]
  %v67 = vld [vmem:[%s1 + $0xe0] sm:$0xff]
  %v68 = vld [vmem:[%s1 + $0xe8] sm:$0xff]
  %v69 = vld [vmem:[%s1 + $0xf0] sm:$0xff]
  %v70 = vld [vmem:[%s1 + $0xf8] sm:$0xff]
  %v71 = vld [vmem:[%s1 + $0x100] sm:$0xff]
  %v72 = vld [vmem:[%s1 + $0x108] sm:$0xff]
  %v73 = vld [vmem:[%s1 + $0x110] sm:$0xff]
  %v74 = vld [vmem:[%s1 + $0x118] sm:$0xff]
  %v75 = vld [vmem:[%s1 + $0x120] sm:$0xff]
  %v76 = vld [vmem:[%s1 + $0x128] sm:$0xff]
  %v77 = vld [vmem:[%s1 + $0x130] sm:$0xff]
  %v78 = vld [vmem:[%s1 + $0x138] sm:$0xff]
  %v79 = vld [vmem:[%s1 + $0x140] sm:$0xff]
  %v80 = vld [vmem:[%s1 + $0x148] sm:$0xff]
  %v81 = vld [vmem:[%s1 + $0x150] sm:$0xff]
  %v82 = vld [vmem:[%s1 + $0x158] sm:$0xff]
  %v83 = vld [vmem:[%s1 + $0x160] sm:$0xff]
  %v84 = vld [vmem:[%s1 + $0x168] sm:$0xff]
  %v85 = vld [vmem:[%s1 + $0x170] sm:$0xff]
  %v86 = vld [vmem:[%s1 + $0x178] sm:$0xff]
  %v87 = vld [vmem:[%s1 + $0x180] sm:$0xff]
  %v88 = vld [vmem:[%s1 + $0x188] sm:$0xff]
  %v89 = vld [vmem:[%s1 + $0x190] sm:$0xff]
  %v90 = vld [vmem:[%s1 + $0x198] sm:$0xff]
  %v91 = vld [vmem:[%s1 + $0x1a0] sm:$0xff]
  %v92 = vld [vmem:[%s1 + $0x1a8] sm:$0xff]
  %v93 = vld [vmem:[%s1 + $0x1b0] sm:$0xff]
  %v94 = vld [vmem:[%s1 + $0x1b8] sm:$0xff]
  %v95 = vld [vmem:[%s1 + $0x1c0] sm:$0xff]
  %v96 = vld [vmem:[%s1 + $0x1c8] sm:$0xff]
  %v97 = vld [vmem:[%s1 + $0x1d0] sm:$0xff]
  %v98 = vld [vmem:[%s1 + $0x1d8] sm:$0xff]
  %v99 = vld [vmem:[%s1 + $0x1e0] sm:$0xff]
  %v100 = vld [vmem:[%s1 + $0x1e8] sm:$0xff]
  %v101 = vld [vmem:[%s1 + $0x1f0] sm:$0xff]
  %v102 = vld [vmem:[%s1 + $0x1f8] sm:$0xff]
  %v103 = vld [vmem:[%s1 + $0x200] sm:$0xff]
  %v104 = vld [vmem:[%s1 + $0x208] sm:$0xff]
  %v105 = vld [vmem:[%s1 + $0x210] sm:$0xff]
  %v106 = vld [vmem:[%s1 + $0x218] sm:$0xff]
  %v107 = vld [vmem:[%s1 + $0x220] sm:$0xff]
  %v108 = vld [vmem:[%s1 + $0x228] sm:$0xff]
  %v109 = vld [vmem:[%s1 + $0x230] sm:$0xff]
  %v110 = vld [vmem:[%s1 + $0x238] sm:$0xff]
  %v111 = vld [vmem:[%s1 + $0x240] sm:$0xff]
  %v112 = vld [vmem:[%s1 + $0x248] sm:$0xff]
  %v113 = vld [vmem:[%s1 + $0x250] sm:$0xff]
  %v114 = vld [vmem:[%s1 + $0x258] sm:$0xff]
  %v115 = vld [vmem:[%s1 + $0x260] sm:$0xff]
  %v116 = vld [vmem:[%s1 + $0x268] sm:$0xff]
  %v117 = vld [vmem:[%s1 + $0x270] sm:$0xff]
  %v118 = vld [vmem:[%s1 + $0x278] sm:$0xff]
  %v119 = vld [vmem:[%s1 + $0x280] sm:$0xff]
  %v120 = vld [vmem:[%s1 + $0x288] sm:$0xff]
  %v121 = vld [vmem:[%s1 + $0x290] sm:$0xff]
  %v122 = vld [vmem:[%s1 + $0x298] sm:$0xff]
  %v123 = vld [vmem:[%s1 + $0x2a0] sm:$0xff]
  %v124 = vld [vmem:[%s1 + $0x2a8] sm:$0xff]
  %v125 = vld [vmem:[%s1 + $0x2b0] sm:$0xff]
  %v126 = vld [vmem:[%s1 + $0x2b8] sm:$0xff]
  %v127 = vld [vmem:[%s1 + $0x2c0] sm:$0xff]
  %v128 = vld [vmem:[%s1 + $0x2c8] sm:$0xff]
  %v129 = vld [vmem:[%s1 + $0x2d0] sm:$0xff]
  %v130 = vld [vmem:[%s1 + $0x2d8] sm:$0xff]
  %v131 = vld [vmem:[%s1 + $0x2e0] sm:$0xff]
  %v132 = vld [vmem:[%s1 + $0x2e8] sm:$0xff]
  %v133 = vld [vmem:[%s1 + $0x2f0] sm:$0xff]
  %v134 = vld [vmem:[%s1 + $0x2f8] sm:$0xff]
  %v135 = vld [vmem:[%s1 + $0x300] sm:$0xff]
  %v136 = vld [vmem:[%s1 + $0x308] sm:$0xff]
  %v137 = vld [vmem:[%s1 + $0x310] sm:$0xff]
  %v138 = vld [vmem:[%s1 + $0x318] sm:$0xff]
  %v139 = vld [vmem:[%s1 + $0x320] sm:$0xff]
  %v140 = vld [vmem:[%s1 + $0x328] sm:$0xff]
  %v141 = vld [vmem:[%s1 + $0x330] sm:$0xff]
  %v142 = vld [vmem:[%s1 + $0x338] sm:$0xff]
  %v143 = vld [vmem:[%s1 + $0x340] sm:$0xff]
  %v144 = vld [vmem:[%s1 + $0x348] sm:$0xff]
  %v145 = vld [vmem:[%s1 + $0x350] sm:$0xff]
  %v146 = vld [vmem:[%s1 + $0x358] sm:$0xff]
  %v147 = vld [vmem:[%s1 + $0x360] sm:$0xff]
  %v148 = vld [vmem:[%s1 + $0x368] sm:$0xff]
  %v149 = vld [vmem:[%s1 + $0x370] sm:$0xff]
  %v150 = vld [vmem:[%s1 + $0x378] sm:$0xff]
  %v151 = vld [vmem:[%s1 + $0x380] sm:$0xff]
  %v152 = vld [vmem:[%s1 + $0x388] sm:$0xff]
  %v153 = vld [vmem:[%s1 + $0x390] sm:$0xff]
  %v154 = vld [vmem:[%s1 + $0x398] sm:$0xff]
  %v155 = vld [vmem:[%s1 + $0x3a0] sm:$0xff]
  %v156 = vld [vmem:[%s1 + $0x3a8] sm:$0xff]
  %v157 = vld [vmem:[%s1 + $0x3b0] sm:$0xff]
  %v158 = vld [vmem:[%s1 + $0x3b8] sm:$0xff]
  %v159 = vld [vmem:[%s1 + $0x3c0] sm:$0xff]
  %v160 = vld [vmem:[%s1 + $0x3c8] sm:$0xff]
  %v161 = vld [vmem:[%s1 + $0x3d0] sm:$0xff]
  %v162 = vld [vmem:[%s1 + $0x3d8] sm:$0xff]
  %v163 = vld [vmem:[%s1 + $0x3e0] sm:$0xff]
  %v164 = vld [vmem:[%s1 + $0x3e8] sm:$0xff]
  %v165 = vld [vmem:[%s1 + $0x3f0] sm:$0xff]
  %v166 = vld [vmem:[%s1 + $0x3f8] sm:$0xff]
  %v167 = vld [vmem:[#allocation2] sm:$0xff]
  %v168 = vld [vmem:[#allocation2 + $0x8] sm:$0xff]
  %v169 = vld [vmem:[#allocation3] sm:$0xff]
  %v170 = vld [vmem:[#allocation3 + $0x8] sm:$0xff]
  %v171 = vld [vmem:[%s0] sm:$0xff]
  %v172 = vld [vmem:[%s0 + $0x8] sm:$0xff]
  %v173 = vld [vmem:[%s0 + $0x10] sm:$0xff]
  %v174 = vld [vmem:[%s0 + $0x18] sm:$0xff]
  %v175 = vunpack.c.l.bf16 %v171
  %v176 = vunpack.c.h.bf16 %v171
  %v177 = vunpack.c.l.bf16 %v172
  %v178 = vunpack.c.h.bf16 %v172
  %v179 = vunpack.c.l.bf16 %v173
  %v180 = vunpack.c.h.bf16 %v173
  %v181 = vunpack.c.l.bf16 %v174
  %v182 = vunpack.c.h.bf16 %v174
  %v183 = vpack.c.bf16 %v167, %v167
  %v184 = vpack.c.bf16 %v168, %v168
  %v313 = vunpack.c.l.b16 %v39
  %v314 = vunpack.c.h.b16 %v39
  %v315 = vunpack.c.l.b16 %v40
  %v316 = vunpack.c.h.b16 %v40
  %v317 = vunpack.c.l.b16 %v41
  %v318 = vunpack.c.h.b16 %v41
  %v319 = vunpack.c.l.b16 %v42
  %v320 = vunpack.c.h.b16 %v42
  %v321 = vunpack.c.l.b16 %v43
  %v322 = vunpack.c.h.b16 %v43
  %v323 = vunpack.c.l.b16 %v44
  %v324 = vunpack.c.h.b16 %v44
  %v325 = vunpack.c.l.b16 %v45
  %v326 = vunpack.c.h.b16 %v45
  %v327 = vunpack.c.l.b16 %v46
  %v328 = vunpack.c.h.b16 %v46
  %v329 = vunpack.c.l.b16 %v47
  %v330 = vunpack.c.h.b16 %v47
  %v331 = vunpack.c.l.b16 %v48
  %v332 = vunpack.c.h.b16 %v48
  %v333 = vunpack.c.l.b16 %v49
  %v334 = vunpack.c.h.b16 %v49
  %v335 = vunpack.c.l.b16 %v50
  %v336 = vunpack.c.h.b16 %v50
  %v337 = vunpack.c.l.b16 %v51
  %v338 = vunpack.c.h.b16 %v51
  %v339 = vunpack.c.l.b16 %v52
  %v340 = vunpack.c.h.b16 %v52
  %v341 = vunpack.c.l.b16 %v53
  %v342 = vunpack.c.h.b16 %v53
  %v343 = vunpack.c.l.b16 %v54
  %v344 = vunpack.c.h.b16 %v54
  %v345 = vunpack.c.l.b16 %v55
  %v346 = vunpack.c.h.b16 %v55
  %v347 = vunpack.c.l.b16 %v56
  %v348 = vunpack.c.h.b16 %v56
  %v349 = vunpack.c.l.b16 %v57
  %v350 = vunpack.c.h.b16 %v57
  %v351 = vunpack.c.l.b16 %v58
  %v352 = vunpack.c.h.b16 %v58
  %v353 = vunpack.c.l.b16 %v59
  %v354 = vunpack.c.h.b16 %v59
  %v355 = vunpack.c.l.b16 %v60
  %v356 = vunpack.c.h.b16 %v60
  %v357 = vunpack.c.l.b16 %v61
  %v358 = vunpack.c.h.b16 %v61
  %v359 = vunpack.c.l.b16 %v62
  %v360 = vunpack.c.h.b16 %v62
  %v361 = vunpack.c.l.b16 %v63
  %v362 = vunpack.c.h.b16 %v63
  %v363 = vunpack.c.l.b16 %v64
  %v364 = vunpack.c.h.b16 %v64
  %v365 = vunpack.c.l.b16 %v65
  %v366 = vunpack.c.h.b16 %v65
  %v367 = vunpack.c.l.b16 %v66
  %v368 = vunpack.c.h.b16 %v66
  %v369 = vunpack.c.l.b16 %v67
  %v370 = vunpack.c.h.b16 %v67
  %v371 = vunpack.c.l.b16 %v68
  %v372 = vunpack.c.h.b16 %v68
  %v373 = vunpack.c.l.b16 %v69
  %v374 = vunpack.c.h.b16 %v69
  %v375 = vunpack.c.l.b16 %v70
  %v376 = vunpack.c.h.b16 %v70
  %v377 = vunpack.c.l.b16 %v71
  %v378 = vunpack.c.h.b16 %v71
  %v379 = vunpack.c.l.b16 %v72
  %v380 = vunpack.c.h.b16 %v72
  %v381 = vunpack.c.l.b16 %v73
  %v382 = vunpack.c.h.b16 %v73
  %v383 = vunpack.c.l.b16 %v74
  %v384 = vunpack.c.h.b16 %v74
  %v385 = vunpack.c.l.b16 %v75
  %v386 = vunpack.c.h.b16 %v75
  %v387 = vunpack.c.l.b16 %v76
  %v388 = vunpack.c.h.b16 %v76
  %v389 = vunpack.c.l.b16 %v77
  %v390 = vunpack.c.h.b16 %v77
  %v391 = vunpack.c.l.b16 %v78
  %v392 = vunpack.c.h.b16 %v78
  %v393 = vunpack.c.l.b16 %v79
  %v394 = vunpack.c.h.b16 %v79
  %v395 = vunpack.c.l.b16 %v80
  %v396 = vunpack.c.h.b16 %v80
  %v397 = vunpack.c.l.b16 %v81
  %v398 = vunpack.c.h.b16 %v81
  %v399 = vunpack.c.l.b16 %v82
  %v400 = vunpack.c.h.b16 %v82
  %v401 = vunpack.c.l.b16 %v83
  %v402 = vunpack.c.h.b16 %v83
  %v403 = vunpack.c.l.b16 %v84
  %v404 = vunpack.c.h.b16 %v84
  %v405 = vunpack.c.l.b16 %v85
  %v406 = vunpack.c.h.b16 %v85
  %v407 = vunpack.c.l.b16 %v86
  %v408 = vunpack.c.h.b16 %v86
  %v409 = vunpack.c.l.b16 %v87
  %v410 = vunpack.c.h.b16 %v87
  %v411 = vunpack.c.l.b16 %v88
  %v412 = vunpack.c.h.b16 %v88
  %v413 = vunpack.c.l.b16 %v89
  %v414 = vunpack.c.h.b16 %v89
  %v415 = vunpack.c.l.b16 %v90
  %v416 = vunpack.c.h.b16 %v90
  %v417 = vunpack.c.l.b16 %v91
  %v418 = vunpack.c.h.b16 %v91
  %v419 = vunpack.c.l.b16 %v92
  %v420 = vunpack.c.h.b16 %v92
  %v421 = vunpack.c.l.b16 %v93
  %v422 = vunpack.c.h.b16 %v93
  %v423 = vunpack.c.l.b16 %v94
  %v424 = vunpack.c.h.b16 %v94
  %v425 = vunpack.c.l.b16 %v95
  %v426 = vunpack.c.h.b16 %v95
  %v427 = vunpack.c.l.b16 %v96
  %v428 = vunpack.c.h.b16 %v96
  %v429 = vunpack.c.l.b16 %v97
  %v430 = vunpack.c.h.b16 %v97
  %v431 = vunpack.c.l.b16 %v98
  %v432 = vunpack.c.h.b16 %v98
  %v433 = vunpack.c.l.b16 %v99
  %v434 = vunpack.c.h.b16 %v99
  %v435 = vunpack.c.l.b16 %v100
  %v436 = vunpack.c.h.b16 %v100
  %v437 = vunpack.c.l.b16 %v101
  %v438 = vunpack.c.h.b16 %v101
  %v439 = vunpack.c.l.b16 %v102
  %v440 = vunpack.c.h.b16 %v102
  %v441 = vunpack.c.l.b16 %v103
  %v442 = vunpack.c.h.b16 %v103
  %v443 = vunpack.c.l.b16 %v104
  %v444 = vunpack.c.h.b16 %v104
  %v445 = vunpack.c.l.b16 %v105
  %v446 = vunpack.c.h.b16 %v105
  %v447 = vunpack.c.l.b16 %v106
  %v448 = vunpack.c.h.b16 %v106
  %v449 = vunpack.c.l.b16 %v107
  %v450 = vunpack.c.h.b16 %v107
  %v451 = vunpack.c.l.b16 %v108
  %v452 = vunpack.c.h.b16 %v108
  %v453 = vunpack.c.l.b16 %v109
  %v454 = vunpack.c.h.b16 %v109
  %v455 = vunpack.c.l.b16 %v110
  %v456 = vunpack.c.h.b16 %v110
  %v457 = vunpack.c.l.b16 %v111
  %v458 = vunpack.c.h.b16 %v111
  %v459 = vunpack.c.l.b16 %v112
  %v460 = vunpack.c.h.b16 %v112
  %v461 = vunpack.c.l.b16 %v113
  %v462 = vunpack.c.h.b16 %v113
  %v463 = vunpack.c.l.b16 %v114
  %v464 = vunpack.c.h.b16 %v114
  %v465 = vunpack.c.l.b16 %v115
  %v466 = vunpack.c.h.b16 %v115
  %v467 = vunpack.c.l.b16 %v116
  %v468 = vunpack.c.h.b16 %v116
  %v469 = vunpack.c.l.b16 %v117
  %v470 = vunpack.c.h.b16 %v117
  %v471 = vunpack.c.l.b16 %v118
  %v472 = vunpack.c.h.b16 %v118
  %v473 = vunpack.c.l.b16 %v119
  %v474 = vunpack.c.h.b16 %v119
  %v475 = vunpack.c.l.b16 %v120
  %v476 = vunpack.c.h.b16 %v120
  %v477 = vunpack.c.l.b16 %v121
  %v478 = vunpack.c.h.b16 %v121
  %v479 = vunpack.c.l.b16 %v122
  %v480 = vunpack.c.h.b16 %v122
  %v481 = vunpack.c.l.b16 %v123
  %v482 = vunpack.c.h.b16 %v123
  %v483 = vunpack.c.l.b16 %v124
  %v484 = vunpack.c.h.b16 %v124
  %v485 = vunpack.c.l.b16 %v125
  %v486 = vunpack.c.h.b16 %v125
  %v487 = vunpack.c.l.b16 %v126
  %v488 = vunpack.c.h.b16 %v126
  %v489 = vunpack.c.l.b16 %v127
  %v490 = vunpack.c.h.b16 %v127
  %v491 = vunpack.c.l.b16 %v128
  %v492 = vunpack.c.h.b16 %v128
  %v493 = vunpack.c.l.b16 %v129
  %v494 = vunpack.c.h.b16 %v129
  %v495 = vunpack.c.l.b16 %v130
  %v496 = vunpack.c.h.b16 %v130
  %v497 = vunpack.c.l.b16 %v131
  %v498 = vunpack.c.h.b16 %v131
  %v499 = vunpack.c.l.b16 %v132
  %v500 = vunpack.c.h.b16 %v132
  %v501 = vunpack.c.l.b16 %v133
  %v502 = vunpack.c.h.b16 %v133
  %v503 = vunpack.c.l.b16 %v134
  %v504 = vunpack.c.h.b16 %v134
  %v505 = vunpack.c.l.b16 %v135
  %v506 = vunpack.c.h.b16 %v135
  %v507 = vunpack.c.l.b16 %v136
  %v508 = vunpack.c.h.b16 %v136
  %v509 = vunpack.c.l.b16 %v137
  %v510 = vunpack.c.h.b16 %v137
  %v511 = vunpack.c.l.b16 %v138
  %v512 = vunpack.c.h.b16 %v138
  %v513 = vunpack.c.l.b16 %v139
  %v514 = vunpack.c.h.b16 %v139
  %v515 = vunpack.c.l.b16 %v140
  %v516 = vunpack.c.h.b16 %v140
  %v517 = vunpack.c.l.b16 %v141
  %v518 = vunpack.c.h.b16 %v141
  %v519 = vunpack.c.l.b16 %v142
  %v520 = vunpack.c.h.b16 %v142
  %v521 = vunpack.c.l.b16 %v143
  %v522 = vunpack.c.h.b16 %v143
  %v523 = vunpack.c.l.b16 %v144
  %v524 = vunpack.c.h.b16 %v144
  %v525 = vunpack.c.l.b16 %v145
  %v526 = vunpack.c.h.b16 %v145
  %v527 = vunpack.c.l.b16 %v146
  %v528 = vunpack.c.h.b16 %v146
  %v529 = vunpack.c.l.b16 %v147
  %v530 = vunpack.c.h.b16 %v147
  %v531 = vunpack.c.l.b16 %v148
  %v532 = vunpack.c.h.b16 %v148
  %v533 = vunpack.c.l.b16 %v149
  %v534 = vunpack.c.h.b16 %v149
  %v535 = vunpack.c.l.b16 %v150
  %v536 = vunpack.c.h.b16 %v150
  %v537 = vunpack.c.l.b16 %v151
  %v538 = vunpack.c.h.b16 %v151
  %v539 = vunpack.c.l.b16 %v152
  %v540 = vunpack.c.h.b16 %v152
  %v541 = vunpack.c.l.b16 %v153
  %v542 = vunpack.c.h.b16 %v153
  %v543 = vunpack.c.l.b16 %v154
  %v544 = vunpack.c.h.b16 %v154
  %v545 = vunpack.c.l.b16 %v155
  %v546 = vunpack.c.h.b16 %v155
  %v547 = vunpack.c.l.b16 %v156
  %v548 = vunpack.c.h.b16 %v156
  %v549 = vunpack.c.l.b16 %v157
  %v550 = vunpack.c.h.b16 %v157
  %v551 = vunpack.c.l.b16 %v158
  %v552 = vunpack.c.h.b16 %v158
  %v553 = vunpack.c.l.b16 %v159
  %v554 = vunpack.c.h.b16 %v159
  %v555 = vunpack.c.l.b16 %v160
  %v556 = vunpack.c.h.b16 %v160
  %v557 = vunpack.c.l.b16 %v161
  %v558 = vunpack.c.h.b16 %v161
  %v559 = vunpack.c.l.b16 %v162
  %v560 = vunpack.c.h.b16 %v162
  %v561 = vunpack.c.l.b16 %v163
  %v562 = vunpack.c.h.b16 %v163
  %v563 = vunpack.c.l.b16 %v164
  %v564 = vunpack.c.h.b16 %v164
  %v565 = vunpack.c.l.b16 %v165
  %v566 = vunpack.c.h.b16 %v165
  %v567 = vunpack.c.l.b16 %v166
  %v568 = vunpack.c.h.b16 %v166
  %v569 = vpack.c.b16 %v321, %v313
  %v570 = vpack.c.b16 %v322, %v314
  %v571 = vpack.c.b16 %v323, %v315
  %v572 = vpack.c.b16 %v324, %v316
  %v573 = vpack.c.b16 %v325, %v317
  %v574 = vpack.c.b16 %v326, %v318
  %v575 = vpack.c.b16 %v327, %v319
  %v576 = vpack.c.b16 %v328, %v320
  %v577 = vpack.c.b16 %v337, %v329
  %v578 = vpack.c.b16 %v338, %v330
  %v579 = vpack.c.b16 %v339, %v331
  %v580 = vpack.c.b16 %v340, %v332
  %v581 = vpack.c.b16 %v341, %v333
  %v582 = vpack.c.b16 %v342, %v334
  %v583 = vpack.c.b16 %v343, %v335
  %v584 = vpack.c.b16 %v344, %v336
  %v585 = vpack.c.b16 %v353, %v345
  %v586 = vpack.c.b16 %v354, %v346
  %v587 = vpack.c.b16 %v355, %v347
  %v588 = vpack.c.b16 %v356, %v348
  %v589 = vpack.c.b16 %v357, %v349
  %v590 = vpack.c.b16 %v358, %v350
  %v591 = vpack.c.b16 %v359, %v351
  %v592 = vpack.c.b16 %v360, %v352
  %v593 = vpack.c.b16 %v369, %v361
  %v594 = vpack.c.b16 %v370, %v362
  %v595 = vpack.c.b16 %v371, %v363
  %v596 = vpack.c.b16 %v372, %v364
  %v597 = vpack.c.b16 %v373, %v365
  %v598 = vpack.c.b16 %v374, %v366
  %v599 = vpack.c.b16 %v375, %v367
  %v600 = vpack.c.b16 %v376, %v368
  %v601 = vpack.c.b16 %v385, %v377
  %v602 = vpack.c.b16 %v386, %v378
  %v603 = vpack.c.b16 %v387, %v379
  %v604 = vpack.c.b16 %v388, %v380
  %v605 = vpack.c.b16 %v389, %v381
  %v606 = vpack.c.b16 %v390, %v382
  %v607 = vpack.c.b16 %v391, %v383
  %v608 = vpack.c.b16 %v392, %v384
  %v609 = vpack.c.b16 %v401, %v393
  %v610 = vpack.c.b16 %v402, %v394
  %v611 = vpack.c.b16 %v403, %v395
  %v612 = vpack.c.b16 %v404, %v396
  %v613 = vpack.c.b16 %v405, %v397
  %v614 = vpack.c.b16 %v406, %v398
  %v615 = vpack.c.b16 %v407, %v399
  %v616 = vpack.c.b16 %v408, %v400
  %v617 = vpack.c.b16 %v417, %v409
  %v618 = vpack.c.b16 %v418, %v410
  %v619 = vpack.c.b16 %v419, %v411
  %v620 = vpack.c.b16 %v420, %v412
  %v621 = vpack.c.b16 %v421, %v413
  %v622 = vpack.c.b16 %v422, %v414
  %v623 = vpack.c.b16 %v423, %v415
  %v624 = vpack.c.b16 %v424, %v416
  %v625 = vpack.c.b16 %v433, %v425
  %v626 = vpack.c.b16 %v434, %v426
  %v627 = vpack.c.b16 %v435, %v427
  %v628 = vpack.c.b16 %v436, %v428
  %v629 = vpack.c.b16 %v437, %v429
  %v630 = vpack.c.b16 %v438, %v430
  %v631 = vpack.c.b16 %v439, %v431
  %v632 = vpack.c.b16 %v440, %v432
  %v633 = vpack.c.b16 %v449, %v441
  %v634 = vpack.c.b16 %v450, %v442
  %v635 = vpack.c.b16 %v451, %v443
  %v636 = vpack.c.b16 %v452, %v444
  %v637 = vpack.c.b16 %v453, %v445
  %v638 = vpack.c.b16 %v454, %v446
  %v639 = vpack.c.b16 %v455, %v447
  %v640 = vpack.c.b16 %v456, %v448
  %v641 = vpack.c.b16 %v465, %v457
  %v642 = vpack.c.b16 %v466, %v458
  %v643 = vpack.c.b16 %v467, %v459
  %v644 = vpack.c.b16 %v468, %v460
  %v645 = vpack.c.b16 %v469, %v461
  %v646 = vpack.c.b16 %v470, %v462
  %v647 = vpack.c.b16 %v471, %v463
  %v648 = vpack.c.b16 %v472, %v464
  %v649 = vpack.c.b16 %v481, %v473
  %v650 = vpack.c.b16 %v482, %v474
  %v651 = vpack.c.b16 %v483, %v475
  %v652 = vpack.c.b16 %v484, %v476
  %v653 = vpack.c.b16 %v485, %v477
  %v654 = vpack.c.b16 %v486, %v478
  %v655 = vpack.c.b16 %v487, %v479
  %v656 = vpack.c.b16 %v488, %v480
  %v657 = vpack.c.b16 %v497, %v489
  %v658 = vpack.c.b16 %v498, %v490
  %v659 = vpack.c.b16 %v499, %v491
  %v660 = vpack.c.b16 %v500, %v492
  %v661 = vpack.c.b16 %v501, %v493
  %v662 = vpack.c.b16 %v502, %v494
  %v663 = vpack.c.b16 %v503, %v495
  %v664 = vpack.c.b16 %v504, %v496
  %v665 = vpack.c.b16 %v513, %v505
  %v666 = vpack.c.b16 %v514, %v506
  %v667 = vpack.c.b16 %v515, %v507
  %v668 = vpack.c.b16 %v516, %v508
  %v669 = vpack.c.b16 %v517, %v509
  %v670 = vpack.c.b16 %v518, %v510
  %v671 = vpack.c.b16 %v519, %v511
  %v672 = vpack.c.b16 %v520, %v512
  %v673 = vpack.c.b16 %v529, %v521
  %v674 = vpack.c.b16 %v530, %v522
  %v675 = vpack.c.b16 %v531, %v523
  %v676 = vpack.c.b16 %v532, %v524
  %v677 = vpack.c.b16 %v533, %v525
  %v678 = vpack.c.b16 %v534, %v526
  %v679 = vpack.c.b16 %v535, %v527
  %v680 = vpack.c.b16 %v536, %v528
  %v681 = vpack.c.b16 %v545, %v537
  %v682 = vpack.c.b16 %v546, %v538
  %v683 = vpack.c.b16 %v547, %v539
  %v684 = vpack.c.b16 %v548, %v540
  %v685 = vpack.c.b16 %v549, %v541
  %v686 = vpack.c.b16 %v550, %v542
  %v687 = vpack.c.b16 %v551, %v543
  %v688 = vpack.c.b16 %v552, %v544
  %v689 = vpack.c.b16 %v561, %v553
  %v690 = vpack.c.b16 %v562, %v554
  %v691 = vpack.c.b16 %v563, %v555
  %v692 = vpack.c.b16 %v564, %v556
  %v693 = vpack.c.b16 %v565, %v557
  %v694 = vpack.c.b16 %v566, %v558
  %v695 = vpack.c.b16 %v567, %v559
  %v696 = vpack.c.b16 %v568, %v560
  %825 = vmatprep.subr.bf16.mxu0 %v626
  %826 = vmatpush1.bf16.msra.mxu0 %v625
  %827 = vmatprep.subr.bf16.mxu0 %v618
  %828 = vmatpush1.bf16.msra.mxu0 %v617
  %829 = vmatprep.subr.bf16.mxu0 %v610
  %830 = vmatpush1.bf16.msra.mxu0 %v609
  %831 = vmatprep.subr.bf16.mxu0 %v602
  %832 = vmatpush1.bf16.msra.mxu0 %v601
  %833 = vmatprep.subr.bf16.mxu0 %v594
  %834 = vmatpush1.bf16.msra.mxu0 %v593
  %835 = vmatprep.subr.bf16.mxu0 %v586
  %836 = vmatpush1.bf16.msra.mxu0 %v585
  %837 = vmatprep.subr.bf16.mxu0 %v578
  %838 = vmatpush1.bf16.msra.mxu0 %v577
  %839 = vmatprep.subr.bf16.mxu0 %v570
  %840 = vmatpush1.bf16.msra.mxu0 %v569
  %841 = vmatprep.subr.bf16.mxu0 %v690
  %842 = vmatpush2.bf16.msra.mxu0 %v689
  %843 = vmatprep.subr.bf16.mxu0 %v682
  %844 = vmatpush2.bf16.msra.mxu0 %v681
  %845 = vmatprep.subr.bf16.mxu0 %v674
  %846 = vmatpush2.bf16.msra.mxu0 %v673
  %847 = vmatprep.subr.bf16.mxu0 %v666
  %848 = vmatpush2.bf16.msra.mxu0 %v665
  %849 = vmatprep.subr.bf16.mxu0 %v658
  %850 = vmatpush2.bf16.msra.mxu0 %v657
  %851 = vmatprep.subr.bf16.mxu0 %v650
  %852 = vmatpush2.bf16.msra.mxu0 %v649
  %853 = vmatprep.subr.bf16.mxu0 %v642
  %854 = vmatpush2.bf16.msra.mxu0 %v641
  %855 = vmatprep.subr.bf16.mxu0 %v634
  %856 = vmatpush2.bf16.msra.mxu0 %v633
  %857 = vmatprep.mubr.bf16.mxu0 %v184
  %858 = vmatmul.mubr.bf16.gmra.mxu0 %v183
  %v859 = vpop.f32.mrf.mxu0
  %v860 = vadd.f32 0.0, %v859
  %v861 = vpop.f32.mrf.mxu0
  %v862 = vadd.f32 0.0, %v861
  %v863 = vpop.f32.mrf.mxu0
  %v864 = vpop.f32.mrf.mxu0
  %865 = vdwg.mxu0
  %866 = vmatprep.subr.bf16.mxu0 %v628
  %867 = vmatpush1.bf16.msra.mxu0 %v627
  %868 = vmatprep.subr.bf16.mxu0 %v620
  %869 = vmatpush1.bf16.msra.mxu0 %v619
  %870 = vmatprep.subr.bf16.mxu0 %v612
  %871 = vmatpush1.bf16.msra.mxu0 %v611
  %872 = vmatprep.subr.bf16.mxu0 %v604
  %873 = vmatpush1.bf16.msra.mxu0 %v603
  %874 = vmatprep.subr.bf16.mxu0 %v596
  %875 = vmatpush1.bf16.msra.mxu0 %v595
  %876 = vmatprep.subr.bf16.mxu0 %v588
  %877 = vmatpush1.bf16.msra.mxu0 %v587
  %878 = vmatprep.subr.bf16.mxu0 %v580
  %879 = vmatpush1.bf16.msra.mxu0 %v579
  %880 = vmatprep.subr.bf16.mxu0 %v572
  %881 = vmatpush1.bf16.msra.mxu0 %v571
  %882 = vmatprep.subr.bf16.mxu0 %v692
  %883 = vmatpush2.bf16.msra.mxu0 %v691
  %884 = vmatprep.subr.bf16.mxu0 %v684
  %885 = vmatpush2.bf16.msra.mxu0 %v683
  %886 = vmatprep.subr.bf16.mxu0 %v676
  %887 = vmatpush2.bf16.msra.mxu0 %v675
  %888 = vmatprep.subr.bf16.mxu0 %v668
  %889 = vmatpush2.bf16.msra.mxu0 %v667
  %890 = vmatprep.subr.bf16.mxu0 %v660
  %891 = vmatpush2.bf16.msra.mxu0 %v659
  %892 = vmatprep.subr.bf16.mxu0 %v652
  %893 = vmatpush2.bf16.msra.mxu0 %v651
  %894 = vmatprep.subr.bf16.mxu0 %v644
  %895 = vmatpush2.bf16.msra.mxu0 %v643
  %896 = vmatprep.subr.bf16.mxu0 %v636
  %897 = vmatpush2.bf16.msra.mxu0 %v635
  %898 = vmatprep.mubr.bf16.mxu0 %v184
  %899 = vmatmul.mubr.bf16.gmra.mxu0 %v183
  %v900 = vpop.f32.mrf.mxu0
  %v901 = vadd.f32 0.0, %v900
  %v902 = vpop.f32.mrf.mxu0
  %v903 = vadd.f32 0.0, %v902
  %v904 = vpop.f32.mrf.mxu0
  %v905 = vpop.f32.mrf.mxu0
  %906 = vdwg.mxu0
  %907 = vmatprep.subr.bf16.mxu0 %v630
  %908 = vmatpush1.bf16.msra.mxu0 %v629
  %909 = vmatprep.subr.bf16.mxu0 %v622
  %910 = vmatpush1.bf16.msra.mxu0 %v621
  %911 = vmatprep.subr.bf16.mxu0 %v614
  %912 = vmatpush1.bf16.msra.mxu0 %v613
  %913 = vmatprep.subr.bf16.mxu0 %v606
  %914 = vmatpush1.bf16.msra.mxu0 %v605
  %915 = vmatprep.subr.bf16.mxu0 %v598
  %916 = vmatpush1.bf16.msra.mxu0 %v597
  %917 = vmatprep.subr.bf16.mxu0 %v590
  %918 = vmatpush1.bf16.msra.mxu0 %v589
  %919 = vmatprep.subr.bf16.mxu0 %v582
  %920 = vmatpush1.bf16.msra.mxu0 %v581
  %921 = vmatprep.subr.bf16.mxu0 %v574
  %922 = vmatpush1.bf16.msra.mxu0 %v573
  %923 = vmatprep.subr.bf16.mxu0 %v694
  %924 = vmatpush2.bf16.msra.mxu0 %v693
  %925 = vmatprep.subr.bf16.mxu0 %v686
  %926 = vmatpush2.bf16.msra.mxu0 %v685
  %927 = vmatprep.subr.bf16.mxu0 %v678
  %928 = vmatpush2.bf16.msra.mxu0 %v677
  %929 = vmatprep.subr.bf16.mxu0 %v670
  %930 = vmatpush2.bf16.msra.mxu0 %v669
  %931 = vmatprep.subr.bf16.mxu0 %v662
  %932 = vmatpush2.bf16.msra.mxu0 %v661
  %933 = vmatprep.subr.bf16.mxu0 %v654
  %934 = vmatpush2.bf16.msra.mxu0 %v653
  %935 = vmatprep.subr.bf16.mxu0 %v646
  %936 = vmatpush2.bf16.msra.mxu0 %v645
  %937 = vmatprep.subr.bf16.mxu0 %v638
  %938 = vmatpush2.bf16.msra.mxu0 %v637
  %939 = vmatprep.mubr.bf16.mxu0 %v184
  %940 = vmatmul.mubr.bf16.gmra.mxu0 %v183
  %v941 = vpop.f32.mrf.mxu0
  %v942 = vadd.f32 0.0, %v941
  %v943 = vpop.f32.mrf.mxu0
  %v944 = vadd.f32 0.0, %v943
  %v945 = vpop.f32.mrf.mxu0
  %v946 = vpop.f32.mrf.mxu0
  %947 = vdwg.mxu0
  %948 = vmatprep.subr.bf16.mxu0 %v632
  %949 = vmatpush1.bf16.msra.mxu0 %v631
  %950 = vmatprep.subr.bf16.mxu0 %v624
  %951 = vmatpush1.bf16.msra.mxu0 %v623
  %952 = vmatprep.subr.bf16.mxu0 %v616
  %953 = vmatpush1.bf16.msra.mxu0 %v615
  %954 = vmatprep.subr.bf16.mxu0 %v608
  %955 = vmatpush1.bf16.msra.mxu0 %v607
  %956 = vmatprep.subr.bf16.mxu0 %v600
  %957 = vmatpush1.bf16.msra.mxu0 %v599
  %958 = vmatprep.subr.bf16.mxu0 %v592
  %959 = vmatpush1.bf16.msra.mxu0 %v591
  %960 = vmatprep.subr.bf16.mxu0 %v584
  %961 = vmatpush1.bf16.msra.mxu0 %v583
  %962 = vmatprep.subr.bf16.mxu0 %v576
  %963 = vmatpush1.bf16.msra.mxu0 %v575
  %964 = vmatprep.subr.bf16.mxu0 %v696
  %965 = vmatpush2.bf16.msra.mxu0 %v695
  %966 = vmatprep.subr.bf16.mxu0 %v688
  %967 = vmatpush2.bf16.msra.mxu0 %v687
  %968 = vmatprep.subr.bf16.mxu0 %v680
  %969 = vmatpush2.bf16.msra.mxu0 %v679
  %970 = vmatprep.subr.bf16.mxu0 %v672
  %971 = vmatpush2.bf16.msra.mxu0 %v671
  %972 = vmatprep.subr.bf16.mxu0 %v664
  %973 = vmatpush2.bf16.msra.mxu0 %v663
  %974 = vmatprep.subr.bf16.mxu0 %v656
  %975 = vmatpush2.bf16.msra.mxu0 %v655
  %976 = vmatprep.subr.bf16.mxu0 %v648
  %977 = vmatpush2.bf16.msra.mxu0 %v647
  %978 = vmatprep.subr.bf16.mxu0 %v640
  %979 = vmatpush2.bf16.msra.mxu0 %v639
  %980 = vmatprep.mubr.bf16.mxu0 %v184
  %981 = vmatmul.mubr.bf16.gmra.mxu0 %v183
  %v982 = vpop.f32.mrf.mxu0
  %v983 = vadd.f32 0.0, %v982
  %v984 = vpop.f32.mrf.mxu0
  %v985 = vadd.f32 0.0, %v984
  %v986 = vpop.f32.mrf.mxu0
  %v987 = vpop.f32.mrf.mxu0
  %988 = vdwg.mxu0
  %v989 = vadd.f32 %v175, %v860
  %v990 = vadd.f32 %v176, %v862
  %v991 = vadd.f32 %v177, %v901
  %v992 = vadd.f32 %v178, %v903
  %v993 = vadd.f32 %v179, %v942
  %v994 = vadd.f32 %v180, %v944
  %v995 = vadd.f32 %v181, %v983
  %v996 = vadd.f32 %v182, %v985
  %v997 = vxor.u32 %v989, 2147483648
  %v998 = vxor.u32 %v990, 2147483648
  %v999 = vmul.f32 %v997, 1.442695
  %v1000 = vpow.pop %v999
  %v1001 = vmul.f32 %v998, 1.442695
  %v1002 = vpow.pop %v1001
  %v1003 = vadd.f32 %v1000, 1.0
  %v1004 = vadd.f32 %v1002, 1.0
  %v1005 = vrcp.pop %v1003
  %v1006 = vmul.f32 1.0, %v1005
  %v1007 = vrcp.pop %v1004
  %v1008 = vmul.f32 1.0, %v1007
  %v1009 = vxor.u32 %v991, 2147483648
  %v1010 = vxor.u32 %v992, 2147483648
  %v1011 = vmul.f32 %v1009, 1.442695
  %v1012 = vpow.pop %v1011
  %v1013 = vmul.f32 %v1010, 1.442695
  %v1014 = vpow.pop %v1013
  %v1015 = vadd.f32 %v1012, 1.0
  %v1016 = vadd.f32 %v1014, 1.0
  %v1017 = vrcp.pop %v1015
  %v1018 = vmul.f32 1.0, %v1017
  %v1019 = vrcp.pop %v1016
  %v1020 = vmul.f32 1.0, %v1019
  %v1021 = vtanh.pop %v993
  %v1022 = vtanh.pop %v994
  %v1023 = vxor.u32 %v995, 2147483648
  %v1024 = vxor.u32 %v996, 2147483648
  %v1025 = vmul.f32 %v1023, 1.442695
  %v1026 = vpow.pop %v1025
  %v1027 = vmul.f32 %v1024, 1.442695
  %v1028 = vpow.pop %v1027
  %v1029 = vadd.f32 %v1026, 1.0
  %v1030 = vadd.f32 %v1028, 1.0
  %v1031 = vrcp.pop %v1029
  %v1032 = vmul.f32 1.0, %v1031
  %v1033 = vrcp.pop %v1030
  %v1034 = vmul.f32 1.0, %v1033
  %v1035 = vmul.f32 %v1018, %v169
  %v1036 = vmul.f32 %v1020, %v170
  %v1037 = vmul.f32 %v1006, %v1021
  %v1038 = vmul.f32 %v1008, %v1022
  %v1039 = vadd.f32 %v1035, %v1037
  %v1040 = vadd.f32 %v1036, %v1038
  %v1041 = vtanh.pop %v1039
  %v1042 = vtanh.pop %v1040
  %v1043 = vmul.f32 %v1032, %v1041
  %v1044 = vmul.f32 %v1034, %v1042
  %s1045 = scalar_lea.vmem %s0, 32
  %v1046 = vld [vmem:[%s1045] sm:$0xff]
  %v1047 = vld [vmem:[%s1045 + $0x8] sm:$0xff]
  %v1048 = vld [vmem:[%s1045 + $0x10] sm:$0xff]
  %v1049 = vld [vmem:[%s1045 + $0x18] sm:$0xff]
  %v1050 = vunpack.c.l.bf16 %v1046
  %v1051 = vunpack.c.h.bf16 %v1046
  %v1052 = vunpack.c.l.bf16 %v1047
  %v1053 = vunpack.c.h.bf16 %v1047
  %v1054 = vunpack.c.l.bf16 %v1048
  %v1055 = vunpack.c.h.bf16 %v1048
  %v1056 = vunpack.c.l.bf16 %v1049
  %v1057 = vunpack.c.h.bf16 %v1049
  %v1058 = vpack.c.bf16 %v1043, %v1043
  %v1059 = vpack.c.bf16 %v1044, %v1044
  %1060 = vmatprep.subr.bf16.mxu0 %v626
  %1061 = vmatpush1.bf16.msra.mxu0 %v625
  %1062 = vmatprep.subr.bf16.mxu0 %v618
  %1063 = vmatpush1.bf16.msra.mxu0 %v617
  %1064 = vmatprep.subr.bf16.mxu0 %v610
  %1065 = vmatpush1.bf16.msra.mxu0 %v609
  %1066 = vmatprep.subr.bf16.mxu0 %v602
  %1067 = vmatpush1.bf16.msra.mxu0 %v601
  %1068 = vmatprep.subr.bf16.mxu0 %v594
  %1069 = vmatpush1.bf16.msra.mxu0 %v593
  %1070 = vmatprep.subr.bf16.mxu0 %v586
  %1071 = vmatpush1.bf16.msra.mxu0 %v585
  %1072 = vmatprep.subr.bf16.mxu0 %v578
  %1073 = vmatpush1.bf16.msra.mxu0 %v577
  %1074 = vmatprep.subr.bf16.mxu0 %v570
  %1075 = vmatpush1.bf16.msra.mxu0 %v569
  %1076 = vmatprep.subr.bf16.mxu0 %v690
  %1077 = vmatpush2.bf16.msra.mxu0 %v689
  %1078 = vmatprep.subr.bf16.mxu0 %v682
  %1079 = vmatpush2.bf16.msra.mxu0 %v681
  %1080 = vmatprep.subr.bf16.mxu0 %v674
  %1081 = vmatpush2.bf16.msra.mxu0 %v673
  %1082 = vmatprep.subr.bf16.mxu0 %v666
  %1083 = vmatpush2.bf16.msra.mxu0 %v665
  %1084 = vmatprep.subr.bf16.mxu0 %v658
  %1085 = vmatpush2.bf16.msra.mxu0 %v657
  %1086 = vmatprep.subr.bf16.mxu0 %v650
  %1087 = vmatpush2.bf16.msra.mxu0 %v649
  %1088 = vmatprep.subr.bf16.mxu0 %v642
  %1089 = vmatpush2.bf16.msra.mxu0 %v641
  %1090 = vmatprep.subr.bf16.mxu0 %v634
  %1091 = vmatpush2.bf16.msra.mxu0 %v633
  %1092 = vmatprep.mubr.bf16.mxu0 %v1059
  %1093 = vmatmul.mubr.bf16.gmra.mxu0 %v1058
  %v1094 = vpop.f32.mrf.mxu0
  %v1095 = vadd.f32 0.0, %v1094
  %v1096 = vpop.f32.mrf.mxu0
  %v1097 = vadd.f32 0.0, %v1096
  %v1098 = vpop.f32.mrf.mxu0
  %v1099 = vpop.f32.mrf.mxu0
  %1100 = vdwg.mxu0
  %1101 = vmatprep.subr.bf16.mxu0 %v628
  %1102 = vmatpush1.bf16.msra.mxu0 %v627
  %1103 = vmatprep.subr.bf16.mxu0 %v620
  %1104 = vmatpush1.bf16.msra.mxu0 %v619
  %1105 = vmatprep.subr.bf16.mxu0 %v612
  %1106 = vmatpush1.bf16.msra.mxu0 %v611
  %1107 = vmatprep.subr.bf16.mxu0 %v604
  %1108 = vmatpush1.bf16.msra.mxu0 %v603
  %1109 = vmatprep.subr.bf16.mxu0 %v596
  %1110 = vmatpush1.bf16.msra.mxu0 %v595
  %1111 = vmatprep.subr.bf16.mxu0 %v588
  %1112 = vmatpush1.bf16.msra.mxu0 %v587
  %1113 = vmatprep.subr.bf16.mxu0 %v580
  %1114 = vmatpush1.bf16.msra.mxu0 %v579
  %1115 = vmatprep.subr.bf16.mxu0 %v572
  %1116 = vmatpush1.bf16.msra.mxu0 %v571
  %1117 = vmatprep.subr.bf16.mxu0 %v692
  %1118 = vmatpush2.bf16.msra.mxu0 %v691
  %1119 = vmatprep.subr.bf16.mxu0 %v684
  %1120 = vmatpush2.bf16.msra.mxu0 %v683
  %1121 = vmatprep.subr.bf16.mxu0 %v676
  %1122 = vmatpush2.bf16.msra.mxu0 %v675
  %1123 = vmatprep.subr.bf16.mxu0 %v668
  %1124 = vmatpush2.bf16.msra.mxu0 %v667
  %1125 = vmatprep.subr.bf16.mxu0 %v660
  %1126 = vmatpush2.bf16.msra.mxu0 %v659
  %1127 = vmatprep.subr.bf16.mxu0 %v652
  %1128 = vmatpush2.bf16.msra.mxu0 %v651
  %1129 = vmatprep.subr.bf16.mxu0 %v644
  %1130 = vmatpush2.bf16.msra.mxu0 %v643
  %1131 = vmatprep.subr.bf16.mxu0 %v636
  %1132 = vmatpush2.bf16.msra.mxu0 %v635
  %1133 = vmatprep.mubr.bf16.mxu0 %v1059
  %1134 = vmatmul.mubr.bf16.gmra.mxu0 %v1058
  %v1135 = vpop.f32.mrf.mxu0
  %v1136 = vadd.f32 0.0, %v1135
  %v1137 = vpop.f32.mrf.mxu0
  %v1138 = vadd.f32 0.0, %v1137
  %v1139 = vpop.f32.mrf.mxu0
  %v1140 = vpop.f32.mrf.mxu0
  %1141 = vdwg.mxu0
  %1142 = vmatprep.subr.bf16.mxu0 %v630
  %1143 = vmatpush1.bf16.msra.mxu0 %v629
  %1144 = vmatprep.subr.bf16.mxu0 %v622
  %1145 = vmatpush1.bf16.msra.mxu0 %v621
  %1146 = vmatprep.subr.bf16.mxu0 %v614
  %1147 = vmatpush1.bf16.msra.mxu0 %v613
  %1148 = vmatprep.subr.bf16.mxu0 %v606
  %1149 = vmatpush1.bf16.msra.mxu0 %v605
  %1150 = vmatprep.subr.bf16.mxu0 %v598
  %1151 = vmatpush1.bf16.msra.mxu0 %v597
  %1152 = vmatprep.subr.bf16.mxu0 %v590
  %1153 = vmatpush1.bf16.msra.mxu0 %v589
  %1154 = vmatprep.subr.bf16.mxu0 %v582
  %1155 = vmatpush1.bf16.msra.mxu0 %v581
  %1156 = vmatprep.subr.bf16.mxu0 %v574
  %1157 = vmatpush1.bf16.msra.mxu0 %v573
  %1158 = vmatprep.subr.bf16.mxu0 %v694
  %1159 = vmatpush2.bf16.msra.mxu0 %v693
  %1160 = vmatprep.subr.bf16.mxu0 %v686
  %1161 = vmatpush2.bf16.msra.mxu0 %v685
  %1162 = vmatprep.subr.bf16.mxu0 %v678
  %1163 = vmatpush2.bf16.msra.mxu0 %v677
  %1164 = vmatprep.subr.bf16.mxu0 %v670
  %1165 = vmatpush2.bf16.msra.mxu0 %v669
  %1166 = vmatprep.subr.bf16.mxu0 %v662
  %1167 = vmatpush2.bf16.msra.mxu0 %v661
  %1168 = vmatprep.subr.bf16.mxu0 %v654
  %1169 = vmatpush2.bf16.msra.mxu0 %v653
  %1170 = vmatprep.subr.bf16.mxu0 %v646
  %1171 = vmatpush2.bf16.msra.mxu0 %v645
  %1172 = vmatprep.subr.bf16.mxu0 %v638
  %1173 = vmatpush2.bf16.msra.mxu0 %v637
  %1174 = vmatprep.mubr.bf16.mxu0 %v1059
  %1175 = vmatmul.mubr.bf16.gmra.mxu0 %v1058
  %v1176 = vpop.f32.mrf.mxu0
  %v1177 = vadd.f32 0.0, %v1176
  %v1178 = vpop.f32.mrf.mxu0
  %v1179 = vadd.f32 0.0, %v1178
  %v1180 = vpop.f32.mrf.mxu0
  %v1181 = vpop.f32.mrf.mxu0
  %1182 = vdwg.mxu0
  %1183 = vmatprep.subr.bf16.mxu0 %v632
  %1184 = vmatpush1.bf16.msra.mxu0 %v631
  %1185 = vmatprep.subr.bf16.mxu0 %v624
  %1186 = vmatpush1.bf16.msra.mxu0 %v623
  %1187 = vmatprep.subr.bf16.mxu0 %v616
  %1188 = vmatpush1.bf16.msra.mxu0 %v615
  %1189 = vmatprep.subr.bf16.mxu0 %v608
  %1190 = vmatpush1.bf16.msra.mxu0 %v607
  %1191 = vmatprep.subr.bf16.mxu0 %v600
  %1192 = vmatpush1.bf16.msra.mxu0 %v599
  %1193 = vmatprep.subr.bf16.mxu0 %v592
  %1194 = vmatpush1.bf16.msra.mxu0 %v591
  %1195 = vmatprep.subr.bf16.mxu0 %v584
  %1196 = vmatpush1.bf16.msra.mxu0 %v583
  %1197 = vmatprep.subr.bf16.mxu0 %v576
  %1198 = vmatpush1.bf16.msra.mxu0 %v575
  %1199 = vmatprep.subr.bf16.mxu0 %v696
  %1200 = vmatpush2.bf16.msra.mxu0 %v695
  %1201 = vmatprep.subr.bf16.mxu0 %v688
  %1202 = vmatpush2.bf16.msra.mxu0 %v687
  %1203 = vmatprep.subr.bf16.mxu0 %v680
  %1204 = vmatpush2.bf16.msra.mxu0 %v679
  %1205 = vmatprep.subr.bf16.mxu0 %v672
  %1206 = vmatpush2.bf16.msra.mxu0 %v671
  %1207 = vmatprep.subr.bf16.mxu0 %v664
  %1208 = vmatpush2.bf16.msra.mxu0 %v663
  %1209 = vmatprep.subr.bf16.mxu0 %v656
  %1210 = vmatpush2.bf16.msra.mxu0 %v655
  %1211 = vmatprep.subr.bf16.mxu0 %v648
  %1212 = vmatpush2.bf16.msra.mxu0 %v647
  %1213 = vmatprep.subr.bf16.mxu0 %v640
  %1214 = vmatpush2.bf16.msra.mxu0 %v639
  %1215 = vmatprep.mubr.bf16.mxu0 %v1059
  %1216 = vmatmul.mubr.bf16.gmra.mxu0 %v1058
  %v1217 = vpop.f32.mrf.mxu0
  %v1218 = vadd.f32 0.0, %v1217
  %v1219 = vpop.f32.mrf.mxu0
  %v1220 = vadd.f32 0.0, %v1219
  %v1221 = vpop.f32.mrf.mxu0
  %v1222 = vpop.f32.mrf.mxu0
  %1223 = vdwg.mxu0
  %v1224 = vadd.f32 %v1050, %v1095
  %v1225 = vadd.f32 %v1051, %v1097
  %v1226 = vadd.f32 %v1052, %v1136
  %v1227 = vadd.f32 %v1053, %v1138
  %v1228 = vadd.f32 %v1054, %v1177
  %v1229 = vadd.f32 %v1055, %v1179
  %v1230 = vadd.f32 %v1056, %v1218
  %v1231 = vadd.f32 %v1057, %v1220
  %v1232 = vxor.u32 %v1224, 2147483648
  %v1233 = vxor.u32 %v1225, 2147483648
  %v1234 = vmul.f32 %v1232, 1.442695
  %v1235 = vpow.pop %v1234
  %v1236 = vmul.f32 %v1233, 1.442695
  %v1237 = vpow.pop %v1236
  %v1238 = vadd.f32 %v1235, 1.0
  %v1239 = vadd.f32 %v1237, 1.0
  %v1240 = vrcp.pop %v1238
  %v1241 = vmul.f32 1.0, %v1240
  %v1242 = vrcp.pop %v1239
  %v1243 = vmul.f32 1.0, %v1242
  %v1244 = vxor.u32 %v1226, 2147483648
  %v1245 = vxor.u32 %v1227, 2147483648
  %v1246 = vmul.f32 %v1244, 1.442695
  %v1247 = vpow.pop %v1246
  %v1248 = vmul.f32 %v1245, 1.442695
  %v1249 = vpow.pop %v1248
  %v1250 = vadd.f32 %v1247, 1.0
  %v1251 = vadd.f32 %v1249, 1.0
  %v1252 = vrcp.pop %v1250
  %v1253 = vmul.f32 1.0, %v1252
  %v1254 = vrcp.pop %v1251
  %v1255 = vmul.f32 1.0, %v1254
  %v1256 = vtanh.pop %v1228
  %v1257 = vtanh.pop %v1229
  %v1258 = vxor.u32 %v1230, 2147483648
  %v1259 = vxor.u32 %v1231, 2147483648
  %v1260 = vmul.f32 %v1258, 1.442695
  %v1261 = vpow.pop %v1260
  %v1262 = vmul.f32 %v1259, 1.442695
  %v1263 = vpow.pop %v1262
  %v1264 = vadd.f32 %v1261, 1.0
  %v1265 = vadd.f32 %v1263, 1.0
  %v1266 = vrcp.pop %v1264
  %v1267 = vmul.f32 1.0, %v1266
  %v1268 = vrcp.pop %v1265
  %v1269 = vmul.f32 1.0, %v1268
  %v1270 = vmul.f32 %v1253, %v1039
  %v1271 = vmul.f32 %v1255, %v1040
  %v1272 = vmul.f32 %v1241, %v1256
  %v1273 = vmul.f32 %v1243, %v1257
  %v1274 = vadd.f32 %v1270, %v1272
  %v1275 = vadd.f32 %v1271, %v1273
  %v1276 = vtanh.pop %v1274
  %v1277 = vtanh.pop %v1275
  %v1278 = vmul.f32 %v1267, %v1276
  %v1279 = vmul.f32 %v1269, %v1277
  %s1280 = scalar_lea.vmem %s0, 64
  %v1281 = vld [vmem:[%s1280] sm:$0xff]
  %v1282 = vld [vmem:[%s1280 + $0x8] sm:$0xff]
  %v1283 = vld [vmem:[%s1280 + $0x10] sm:$0xff]
  %v1284 = vld [vmem:[%s1280 + $0x18] sm:$0xff]
  %v1285 = vunpack.c.l.bf16 %v1281
  %v1286 = vunpack.c.h.bf16 %v1281
  %v1287 = vunpack.c.l.bf16 %v1282
  %v1288 = vunpack.c.h.bf16 %v1282
  %v1289 = vunpack.c.l.bf16 %v1283
  %v1290 = vunpack.c.h.bf16 %v1283
  %v1291 = vunpack.c.l.bf16 %v1284
  %v1292 = vunpack.c.h.bf16 %v1284
  %v1293 = vpack.c.bf16 %v1278, %v1278
  %v1294 = vpack.c.bf16 %v1279, %v1279
  %1295 = vmatprep.subr.bf16.mxu0 %v626
  %1296 = vmatpush1.bf16.msra.mxu0 %v625
  %1297 = vmatprep.subr.bf16.mxu0 %v618
  %1298 = vmatpush1.bf16.msra.mxu0 %v617
  %1299 = vmatprep.subr.bf16.mxu0 %v610
  %1300 = vmatpush1.bf16.msra.mxu0 %v609
  %1301 = vmatprep.subr.bf16.mxu0 %v602
  %1302 = vmatpush1.bf16.msra.mxu0 %v601
  %1303 = vmatprep.subr.bf16.mxu0 %v594
  %1304 = vmatpush1.bf16.msra.mxu0 %v593
  %1305 = vmatprep.subr.bf16.mxu0 %v586
  %1306 = vmatpush1.bf16.msra.mxu0 %v585
  %1307 = vmatprep.subr.bf16.mxu0 %v578
  %1308 = vmatpush1.bf16.msra.mxu0 %v577
  %1309 = vmatprep.subr.bf16.mxu0 %v570
  %1310 = vmatpush1.bf16.msra.mxu0 %v569
  %1311 = vmatprep.subr.bf16.mxu0 %v690
  %1312 = vmatpush2.bf16.msra.mxu0 %v689
  %1313 = vmatprep.subr.bf16.mxu0 %v682
  %1314 = vmatpush2.bf16.msra.mxu0 %v681
  %1315 = vmatprep.subr.bf16.mxu0 %v674
  %1316 = vmatpush2.bf16.msra.mxu0 %v673
  %1317 = vmatprep.subr.bf16.mxu0 %v666
  %1318 = vmatpush2.bf16.msra.mxu0 %v665
  %1319 = vmatprep.subr.bf16.mxu0 %v658
  %1320 = vmatpush2.bf16.msra.mxu0 %v657
  %1321 = vmatprep.subr.bf16.mxu0 %v650
  %1322 = vmatpush2.bf16.msra.mxu0 %v649
  %1323 = vmatprep.subr.bf16.mxu0 %v642
  %1324 = vmatpush2.bf16.msra.mxu0 %v641
  %1325 = vmatprep.subr.bf16.mxu0 %v634
  %1326 = vmatpush2.bf16.msra.mxu0 %v633
  %1327 = vmatprep.mubr.bf16.mxu0 %v1294
  %1328 = vmatmul.mubr.bf16.gmra.mxu0 %v1293
  %v1329 = vpop.f32.mrf.mxu0
  %v1330 = vadd.f32 0.0, %v1329
  %v1331 = vpop.f32.mrf.mxu0
  %v1332 = vadd.f32 0.0, %v1331
  %v1333 = vpop.f32.mrf.mxu0
  %v1334 = vpop.f32.mrf.mxu0
  %1335 = vdwg.mxu0
  %1336 = vmatprep.subr.bf16.mxu0 %v628
  %1337 = vmatpush1.bf16.msra.mxu0 %v627
  %1338 = vmatprep.subr.bf16.mxu0 %v620
  %1339 = vmatpush1.bf16.msra.mxu0 %v619
  %1340 = vmatprep.subr.bf16.mxu0 %v612
  %1341 = vmatpush1.bf16.msra.mxu0 %v611
  %1342 = vmatprep.subr.bf16.mxu0 %v604
  %1343 = vmatpush1.bf16.msra.mxu0 %v603
  %1344 = vmatprep.subr.bf16.mxu0 %v596
  %1345 = vmatpush1.bf16.msra.mxu0 %v595
  %1346 = vmatprep.subr.bf16.mxu0 %v588
  %1347 = vmatpush1.bf16.msra.mxu0 %v587
  %1348 = vmatprep.subr.bf16.mxu0 %v580
  %1349 = vmatpush1.bf16.msra.mxu0 %v579
  %1350 = vmatprep.subr.bf16.mxu0 %v572
  %1351 = vmatpush1.bf16.msra.mxu0 %v571
  %1352 = vmatprep.subr.bf16.mxu0 %v692
  %1353 = vmatpush2.bf16.msra.mxu0 %v691
  %1354 = vmatprep.subr.bf16.mxu0 %v684
  %1355 = vmatpush2.bf16.msra.mxu0 %v683
  %1356 = vmatprep.subr.bf16.mxu0 %v676
  %1357 = vmatpush2.bf16.msra.mxu0 %v675
  %1358 = vmatprep.subr.bf16.mxu0 %v668
  %1359 = vmatpush2.bf16.msra.mxu0 %v667
  %1360 = vmatprep.subr.bf16.mxu0 %v660
  %1361 = vmatpush2.bf16.msra.mxu0 %v659
  %1362 = vmatprep.subr.bf16.mxu0 %v652
  %1363 = vmatpush2.bf16.msra.mxu0 %v651
  %1364 = vmatprep.subr.bf16.mxu0 %v644
  %1365 = vmatpush2.bf16.msra.mxu0 %v643
  %1366 = vmatprep.subr.bf16.mxu0 %v636
  %1367 = vmatpush2.bf16.msra.mxu0 %v635
  %1368 = vmatprep.mubr.bf16.mxu0 %v1294
  %1369 = vmatmul.mubr.bf16.gmra.mxu0 %v1293
  %v1370 = vpop.f32.mrf.mxu0
  %v1371 = vadd.f32 0.0, %v1370
  %v1372 = vpop.f32.mrf.mxu0
  %v1373 = vadd.f32 0.0, %v1372
  %v1374 = vpop.f32.mrf.mxu0
  %v1375 = vpop.f32.mrf.mxu0
  %1376 = vdwg.mxu0
  %1377 = vmatprep.subr.bf16.mxu0 %v630
  %1378 = vmatpush1.bf16.msra.mxu0 %v629
  %1379 = vmatprep.subr.bf16.mxu0 %v622
  %1380 = vmatpush1.bf16.msra.mxu0 %v621
  %1381 = vmatprep.subr.bf16.mxu0 %v614
  %1382 = vmatpush1.bf16.msra.mxu0 %v613
  %1383 = vmatprep.subr.bf16.mxu0 %v606
  %1384 = vmatpush1.bf16.msra.mxu0 %v605
  %1385 = vmatprep.subr.bf16.mxu0 %v598
  %1386 = vmatpush1.bf16.msra.mxu0 %v597
  %1387 = vmatprep.subr.bf16.mxu0 %v590
  %1388 = vmatpush1.bf16.msra.mxu0 %v589
  %1389 = vmatprep.subr.bf16.mxu0 %v582
  %1390 = vmatpush1.bf16.msra.mxu0 %v581
  %1391 = vmatprep.subr.bf16.mxu0 %v574
  %1392 = vmatpush1.bf16.msra.mxu0 %v573
  %1393 = vmatprep.subr.bf16.mxu0 %v694
  %1394 = vmatpush2.bf16.msra.mxu0 %v693
  %1395 = vmatprep.subr.bf16.mxu0 %v686
  %1396 = vmatpush2.bf16.msra.mxu0 %v685
  %1397 = vmatprep.subr.bf16.mxu0 %v678
  %1398 = vmatpush2.bf16.msra.mxu0 %v677
  %1399 = vmatprep.subr.bf16.mxu0 %v670
  %1400 = vmatpush2.bf16.msra.mxu0 %v669
  %1401 = vmatprep.subr.bf16.mxu0 %v662
  %1402 = vmatpush2.bf16.msra.mxu0 %v661
  %1403 = vmatprep.subr.bf16.mxu0 %v654
  %1404 = vmatpush2.bf16.msra.mxu0 %v653
  %1405 = vmatprep.subr.bf16.mxu0 %v646
  %1406 = vmatpush2.bf16.msra.mxu0 %v645
  %1407 = vmatprep.subr.bf16.mxu0 %v638
  %1408 = vmatpush2.bf16.msra.mxu0 %v637
  %1409 = vmatprep.mubr.bf16.mxu0 %v1294
  %1410 = vmatmul.mubr.bf16.gmra.mxu0 %v1293
  %v1411 = vpop.f32.mrf.mxu0
  %v1412 = vadd.f32 0.0, %v1411
  %v1413 = vpop.f32.mrf.mxu0
  %v1414 = vadd.f32 0.0, %v1413
  %v1415 = vpop.f32.mrf.mxu0
  %v1416 = vpop.f32.mrf.mxu0
  %1417 = vdwg.mxu0
  %1418 = vmatprep.subr.bf16.mxu0 %v632
  %1419 = vmatpush1.bf16.msra.mxu0 %v631
  %1420 = vmatprep.subr.bf16.mxu0 %v624
  %1421 = vmatpush1.bf16.msra.mxu0 %v623
  %1422 = vmatprep.subr.bf16.mxu0 %v616
  %1423 = vmatpush1.bf16.msra.mxu0 %v615
  %1424 = vmatprep.subr.bf16.mxu0 %v608
  %1425 = vmatpush1.bf16.msra.mxu0 %v607
  %1426 = vmatprep.subr.bf16.mxu0 %v600
  %1427 = vmatpush1.bf16.msra.mxu0 %v599
  %1428 = vmatprep.subr.bf16.mxu0 %v592
  %1429 = vmatpush1.bf16.msra.mxu0 %v591
  %1430 = vmatprep.subr.bf16.mxu0 %v584
  %1431 = vmatpush1.bf16.msra.mxu0 %v583
  %1432 = vmatprep.subr.bf16.mxu0 %v576
  %1433 = vmatpush1.bf16.msra.mxu0 %v575
  %1434 = vmatprep.subr.bf16.mxu0 %v696
  %1435 = vmatpush2.bf16.msra.mxu0 %v695
  %1436 = vmatprep.subr.bf16.mxu0 %v688
  %1437 = vmatpush2.bf16.msra.mxu0 %v687
  %1438 = vmatprep.subr.bf16.mxu0 %v680
  %1439 = vmatpush2.bf16.msra.mxu0 %v679
  %1440 = vmatprep.subr.bf16.mxu0 %v672
  %1441 = vmatpush2.bf16.msra.mxu0 %v671
  %1442 = vmatprep.subr.bf16.mxu0 %v664
  %1443 = vmatpush2.bf16.msra.mxu0 %v663
  %1444 = vmatprep.subr.bf16.mxu0 %v656
  %1445 = vmatpush2.bf16.msra.mxu0 %v655
  %1446 = vmatprep.subr.bf16.mxu0 %v648
  %1447 = vmatpush2.bf16.msra.mxu0 %v647
  %1448 = vmatprep.subr.bf16.mxu0 %v640
  %1449 = vmatpush2.bf16.msra.mxu0 %v639
  %1450 = vmatprep.mubr.bf16.mxu0 %v1294
  %1451 = vmatmul.mubr.bf16.gmra.mxu0 %v1293
  %v1452 = vpop.f32.mrf.mxu0
  %v1453 = vadd.f32 0.0, %v1452
  %v1454 = vpop.f32.mrf.mxu0
  %v1455 = vadd.f32 0.0, %v1454
  %v1456 = vpop.f32.mrf.mxu0
  %v1457 = vpop.f32.mrf.mxu0
  %1458 = vdwg.mxu0
  %v1459 = vadd.f32 %v1285, %v1330
  %v1460 = vadd.f32 %v1286, %v1332
  %v1461 = vadd.f32 %v1287, %v1371
  %v1462 = vadd.f32 %v1288, %v1373
  %v1463 = vadd.f32 %v1289, %v1412
  %v1464 = vadd.f32 %v1290, %v1414
  %v1465 = vadd.f32 %v1291, %v1453
  %v1466 = vadd.f32 %v1292, %v1455
  %v1467 = vxor.u32 %v1459, 2147483648
  %v1468 = vxor.u32 %v1460, 2147483648
  %v1469 = vmul.f32 %v1467, 1.442695
  %v1470 = vpow.pop %v1469
  %v1471 = vmul.f32 %v1468, 1.442695
  %v1472 = vpow.pop %v1471
  %v1473 = vadd.f32 %v1470, 1.0
  %v1474 = vadd.f32 %v1472, 1.0
  %v1475 = vrcp.pop %v1473
  %v1476 = vmul.f32 1.0, %v1475
  %v1477 = vrcp.pop %v1474
  %v1478 = vmul.f32 1.0, %v1477
  %v1479 = vxor.u32 %v1461, 2147483648
  %v1480 = vxor.u32 %v1462, 2147483648
  %v1481 = vmul.f32 %v1479, 1.442695
  %v1482 = vpow.pop %v1481
  %v1483 = vmul.f32 %v1480, 1.442695
  %v1484 = vpow.pop %v1483
  %v1485 = vadd.f32 %v1482, 1.0
  %v1486 = vadd.f32 %v1484, 1.0
  %v1487 = vrcp.pop %v1485
  %v1488 = vmul.f32 1.0, %v1487
  %v1489 = vrcp.pop %v1486
  %v1490 = vmul.f32 1.0, %v1489
  %v1491 = vtanh.pop %v1463
  %v1492 = vtanh.pop %v1464
  %v1493 = vxor.u32 %v1465, 2147483648
  %v1494 = vxor.u32 %v1466, 2147483648
  %v1495 = vmul.f32 %v1493, 1.442695
  %v1496 = vpow.pop %v1495
  %v1497 = vmul.f32 %v1494, 1.442695
  %v1498 = vpow.pop %v1497
  %v1499 = vadd.f32 %v1496, 1.0
  %v1500 = vadd.f32 %v1498, 1.0
  %v1501 = vrcp.pop %v1499
  %v1502 = vmul.f32 1.0, %v1501
  %v1503 = vrcp.pop %v1500
  %v1504 = vmul.f32 1.0, %v1503
  %v1505 = vmul.f32 %v1488, %v1274
  %v1506 = vmul.f32 %v1490, %v1275
  %v1507 = vmul.f32 %v1476, %v1491
  %v1508 = vmul.f32 %v1478, %v1492
  %v1509 = vadd.f32 %v1505, %v1507
  %v1510 = vadd.f32 %v1506, %v1508
  %v1511 = vtanh.pop %v1509
  %v1512 = vtanh.pop %v1510
  %v1513 = vmul.f32 %v1502, %v1511
  %v1514 = vmul.f32 %v1504, %v1512
  %s1515 = scalar_lea.vmem %s0, 96
  %v1516 = vld [vmem:[%s1515] sm:$0xff]
  %v1517 = vld [vmem:[%s1515 + $0x8] sm:$0xff]
  %v1518 = vld [vmem:[%s1515 + $0x10] sm:$0xff]
  %v1519 = vld [vmem:[%s1515 + $0x18] sm:$0xff]
  %v1520 = vunpack.c.l.bf16 %v1516
  %v1521 = vunpack.c.h.bf16 %v1516
  %v1522 = vunpack.c.l.bf16 %v1517
  %v1523 = vunpack.c.h.bf16 %v1517
  %v1524 = vunpack.c.l.bf16 %v1518
  %v1525 = vunpack.c.h.bf16 %v1518
  %v1526 = vunpack.c.l.bf16 %v1519
  %v1527 = vunpack.c.h.bf16 %v1519
  %v1528 = vpack.c.bf16 %v1513, %v1513
  %v1529 = vpack.c.bf16 %v1514, %v1514
  %1530 = vmatprep.subr.bf16.mxu0 %v626
  %1531 = vmatpush1.bf16.msra.mxu0 %v625
  %1532 = vmatprep.subr.bf16.mxu0 %v618
  %1533 = vmatpush1.bf16.msra.mxu0 %v617
  %1534 = vmatprep.subr.bf16.mxu0 %v610
  %1535 = vmatpush1.bf16.msra.mxu0 %v609
  %1536 = vmatprep.subr.bf16.mxu0 %v602
  %1537 = vmatpush1.bf16.msra.mxu0 %v601
  %1538 = vmatprep.subr.bf16.mxu0 %v594
  %1539 = vmatpush1.bf16.msra.mxu0 %v593
  %1540 = vmatprep.subr.bf16.mxu0 %v586
  %1541 = vmatpush1.bf16.msra.mxu0 %v585
  %1542 = vmatprep.subr.bf16.mxu0 %v578
  %1543 = vmatpush1.bf16.msra.mxu0 %v577
  %1544 = vmatprep.subr.bf16.mxu0 %v570
  %1545 = vmatpush1.bf16.msra.mxu0 %v569
  %1546 = vmatprep.subr.bf16.mxu0 %v690
  %1547 = vmatpush2.bf16.msra.mxu0 %v689
  %1548 = vmatprep.subr.bf16.mxu0 %v682
  %1549 = vmatpush2.bf16.msra.mxu0 %v681
  %1550 = vmatprep.subr.bf16.mxu0 %v674
  %1551 = vmatpush2.bf16.msra.mxu0 %v673
  %1552 = vmatprep.subr.bf16.mxu0 %v666
  %1553 = vmatpush2.bf16.msra.mxu0 %v665
  %1554 = vmatprep.subr.bf16.mxu0 %v658
  %1555 = vmatpush2.bf16.msra.mxu0 %v657
  %1556 = vmatprep.subr.bf16.mxu0 %v650
  %1557 = vmatpush2.bf16.msra.mxu0 %v649
  %1558 = vmatprep.subr.bf16.mxu0 %v642
  %1559 = vmatpush2.bf16.msra.mxu0 %v641
  %1560 = vmatprep.subr.bf16.mxu0 %v634
  %1561 = vmatpush2.bf16.msra.mxu0 %v633
  %1562 = vmatprep.mubr.bf16.mxu0 %v1529
  %1563 = vmatmul.mubr.bf16.gmra.mxu0 %v1528
  %v1564 = vpop.f32.mrf.mxu0
  %v1565 = vadd.f32 0.0, %v1564
  %v1566 = vpop.f32.mrf.mxu0
  %v1567 = vadd.f32 0.0, %v1566
  %v1568 = vpop.f32.mrf.mxu0
  %v1569 = vpop.f32.mrf.mxu0
  %1570 = vdwg.mxu0
  %1571 = vmatprep.subr.bf16.mxu0 %v628
  %1572 = vmatpush1.bf16.msra.mxu0 %v627
  %1573 = vmatprep.subr.bf16.mxu0 %v620
  %1574 = vmatpush1.bf16.msra.mxu0 %v619
  %1575 = vmatprep.subr.bf16.mxu0 %v612
  %1576 = vmatpush1.bf16.msra.mxu0 %v611
  %1577 = vmatprep.subr.bf16.mxu0 %v604
  %1578 = vmatpush1.bf16.msra.mxu0 %v603
  %1579 = vmatprep.subr.bf16.mxu0 %v596
  %1580 = vmatpush1.bf16.msra.mxu0 %v595
  %1581 = vmatprep.subr.bf16.mxu0 %v588
  %1582 = vmatpush1.bf16.msra.mxu0 %v587
  %1583 = vmatprep.subr.bf16.mxu0 %v580
  %1584 = vmatpush1.bf16.msra.mxu0 %v579
  %1585 = vmatprep.subr.bf16.mxu0 %v572
  %1586 = vmatpush1.bf16.msra.mxu0 %v571
  %1587 = vmatprep.subr.bf16.mxu0 %v692
  %1588 = vmatpush2.bf16.msra.mxu0 %v691
  %1589 = vmatprep.subr.bf16.mxu0 %v684
  %1590 = vmatpush2.bf16.msra.mxu0 %v683
  %1591 = vmatprep.subr.bf16.mxu0 %v676
  %1592 = vmatpush2.bf16.msra.mxu0 %v675
  %1593 = vmatprep.subr.bf16.mxu0 %v668
  %1594 = vmatpush2.bf16.msra.mxu0 %v667
  %1595 = vmatprep.subr.bf16.mxu0 %v660
  %1596 = vmatpush2.bf16.msra.mxu0 %v659
  %1597 = vmatprep.subr.bf16.mxu0 %v652
  %1598 = vmatpush2.bf16.msra.mxu0 %v651
  %1599 = vmatprep.subr.bf16.mxu0 %v644
  %1600 = vmatpush2.bf16.msra.mxu0 %v643
  %1601 = vmatprep.subr.bf16.mxu0 %v636
  %1602 = vmatpush2.bf16.msra.mxu0 %v635
  %1603 = vmatprep.mubr.bf16.mxu0 %v1529
  %1604 = vmatmul.mubr.bf16.gmra.mxu0 %v1528
  %v1605 = vpop.f32.mrf.mxu0
  %v1606 = vadd.f32 0.0, %v1605
  %v1607 = vpop.f32.mrf.mxu0
  %v1608 = vadd.f32 0.0, %v1607
  %v1609 = vpop.f32.mrf.mxu0
  %v1610 = vpop.f32.mrf.mxu0
  %1611 = vdwg.mxu0
  %1612 = vmatprep.subr.bf16.mxu0 %v630
  %1613 = vmatpush1.bf16.msra.mxu0 %v629
  %1614 = vmatprep.subr.bf16.mxu0 %v622
  %1615 = vmatpush1.bf16.msra.mxu0 %v621
  %1616 = vmatprep.subr.bf16.mxu0 %v614
  %1617 = vmatpush1.bf16.msra.mxu0 %v613
  %1618 = vmatprep.subr.bf16.mxu0 %v606
  %1619 = vmatpush1.bf16.msra.mxu0 %v605
  %1620 = vmatprep.subr.bf16.mxu0 %v598
  %1621 = vmatpush1.bf16.msra.mxu0 %v597
  %1622 = vmatprep.subr.bf16.mxu0 %v590
  %1623 = vmatpush1.bf16.msra.mxu0 %v589
  %1624 = vmatprep.subr.bf16.mxu0 %v582
  %1625 = vmatpush1.bf16.msra.mxu0 %v581
  %1626 = vmatprep.subr.bf16.mxu0 %v574
  %1627 = vmatpush1.bf16.msra.mxu0 %v573
  %1628 = vmatprep.subr.bf16.mxu0 %v694
  %1629 = vmatpush2.bf16.msra.mxu0 %v693
  %1630 = vmatprep.subr.bf16.mxu0 %v686
  %1631 = vmatpush2.bf16.msra.mxu0 %v685
  %1632 = vmatprep.subr.bf16.mxu0 %v678
  %1633 = vmatpush2.bf16.msra.mxu0 %v677
  %1634 = vmatprep.subr.bf16.mxu0 %v670
  %1635 = vmatpush2.bf16.msra.mxu0 %v669
  %1636 = vmatprep.subr.bf16.mxu0 %v662
  %1637 = vmatpush2.bf16.msra.mxu0 %v661
  %1638 = vmatprep.subr.bf16.mxu0 %v654
  %1639 = vmatpush2.bf16.msra.mxu0 %v653
  %1640 = vmatprep.subr.bf16.mxu0 %v646
  %1641 = vmatpush2.bf16.msra.mxu0 %v645
  %1642 = vmatprep.subr.bf16.mxu0 %v638
  %1643 = vmatpush2.bf16.msra.mxu0 %v637
  %1644 = vmatprep.mubr.bf16.mxu0 %v1529
  %1645 = vmatmul.mubr.bf16.gmra.mxu0 %v1528
  %v1646 = vpop.f32.mrf.mxu0
  %v1647 = vadd.f32 0.0, %v1646
  %v1648 = vpop.f32.mrf.mxu0
  %v1649 = vadd.f32 0.0, %v1648
  %v1650 = vpop.f32.mrf.mxu0
  %v1651 = vpop.f32.mrf.mxu0
  %1652 = vdwg.mxu0
  %1653 = vmatprep.subr.bf16.mxu0 %v632
  %1654 = vmatpush1.bf16.msra.mxu0 %v631
  %1655 = vmatprep.subr.bf16.mxu0 %v624
  %1656 = vmatpush1.bf16.msra.mxu0 %v623
  %1657 = vmatprep.subr.bf16.mxu0 %v616
  %1658 = vmatpush1.bf16.msra.mxu0 %v615
  %1659 = vmatprep.subr.bf16.mxu0 %v608
  %1660 = vmatpush1.bf16.msra.mxu0 %v607
  %1661 = vmatprep.subr.bf16.mxu0 %v600
  %1662 = vmatpush1.bf16.msra.mxu0 %v599
  %1663 = vmatprep.subr.bf16.mxu0 %v592
  %1664 = vmatpush1.bf16.msra.mxu0 %v591
  %1665 = vmatprep.subr.bf16.mxu0 %v584
  %1666 = vmatpush1.bf16.msra.mxu0 %v583
  %1667 = vmatprep.subr.bf16.mxu0 %v576
  %1668 = vmatpush1.bf16.msra.mxu0 %v575
  %1669 = vmatprep.subr.bf16.mxu0 %v696
  %1670 = vmatpush2.bf16.msra.mxu0 %v695
  %1671 = vmatprep.subr.bf16.mxu0 %v688
  %1672 = vmatpush2.bf16.msra.mxu0 %v687
  %1673 = vmatprep.subr.bf16.mxu0 %v680
  %1674 = vmatpush2.bf16.msra.mxu0 %v679
  %1675 = vmatprep.subr.bf16.mxu0 %v672
  %1676 = vmatpush2.bf16.msra.mxu0 %v671
  %1677 = vmatprep.subr.bf16.mxu0 %v664
  %1678 = vmatpush2.bf16.msra.mxu0 %v663
  %1679 = vmatprep.subr.bf16.mxu0 %v656
  %1680 = vmatpush2.bf16.msra.mxu0 %v655
  %1681 = vmatprep.subr.bf16.mxu0 %v648
  %1682 = vmatpush2.bf16.msra.mxu0 %v647
  %1683 = vmatprep.subr.bf16.mxu0 %v640
  %1684 = vmatpush2.bf16.msra.mxu0 %v639
  %1685 = vmatprep.mubr.bf16.mxu0 %v1529
  %1686 = vmatmul.mubr.bf16.gmra.mxu0 %v1528
  %v1687 = vpop.f32.mrf.mxu0
  %v1688 = vadd.f32 0.0, %v1687
  %v1689 = vpop.f32.mrf.mxu0
  %v1690 = vadd.f32 0.0, %v1689
  %v1691 = vpop.f32.mrf.mxu0
  %v1692 = vpop.f32.mrf.mxu0
  %1693 = vdwg.mxu0
  %v1694 = vadd.f32 %v1520, %v1565
  %v1695 = vadd.f32 %v1521, %v1567
  %v1696 = vadd.f32 %v1522, %v1606
  %v1697 = vadd.f32 %v1523, %v1608
  %v1698 = vadd.f32 %v1524, %v1647
  %v1699 = vadd.f32 %v1525, %v1649
  %v1700 = vadd.f32 %v1526, %v1688
  %v1701 = vadd.f32 %v1527, %v1690
  %v1702 = vxor.u32 %v1694, 2147483648
  %v1703 = vxor.u32 %v1695, 2147483648
  %v1704 = vmul.f32 %v1702, 1.442695
  %v1705 = vpow.pop %v1704
  %v1706 = vmul.f32 %v1703, 1.442695
  %v1707 = vpow.pop %v1706
  %v1708 = vadd.f32 %v1705, 1.0
  %v1709 = vadd.f32 %v1707, 1.0
  %v1710 = vrcp.pop %v1708
  %v1711 = vmul.f32 1.0, %v1710
  %v1712 = vrcp.pop %v1709
  %v1713 = vmul.f32 1.0, %v1712
  %v1714 = vxor.u32 %v1696, 2147483648
  %v1715 = vxor.u32 %v1697, 2147483648
  %v1716 = vmul.f32 %v1714, 1.442695
  %v1717 = vpow.pop %v1716
  %v1718 = vmul.f32 %v1715, 1.442695
  %v1719 = vpow.pop %v1718
  %v1720 = vadd.f32 %v1717, 1.0
  %v1721 = vadd.f32 %v1719, 1.0
  %v1722 = vrcp.pop %v1720
  %v1723 = vmul.f32 1.0, %v1722
  %v1724 = vrcp.pop %v1721
  %v1725 = vmul.f32 1.0, %v1724
  %v1726 = vtanh.pop %v1698
  %v1727 = vtanh.pop %v1699
  %v1728 = vxor.u32 %v1700, 2147483648
  %v1729 = vxor.u32 %v1701, 2147483648
  %v1730 = vmul.f32 %v1728, 1.442695
  %v1731 = vpow.pop %v1730
  %v1732 = vmul.f32 %v1729, 1.442695
  %v1733 = vpow.pop %v1732
  %v1734 = vadd.f32 %v1731, 1.0
  %v1735 = vadd.f32 %v1733, 1.0
  %v1736 = vrcp.pop %v1734
  %v1737 = vmul.f32 1.0, %v1736
  %v1738 = vrcp.pop %v1735
  %v1739 = vmul.f32 1.0, %v1738
  %v1740 = vmul.f32 %v1723, %v1509
  %v1741 = vmul.f32 %v1725, %v1510
  %v1742 = vmul.f32 %v1711, %v1726
  %v1743 = vmul.f32 %v1713, %v1727
  %v1744 = vadd.f32 %v1740, %v1742
  %v1745 = vadd.f32 %v1741, %v1743
  %v1746 = vtanh.pop %v1744
  %v1747 = vtanh.pop %v1745
  %v1748 = vmul.f32 %v1737, %v1746
  %v1749 = vmul.f32 %v1739, %v1747
  %s1750 = scalar_lea.vmem %s0, 128
  %v1751 = vld [vmem:[%s1750] sm:$0xff]
  %v1752 = vld [vmem:[%s1750 + $0x8] sm:$0xff]
  %v1753 = vld [vmem:[%s1750 + $0x10] sm:$0xff]
  %v1754 = vld [vmem:[%s1750 + $0x18] sm:$0xff]
  %v1755 = vunpack.c.l.bf16 %v1751
  %v1756 = vunpack.c.h.bf16 %v1751
  %v1757 = vunpack.c.l.bf16 %v1752
  %v1758 = vunpack.c.h.bf16 %v1752
  %v1759 = vunpack.c.l.bf16 %v1753
  %v1760 = vunpack.c.h.bf16 %v1753
  %v1761 = vunpack.c.l.bf16 %v1754
  %v1762 = vunpack.c.h.bf16 %v1754
  %v1763 = vpack.c.bf16 %v1748, %v1748
  %v1764 = vpack.c.bf16 %v1749, %v1749
  %1765 = vmatprep.subr.bf16.mxu0 %v626
  %1766 = vmatpush1.bf16.msra.mxu0 %v625
  %1767 = vmatprep.subr.bf16.mxu0 %v618
  %1768 = vmatpush1.bf16.msra.mxu0 %v617
  %1769 = vmatprep.subr.bf16.mxu0 %v610
  %1770 = vmatpush1.bf16.msra.mxu0 %v609
  %1771 = vmatprep.subr.bf16.mxu0 %v602
  %1772 = vmatpush1.bf16.msra.mxu0 %v601
  %1773 = vmatprep.subr.bf16.mxu0 %v594
  %1774 = vmatpush1.bf16.msra.mxu0 %v593
  %1775 = vmatprep.subr.bf16.mxu0 %v586
  %1776 = vmatpush1.bf16.msra.mxu0 %v585
  %1777 = vmatprep.subr.bf16.mxu0 %v578
  %1778 = vmatpush1.bf16.msra.mxu0 %v577
  %1779 = vmatprep.subr.bf16.mxu0 %v570
  %1780 = vmatpush1.bf16.msra.mxu0 %v569
  %1781 = vmatprep.subr.bf16.mxu0 %v690
  %1782 = vmatpush2.bf16.msra.mxu0 %v689
  %1783 = vmatprep.subr.bf16.mxu0 %v682
  %1784 = vmatpush2.bf16.msra.mxu0 %v681
  %1785 = vmatprep.subr.bf16.mxu0 %v674
  %1786 = vmatpush2.bf16.msra.mxu0 %v673
  %1787 = vmatprep.subr.bf16.mxu0 %v666
  %1788 = vmatpush2.bf16.msra.mxu0 %v665
  %1789 = vmatprep.subr.bf16.mxu0 %v658
  %1790 = vmatpush2.bf16.msra.mxu0 %v657
  %1791 = vmatprep.subr.bf16.mxu0 %v650
  %1792 = vmatpush2.bf16.msra.mxu0 %v649
  %1793 = vmatprep.subr.bf16.mxu0 %v642
  %1794 = vmatpush2.bf16.msra.mxu0 %v641
  %1795 = vmatprep.subr.bf16.mxu0 %v634
  %1796 = vmatpush2.bf16.msra.mxu0 %v633
  %1797 = vmatprep.mubr.bf16.mxu0 %v1764
  %1798 = vmatmul.mubr.bf16.gmra.mxu0 %v1763
  %v1799 = vpop.f32.mrf.mxu0
  %v1800 = vadd.f32 0.0, %v1799
  %v1801 = vpop.f32.mrf.mxu0
  %v1802 = vadd.f32 0.0, %v1801
  %v1803 = vpop.f32.mrf.mxu0
  %v1804 = vpop.f32.mrf.mxu0
  %1805 = vdwg.mxu0
  %1806 = vmatprep.subr.bf16.mxu0 %v628
  %1807 = vmatpush1.bf16.msra.mxu0 %v627
  %1808 = vmatprep.subr.bf16.mxu0 %v620
  %1809 = vmatpush1.bf16.msra.mxu0 %v619
  %1810 = vmatprep.subr.bf16.mxu0 %v612
  %1811 = vmatpush1.bf16.msra.mxu0 %v611
  %1812 = vmatprep.subr.bf16.mxu0 %v604
  %1813 = vmatpush1.bf16.msra.mxu0 %v603
  %1814 = vmatprep.subr.bf16.mxu0 %v596
  %1815 = vmatpush1.bf16.msra.mxu0 %v595
  %1816 = vmatprep.subr.bf16.mxu0 %v588
  %1817 = vmatpush1.bf16.msra.mxu0 %v587
  %1818 = vmatprep.subr.bf16.mxu0 %v580
  %1819 = vmatpush1.bf16.msra.mxu0 %v579
  %1820 = vmatprep.subr.bf16.mxu0 %v572
  %1821 = vmatpush1.bf16.msra.mxu0 %v571
  %1822 = vmatprep.subr.bf16.mxu0 %v692
  %1823 = vmatpush2.bf16.msra.mxu0 %v691
  %1824 = vmatprep.subr.bf16.mxu0 %v684
  %1825 = vmatpush2.bf16.msra.mxu0 %v683
  %1826 = vmatprep.subr.bf16.mxu0 %v676
  %1827 = vmatpush2.bf16.msra.mxu0 %v675
  %1828 = vmatprep.subr.bf16.mxu0 %v668
  %1829 = vmatpush2.bf16.msra.mxu0 %v667
  %1830 = vmatprep.subr.bf16.mxu0 %v660
  %1831 = vmatpush2.bf16.msra.mxu0 %v659
  %1832 = vmatprep.subr.bf16.mxu0 %v652
  %1833 = vmatpush2.bf16.msra.mxu0 %v651
  %1834 = vmatprep.subr.bf16.mxu0 %v644
  %1835 = vmatpush2.bf16.msra.mxu0 %v643
  %1836 = vmatprep.subr.bf16.mxu0 %v636
  %1837 = vmatpush2.bf16.msra.mxu0 %v635
  %1838 = vmatprep.mubr.bf16.mxu0 %v1764
  %1839 = vmatmul.mubr.bf16.gmra.mxu0 %v1763
  %v1840 = vpop.f32.mrf.mxu0
  %v1841 = vadd.f32 0.0, %v1840
  %v1842 = vpop.f32.mrf.mxu0
  %v1843 = vadd.f32 0.0, %v1842
  %v1844 = vpop.f32.mrf.mxu0
  %v1845 = vpop.f32.mrf.mxu0
  %1846 = vdwg.mxu0
  %1847 = vmatprep.subr.bf16.mxu0 %v630
  %1848 = vmatpush1.bf16.msra.mxu0 %v629
  %1849 = vmatprep.subr.bf16.mxu0 %v622
  %1850 = vmatpush1.bf16.msra.mxu0 %v621
  %1851 = vmatprep.subr.bf16.mxu0 %v614
  %1852 = vmatpush1.bf16.msra.mxu0 %v613
  %1853 = vmatprep.subr.bf16.mxu0 %v606
  %1854 = vmatpush1.bf16.msra.mxu0 %v605
  %1855 = vmatprep.subr.bf16.mxu0 %v598
  %1856 = vmatpush1.bf16.msra.mxu0 %v597
  %1857 = vmatprep.subr.bf16.mxu0 %v590
  %1858 = vmatpush1.bf16.msra.mxu0 %v589
  %1859 = vmatprep.subr.bf16.mxu0 %v582
  %1860 = vmatpush1.bf16.msra.mxu0 %v581
  %1861 = vmatprep.subr.bf16.mxu0 %v574
  %1862 = vmatpush1.bf16.msra.mxu0 %v573
  %1863 = vmatprep.subr.bf16.mxu0 %v694
  %1864 = vmatpush2.bf16.msra.mxu0 %v693
  %1865 = vmatprep.subr.bf16.mxu0 %v686
  %1866 = vmatpush2.bf16.msra.mxu0 %v685
  %1867 = vmatprep.subr.bf16.mxu0 %v678
  %1868 = vmatpush2.bf16.msra.mxu0 %v677
  %1869 = vmatprep.subr.bf16.mxu0 %v670
  %1870 = vmatpush2.bf16.msra.mxu0 %v669
  %1871 = vmatprep.subr.bf16.mxu0 %v662
  %1872 = vmatpush2.bf16.msra.mxu0 %v661
  %1873 = vmatprep.subr.bf16.mxu0 %v654
  %1874 = vmatpush2.bf16.msra.mxu0 %v653
  %1875 = vmatprep.subr.bf16.mxu0 %v646
  %1876 = vmatpush2.bf16.msra.mxu0 %v645
  %1877 = vmatprep.subr.bf16.mxu0 %v638
  %1878 = vmatpush2.bf16.msra.mxu0 %v637
  %1879 = vmatprep.mubr.bf16.mxu0 %v1764
  %1880 = vmatmul.mubr.bf16.gmra.mxu0 %v1763
  %v1881 = vpop.f32.mrf.mxu0
  %v1882 = vadd.f32 0.0, %v1881
  %v1883 = vpop.f32.mrf.mxu0
  %v1884 = vadd.f32 0.0, %v1883
  %v1885 = vpop.f32.mrf.mxu0
  %v1886 = vpop.f32.mrf.mxu0
  %1887 = vdwg.mxu0
  %1888 = vmatprep.subr.bf16.mxu0 %v632
  %1889 = vmatpush1.bf16.msra.mxu0 %v631
  %1890 = vmatprep.subr.bf16.mxu0 %v624
  %1891 = vmatpush1.bf16.msra.mxu0 %v623
  %1892 = vmatprep.subr.bf16.mxu0 %v616
  %1893 = vmatpush1.bf16.msra.mxu0 %v615
  %1894 = vmatprep.subr.bf16.mxu0 %v608
  %1895 = vmatpush1.bf16.msra.mxu0 %v607
  %1896 = vmatprep.subr.bf16.mxu0 %v600
  %1897 = vmatpush1.bf16.msra.mxu0 %v599
  %1898 = vmatprep.subr.bf16.mxu0 %v592
  %1899 = vmatpush1.bf16.msra.mxu0 %v591
  %1900 = vmatprep.subr.bf16.mxu0 %v584
  %1901 = vmatpush1.bf16.msra.mxu0 %v583
  %1902 = vmatprep.subr.bf16.mxu0 %v576
  %1903 = vmatpush1.bf16.msra.mxu0 %v575
  %1904 = vmatprep.subr.bf16.mxu0 %v696
  %1905 = vmatpush2.bf16.msra.mxu0 %v695
  %1906 = vmatprep.subr.bf16.mxu0 %v688
  %1907 = vmatpush2.bf16.msra.mxu0 %v687
  %1908 = vmatprep.subr.bf16.mxu0 %v680
  %1909 = vmatpush2.bf16.msra.mxu0 %v679
  %1910 = vmatprep.subr.bf16.mxu0 %v672
  %1911 = vmatpush2.bf16.msra.mxu0 %v671
  %1912 = vmatprep.subr.bf16.mxu0 %v664
  %1913 = vmatpush2.bf16.msra.mxu0 %v663
  %1914 = vmatprep.subr.bf16.mxu0 %v656
  %1915 = vmatpush2.bf16.msra.mxu0 %v655
  %1916 = vmatprep.subr.bf16.mxu0 %v648
  %1917 = vmatpush2.bf16.msra.mxu0 %v647
  %1918 = vmatprep.subr.bf16.mxu0 %v640
  %1919 = vmatpush2.bf16.msra.mxu0 %v639
  %1920 = vmatprep.mubr.bf16.mxu0 %v1764
  %1921 = vmatmul.mubr.bf16.gmra.mxu0 %v1763
  %v1922 = vpop.f32.mrf.mxu0
  %v1923 = vadd.f32 0.0, %v1922
  %v1924 = vpop.f32.mrf.mxu0
  %v1925 = vadd.f32 0.0, %v1924
  %v1926 = vpop.f32.mrf.mxu0
  %v1927 = vpop.f32.mrf.mxu0
  %1928 = vdwg.mxu0
  %v1929 = vadd.f32 %v1755, %v1800
  %v1930 = vadd.f32 %v1756, %v1802
  %v1931 = vadd.f32 %v1757, %v1841
  %v1932 = vadd.f32 %v1758, %v1843
  %v1933 = vadd.f32 %v1759, %v1882
  %v1934 = vadd.f32 %v1760, %v1884
  %v1935 = vadd.f32 %v1761, %v1923
  %v1936 = vadd.f32 %v1762, %v1925
  %v1937 = vxor.u32 %v1929, 2147483648
  %v1938 = vxor.u32 %v1930, 2147483648
  %v1939 = vmul.f32 %v1937, 1.442695
  %v1940 = vpow.pop %v1939
  %v1941 = vmul.f32 %v1938, 1.442695
  %v1942 = vpow.pop %v1941
  %v1943 = vadd.f32 %v1940, 1.0
  %v1944 = vadd.f32 %v1942, 1.0
  %v1945 = vrcp.pop %v1943
  %v1946 = vmul.f32 1.0, %v1945
  %v1947 = vrcp.pop %v1944
  %v1948 = vmul.f32 1.0, %v1947
  %v1949 = vxor.u32 %v1931, 2147483648
  %v1950 = vxor.u32 %v1932, 2147483648
  %v1951 = vmul.f32 %v1949, 1.442695
  %v1952 = vpow.pop %v1951
  %v1953 = vmul.f32 %v1950, 1.442695
  %v1954 = vpow.pop %v1953
  %v1955 = vadd.f32 %v1952, 1.0
  %v1956 = vadd.f32 %v1954, 1.0
  %v1957 = vrcp.pop %v1955
  %v1958 = vmul.f32 1.0, %v1957
  %v1959 = vrcp.pop %v1956
  %v1960 = vmul.f32 1.0, %v1959
  %v1961 = vtanh.pop %v1933
  %v1962 = vtanh.pop %v1934
  %v1963 = vxor.u32 %v1935, 2147483648
  %v1964 = vxor.u32 %v1936, 2147483648
  %v1965 = vmul.f32 %v1963, 1.442695
  %v1966 = vpow.pop %v1965
  %v1967 = vmul.f32 %v1964, 1.442695
  %v1968 = vpow.pop %v1967
  %v1969 = vadd.f32 %v1966, 1.0
  %v1970 = vadd.f32 %v1968, 1.0
  %v1971 = vrcp.pop %v1969
  %v1972 = vmul.f32 1.0, %v1971
  %v1973 = vrcp.pop %v1970
  %v1974 = vmul.f32 1.0, %v1973
  %v1975 = vmul.f32 %v1958, %v1744
  %v1976 = vmul.f32 %v1960, %v1745
  %v1977 = vmul.f32 %v1946, %v1961
  %v1978 = vmul.f32 %v1948, %v1962
  %v1979 = vadd.f32 %v1975, %v1977
  %v1980 = vadd.f32 %v1976, %v1978
  %v1981 = vtanh.pop %v1979
  %v1982 = vtanh.pop %v1980
  %v1983 = vmul.f32 %v1972, %v1981
  %v1984 = vmul.f32 %v1974, %v1982
  %s1985 = scalar_lea.vmem %s0, 160
  %v1986 = vld [vmem:[%s1985] sm:$0xff]
  %v1987 = vld [vmem:[%s1985 + $0x8] sm:$0xff]
  %v1988 = vld [vmem:[%s1985 + $0x10] sm:$0xff]
  %v1989 = vld [vmem:[%s1985 + $0x18] sm:$0xff]
  %v1990 = vunpack.c.l.bf16 %v1986
  %v1991 = vunpack.c.h.bf16 %v1986
  %v1992 = vunpack.c.l.bf16 %v1987
  %v1993 = vunpack.c.h.bf16 %v1987
  %v1994 = vunpack.c.l.bf16 %v1988
  %v1995 = vunpack.c.h.bf16 %v1988
  %v1996 = vunpack.c.l.bf16 %v1989
  %v1997 = vunpack.c.h.bf16 %v1989
  %v1998 = vpack.c.bf16 %v1983, %v1983
  %v1999 = vpack.c.bf16 %v1984, %v1984
  %2000 = vmatprep.subr.bf16.mxu0 %v626
  %2001 = vmatpush1.bf16.msra.mxu0 %v625
  %2002 = vmatprep.subr.bf16.mxu0 %v618
  %2003 = vmatpush1.bf16.msra.mxu0 %v617
  %2004 = vmatprep.subr.bf16.mxu0 %v610
  %2005 = vmatpush1.bf16.msra.mxu0 %v609
  %2006 = vmatprep.subr.bf16.mxu0 %v602
  %2007 = vmatpush1.bf16.msra.mxu0 %v601
  %2008 = vmatprep.subr.bf16.mxu0 %v594
  %2009 = vmatpush1.bf16.msra.mxu0 %v593
  %2010 = vmatprep.subr.bf16.mxu0 %v586
  %2011 = vmatpush1.bf16.msra.mxu0 %v585
  %2012 = vmatprep.subr.bf16.mxu0 %v578
  %2013 = vmatpush1.bf16.msra.mxu0 %v577
  %2014 = vmatprep.subr.bf16.mxu0 %v570
  %2015 = vmatpush1.bf16.msra.mxu0 %v569
  %2016 = vmatprep.subr.bf16.mxu0 %v690
  %2017 = vmatpush2.bf16.msra.mxu0 %v689
  %2018 = vmatprep.subr.bf16.mxu0 %v682
  %2019 = vmatpush2.bf16.msra.mxu0 %v681
  %2020 = vmatprep.subr.bf16.mxu0 %v674
  %2021 = vmatpush2.bf16.msra.mxu0 %v673
  %2022 = vmatprep.subr.bf16.mxu0 %v666
  %2023 = vmatpush2.bf16.msra.mxu0 %v665
  %2024 = vmatprep.subr.bf16.mxu0 %v658
  %2025 = vmatpush2.bf16.msra.mxu0 %v657
  %2026 = vmatprep.subr.bf16.mxu0 %v650
  %2027 = vmatpush2.bf16.msra.mxu0 %v649
  %2028 = vmatprep.subr.bf16.mxu0 %v642
  %2029 = vmatpush2.bf16.msra.mxu0 %v641
  %2030 = vmatprep.subr.bf16.mxu0 %v634
  %2031 = vmatpush2.bf16.msra.mxu0 %v633
  %2032 = vmatprep.mubr.bf16.mxu0 %v1999
  %2033 = vmatmul.mubr.bf16.gmra.mxu0 %v1998
  %v2034 = vpop.f32.mrf.mxu0
  %v2035 = vadd.f32 0.0, %v2034
  %v2036 = vpop.f32.mrf.mxu0
  %v2037 = vadd.f32 0.0, %v2036
  %v2038 = vpop.f32.mrf.mxu0
  %v2039 = vpop.f32.mrf.mxu0
  %2040 = vdwg.mxu0
  %2041 = vmatprep.subr.bf16.mxu0 %v628
  %2042 = vmatpush1.bf16.msra.mxu0 %v627
  %2043 = vmatprep.subr.bf16.mxu0 %v620
  %2044 = vmatpush1.bf16.msra.mxu0 %v619
  %2045 = vmatprep.subr.bf16.mxu0 %v612
  %2046 = vmatpush1.bf16.msra.mxu0 %v611
  %2047 = vmatprep.subr.bf16.mxu0 %v604
  %2048 = vmatpush1.bf16.msra.mxu0 %v603
  %2049 = vmatprep.subr.bf16.mxu0 %v596
  %2050 = vmatpush1.bf16.msra.mxu0 %v595
  %2051 = vmatprep.subr.bf16.mxu0 %v588
  %2052 = vmatpush1.bf16.msra.mxu0 %v587
  %2053 = vmatprep.subr.bf16.mxu0 %v580
  %2054 = vmatpush1.bf16.msra.mxu0 %v579
  %2055 = vmatprep.subr.bf16.mxu0 %v572
  %2056 = vmatpush1.bf16.msra.mxu0 %v571
  %2057 = vmatprep.subr.bf16.mxu0 %v692
  %2058 = vmatpush2.bf16.msra.mxu0 %v691
  %2059 = vmatprep.subr.bf16.mxu0 %v684
  %2060 = vmatpush2.bf16.msra.mxu0 %v683
  %2061 = vmatprep.subr.bf16.mxu0 %v676
  %2062 = vmatpush2.bf16.msra.mxu0 %v675
  %2063 = vmatprep.subr.bf16.mxu0 %v668
  %2064 = vmatpush2.bf16.msra.mxu0 %v667
  %2065 = vmatprep.subr.bf16.mxu0 %v660
  %2066 = vmatpush2.bf16.msra.mxu0 %v659
  %2067 = vmatprep.subr.bf16.mxu0 %v652
  %2068 = vmatpush2.bf16.msra.mxu0 %v651
  %2069 = vmatprep.subr.bf16.mxu0 %v644
  %2070 = vmatpush2.bf16.msra.mxu0 %v643
  %2071 = vmatprep.subr.bf16.mxu0 %v636
  %2072 = vmatpush2.bf16.msra.mxu0 %v635
  %2073 = vmatprep.mubr.bf16.mxu0 %v1999
  %2074 = vmatmul.mubr.bf16.gmra.mxu0 %v1998
  %v2075 = vpop.f32.mrf.mxu0
  %v2076 = vadd.f32 0.0, %v2075
  %v2077 = vpop.f32.mrf.mxu0
  %v2078 = vadd.f32 0.0, %v2077
  %v2079 = vpop.f32.mrf.mxu0
  %v2080 = vpop.f32.mrf.mxu0
  %2081 = vdwg.mxu0
  %2082 = vmatprep.subr.bf16.mxu0 %v630
  %2083 = vmatpush1.bf16.msra.mxu0 %v629
  %2084 = vmatprep.subr.bf16.mxu0 %v622
  %2085 = vmatpush1.bf16.msra.mxu0 %v621
  %2086 = vmatprep.subr.bf16.mxu0 %v614
  %2087 = vmatpush1.bf16.msra.mxu0 %v613
  %2088 = vmatprep.subr.bf16.mxu0 %v606
  %2089 = vmatpush1.bf16.msra.mxu0 %v605
  %2090 = vmatprep.subr.bf16.mxu0 %v598
  %2091 = vmatpush1.bf16.msra.mxu0 %v597
  %2092 = vmatprep.subr.bf16.mxu0 %v590
  %2093 = vmatpush1.bf16.msra.mxu0 %v589
  %2094 = vmatprep.subr.bf16.mxu0 %v582
  %2095 = vmatpush1.bf16.msra.mxu0 %v581
  %2096 = vmatprep.subr.bf16.mxu0 %v574
  %2097 = vmatpush1.bf16.msra.mxu0 %v573
  %2098 = vmatprep.subr.bf16.mxu0 %v694
  %2099 = vmatpush2.bf16.msra.mxu0 %v693
  %2100 = vmatprep.subr.bf16.mxu0 %v686
  %2101 = vmatpush2.bf16.msra.mxu0 %v685
  %2102 = vmatprep.subr.bf16.mxu0 %v678
  %2103 = vmatpush2.bf16.msra.mxu0 %v677
  %2104 = vmatprep.subr.bf16.mxu0 %v670
  %2105 = vmatpush2.bf16.msra.mxu0 %v669
  %2106 = vmatprep.subr.bf16.mxu0 %v662
  %2107 = vmatpush2.bf16.msra.mxu0 %v661
  %2108 = vmatprep.subr.bf16.mxu0 %v654
  %2109 = vmatpush2.bf16.msra.mxu0 %v653
  %2110 = vmatprep.subr.bf16.mxu0 %v646
  %2111 = vmatpush2.bf16.msra.mxu0 %v645
  %2112 = vmatprep.subr.bf16.mxu0 %v638
  %2113 = vmatpush2.bf16.msra.mxu0 %v637
  %2114 = vmatprep.mubr.bf16.mxu0 %v1999
  %2115 = vmatmul.mubr.bf16.gmra.mxu0 %v1998
  %v2116 = vpop.f32.mrf.mxu0
  %v2117 = vadd.f32 0.0, %v2116
  %v2118 = vpop.f32.mrf.mxu0
  %v2119 = vadd.f32 0.0, %v2118
  %v2120 = vpop.f32.mrf.mxu0
  %v2121 = vpop.f32.mrf.mxu0
  %2122 = vdwg.mxu0
  %2123 = vmatprep.subr.bf16.mxu0 %v632
  %2124 = vmatpush1.bf16.msra.mxu0 %v631
  %2125 = vmatprep.subr.bf16.mxu0 %v624
  %2126 = vmatpush1.bf16.msra.mxu0 %v623
  %2127 = vmatprep.subr.bf16.mxu0 %v616
  %2128 = vmatpush1.bf16.msra.mxu0 %v615
  %2129 = vmatprep.subr.bf16.mxu0 %v608
  %2130 = vmatpush1.bf16.msra.mxu0 %v607
  %2131 = vmatprep.subr.bf16.mxu0 %v600
  %2132 = vmatpush1.bf16.msra.mxu0 %v599
  %2133 = vmatprep.subr.bf16.mxu0 %v592
  %2134 = vmatpush1.bf16.msra.mxu0 %v591
  %2135 = vmatprep.subr.bf16.mxu0 %v584
  %2136 = vmatpush1.bf16.msra.mxu0 %v583
  %2137 = vmatprep.subr.bf16.mxu0 %v576
  %2138 = vmatpush1.bf16.msra.mxu0 %v575
  %2139 = vmatprep.subr.bf16.mxu0 %v696
  %2140 = vmatpush2.bf16.msra.mxu0 %v695
  %2141 = vmatprep.subr.bf16.mxu0 %v688
  %2142 = vmatpush2.bf16.msra.mxu0 %v687
  %2143 = vmatprep.subr.bf16.mxu0 %v680
  %2144 = vmatpush2.bf16.msra.mxu0 %v679
  %2145 = vmatprep.subr.bf16.mxu0 %v672
  %2146 = vmatpush2.bf16.msra.mxu0 %v671
  %2147 = vmatprep.subr.bf16.mxu0 %v664
  %2148 = vmatpush2.bf16.msra.mxu0 %v663
  %2149 = vmatprep.subr.bf16.mxu0 %v656
  %2150 = vmatpush2.bf16.msra.mxu0 %v655
  %2151 = vmatprep.subr.bf16.mxu0 %v648
  %2152 = vmatpush2.bf16.msra.mxu0 %v647
  %2153 = vmatprep.subr.bf16.mxu0 %v640
  %2154 = vmatpush2.bf16.msra.mxu0 %v639
  %2155 = vmatprep.mubr.bf16.mxu0 %v1999
  %2156 = vmatmul.mubr.bf16.gmra.mxu0 %v1998
  %v2157 = vpop.f32.mrf.mxu0
  %v2158 = vadd.f32 0.0, %v2157
  %v2159 = vpop.f32.mrf.mxu0
  %v2160 = vadd.f32 0.0, %v2159
  %v2161 = vpop.f32.mrf.mxu0
  %v2162 = vpop.f32.mrf.mxu0
  %2163 = vdwg.mxu0
  %v2164 = vadd.f32 %v1990, %v2035
  %v2165 = vadd.f32 %v1991, %v2037
  %v2166 = vadd.f32 %v1992, %v2076
  %v2167 = vadd.f32 %v1993, %v2078
  %v2168 = vadd.f32 %v1994, %v2117
  %v2169 = vadd.f32 %v1995, %v2119
  %v2170 = vadd.f32 %v1996, %v2158
  %v2171 = vadd.f32 %v1997, %v2160
  %v2172 = vxor.u32 %v2164, 2147483648
  %v2173 = vxor.u32 %v2165, 2147483648
  %v2174 = vmul.f32 %v2172, 1.442695
  %v2175 = vpow.pop %v2174
  %v2176 = vmul.f32 %v2173, 1.442695
  %v2177 = vpow.pop %v2176
  %v2178 = vadd.f32 %v2175, 1.0
  %v2179 = vadd.f32 %v2177, 1.0
  %v2180 = vrcp.pop %v2178
  %v2181 = vmul.f32 1.0, %v2180
  %v2182 = vrcp.pop %v2179
  %v2183 = vmul.f32 1.0, %v2182
  %v2184 = vxor.u32 %v2166, 2147483648
  %v2185 = vxor.u32 %v2167, 2147483648
  %v2186 = vmul.f32 %v2184, 1.442695
  %v2187 = vpow.pop %v2186
  %v2188 = vmul.f32 %v2185, 1.442695
  %v2189 = vpow.pop %v2188
  %v2190 = vadd.f32 %v2187, 1.0
  %v2191 = vadd.f32 %v2189, 1.0
  %v2192 = vrcp.pop %v2190
  %v2193 = vmul.f32 1.0, %v2192
  %v2194 = vrcp.pop %v2191
  %v2195 = vmul.f32 1.0, %v2194
  %v2196 = vtanh.pop %v2168
  %v2197 = vtanh.pop %v2169
  %v2198 = vxor.u32 %v2170, 2147483648
  %v2199 = vxor.u32 %v2171, 2147483648
  %v2200 = vmul.f32 %v2198, 1.442695
  %v2201 = vpow.pop %v2200
  %v2202 = vmul.f32 %v2199, 1.442695
  %v2203 = vpow.pop %v2202
  %v2204 = vadd.f32 %v2201, 1.0
  %v2205 = vadd.f32 %v2203, 1.0
  %v2206 = vrcp.pop %v2204
  %v2207 = vmul.f32 1.0, %v2206
  %v2208 = vrcp.pop %v2205
  %v2209 = vmul.f32 1.0, %v2208
  %v2210 = vmul.f32 %v2193, %v1979
  %v2211 = vmul.f32 %v2195, %v1980
  %v2212 = vmul.f32 %v2181, %v2196
  %v2213 = vmul.f32 %v2183, %v2197
  %v2214 = vadd.f32 %v2210, %v2212
  %v2215 = vadd.f32 %v2211, %v2213
  %v2216 = vtanh.pop %v2214
  %v2217 = vtanh.pop %v2215
  %v2218 = vmul.f32 %v2207, %v2216
  %v2219 = vmul.f32 %v2209, %v2217
  %s2220 = scalar_lea.vmem %s0, 192
  %v2221 = vld [vmem:[%s2220] sm:$0xff]
  %v2222 = vld [vmem:[%s2220 + $0x8] sm:$0xff]
  %v2223 = vld [vmem:[%s2220 + $0x10] sm:$0xff]
  %v2224 = vld [vmem:[%s2220 + $0x18] sm:$0xff]
  %v2225 = vunpack.c.l.bf16 %v2221
  %v2226 = vunpack.c.h.bf16 %v2221
  %v2227 = vunpack.c.l.bf16 %v2222
  %v2228 = vunpack.c.h.bf16 %v2222
  %v2229 = vunpack.c.l.bf16 %v2223
  %v2230 = vunpack.c.h.bf16 %v2223
  %v2231 = vunpack.c.l.bf16 %v2224
  %v2232 = vunpack.c.h.bf16 %v2224
  %v2233 = vpack.c.bf16 %v2218, %v2218
  %v2234 = vpack.c.bf16 %v2219, %v2219
  %2235 = vmatprep.subr.bf16.mxu0 %v626
  %2236 = vmatpush1.bf16.msra.mxu0 %v625
  %2237 = vmatprep.subr.bf16.mxu0 %v618
  %2238 = vmatpush1.bf16.msra.mxu0 %v617
  %2239 = vmatprep.subr.bf16.mxu0 %v610
  %2240 = vmatpush1.bf16.msra.mxu0 %v609
  %2241 = vmatprep.subr.bf16.mxu0 %v602
  %2242 = vmatpush1.bf16.msra.mxu0 %v601
  %2243 = vmatprep.subr.bf16.mxu0 %v594
  %2244 = vmatpush1.bf16.msra.mxu0 %v593
  %2245 = vmatprep.subr.bf16.mxu0 %v586
  %2246 = vmatpush1.bf16.msra.mxu0 %v585
  %2247 = vmatprep.subr.bf16.mxu0 %v578
  %2248 = vmatpush1.bf16.msra.mxu0 %v577
  %2249 = vmatprep.subr.bf16.mxu0 %v570
  %2250 = vmatpush1.bf16.msra.mxu0 %v569
  %2251 = vmatprep.subr.bf16.mxu0 %v690
  %2252 = vmatpush2.bf16.msra.mxu0 %v689
  %2253 = vmatprep.subr.bf16.mxu0 %v682
  %2254 = vmatpush2.bf16.msra.mxu0 %v681
  %2255 = vmatprep.subr.bf16.mxu0 %v674
  %2256 = vmatpush2.bf16.msra.mxu0 %v673
  %2257 = vmatprep.subr.bf16.mxu0 %v666
  %2258 = vmatpush2.bf16.msra.mxu0 %v665
  %2259 = vmatprep.subr.bf16.mxu0 %v658
  %2260 = vmatpush2.bf16.msra.mxu0 %v657
  %2261 = vmatprep.subr.bf16.mxu0 %v650
  %2262 = vmatpush2.bf16.msra.mxu0 %v649
  %2263 = vmatprep.subr.bf16.mxu0 %v642
  %2264 = vmatpush2.bf16.msra.mxu0 %v641
  %2265 = vmatprep.subr.bf16.mxu0 %v634
  %2266 = vmatpush2.bf16.msra.mxu0 %v633
  %2267 = vmatprep.mubr.bf16.mxu0 %v2234
  %2268 = vmatmul.mubr.bf16.gmra.mxu0 %v2233
  %v2269 = vpop.f32.mrf.mxu0
  %v2270 = vadd.f32 0.0, %v2269
  %v2271 = vpop.f32.mrf.mxu0
  %v2272 = vadd.f32 0.0, %v2271
  %v2273 = vpop.f32.mrf.mxu0
  %v2274 = vpop.f32.mrf.mxu0
  %2275 = vdwg.mxu0
  %2276 = vmatprep.subr.bf16.mxu0 %v628
  %2277 = vmatpush1.bf16.msra.mxu0 %v627
  %2278 = vmatprep.subr.bf16.mxu0 %v620
  %2279 = vmatpush1.bf16.msra.mxu0 %v619
  %2280 = vmatprep.subr.bf16.mxu0 %v612
  %2281 = vmatpush1.bf16.msra.mxu0 %v611
  %2282 = vmatprep.subr.bf16.mxu0 %v604
  %2283 = vmatpush1.bf16.msra.mxu0 %v603
  %2284 = vmatprep.subr.bf16.mxu0 %v596
  %2285 = vmatpush1.bf16.msra.mxu0 %v595
  %2286 = vmatprep.subr.bf16.mxu0 %v588
  %2287 = vmatpush1.bf16.msra.mxu0 %v587
  %2288 = vmatprep.subr.bf16.mxu0 %v580
  %2289 = vmatpush1.bf16.msra.mxu0 %v579
  %2290 = vmatprep.subr.bf16.mxu0 %v572
  %2291 = vmatpush1.bf16.msra.mxu0 %v571
  %2292 = vmatprep.subr.bf16.mxu0 %v692
  %2293 = vmatpush2.bf16.msra.mxu0 %v691
  %2294 = vmatprep.subr.bf16.mxu0 %v684
  %2295 = vmatpush2.bf16.msra.mxu0 %v683
  %2296 = vmatprep.subr.bf16.mxu0 %v676
  %2297 = vmatpush2.bf16.msra.mxu0 %v675
  %2298 = vmatprep.subr.bf16.mxu0 %v668
  %2299 = vmatpush2.bf16.msra.mxu0 %v667
  %2300 = vmatprep.subr.bf16.mxu0 %v660
  %2301 = vmatpush2.bf16.msra.mxu0 %v659
  %2302 = vmatprep.subr.bf16.mxu0 %v652
  %2303 = vmatpush2.bf16.msra.mxu0 %v651
  %2304 = vmatprep.subr.bf16.mxu0 %v644
  %2305 = vmatpush2.bf16.msra.mxu0 %v643
  %2306 = vmatprep.subr.bf16.mxu0 %v636
  %2307 = vmatpush2.bf16.msra.mxu0 %v635
  %2308 = vmatprep.mubr.bf16.mxu0 %v2234
  %2309 = vmatmul.mubr.bf16.gmra.mxu0 %v2233
  %v2310 = vpop.f32.mrf.mxu0
  %v2311 = vadd.f32 0.0, %v2310
  %v2312 = vpop.f32.mrf.mxu0
  %v2313 = vadd.f32 0.0, %v2312
  %v2314 = vpop.f32.mrf.mxu0
  %v2315 = vpop.f32.mrf.mxu0
  %2316 = vdwg.mxu0
  %2317 = vmatprep.subr.bf16.mxu0 %v630
  %2318 = vmatpush1.bf16.msra.mxu0 %v629
  %2319 = vmatprep.subr.bf16.mxu0 %v622
  %2320 = vmatpush1.bf16.msra.mxu0 %v621
  %2321 = vmatprep.subr.bf16.mxu0 %v614
  %2322 = vmatpush1.bf16.msra.mxu0 %v613
  %2323 = vmatprep.subr.bf16.mxu0 %v606
  %2324 = vmatpush1.bf16.msra.mxu0 %v605
  %2325 = vmatprep.subr.bf16.mxu0 %v598
  %2326 = vmatpush1.bf16.msra.mxu0 %v597
  %2327 = vmatprep.subr.bf16.mxu0 %v590
  %2328 = vmatpush1.bf16.msra.mxu0 %v589
  %2329 = vmatprep.subr.bf16.mxu0 %v582
  %2330 = vmatpush1.bf16.msra.mxu0 %v581
  %2331 = vmatprep.subr.bf16.mxu0 %v574
  %2332 = vmatpush1.bf16.msra.mxu0 %v573
  %2333 = vmatprep.subr.bf16.mxu0 %v694
  %2334 = vmatpush2.bf16.msra.mxu0 %v693
  %2335 = vmatprep.subr.bf16.mxu0 %v686
  %2336 = vmatpush2.bf16.msra.mxu0 %v685
  %2337 = vmatprep.subr.bf16.mxu0 %v678
  %2338 = vmatpush2.bf16.msra.mxu0 %v677
  %2339 = vmatprep.subr.bf16.mxu0 %v670
  %2340 = vmatpush2.bf16.msra.mxu0 %v669
  %2341 = vmatprep.subr.bf16.mxu0 %v662
  %2342 = vmatpush2.bf16.msra.mxu0 %v661
  %2343 = vmatprep.subr.bf16.mxu0 %v654
  %2344 = vmatpush2.bf16.msra.mxu0 %v653
  %2345 = vmatprep.subr.bf16.mxu0 %v646
  %2346 = vmatpush2.bf16.msra.mxu0 %v645
  %2347 = vmatprep.subr.bf16.mxu0 %v638
  %2348 = vmatpush2.bf16.msra.mxu0 %v637
  %2349 = vmatprep.mubr.bf16.mxu0 %v2234
  %2350 = vmatmul.mubr.bf16.gmra.mxu0 %v2233
  %v2351 = vpop.f32.mrf.mxu0
  %v2352 = vadd.f32 0.0, %v2351
  %v2353 = vpop.f32.mrf.mxu0
  %v2354 = vadd.f32 0.0, %v2353
  %v2355 = vpop.f32.mrf.mxu0
  %v2356 = vpop.f32.mrf.mxu0
  %2357 = vdwg.mxu0
  %2358 = vmatprep.subr.bf16.mxu0 %v632
  %2359 = vmatpush1.bf16.msra.mxu0 %v631
  %2360 = vmatprep.subr.bf16.mxu0 %v624
  %2361 = vmatpush1.bf16.msra.mxu0 %v623
  %2362 = vmatprep.subr.bf16.mxu0 %v616
  %2363 = vmatpush1.bf16.msra.mxu0 %v615
  %2364 = vmatprep.subr.bf16.mxu0 %v608
  %2365 = vmatpush1.bf16.msra.mxu0 %v607
  %2366 = vmatprep.subr.bf16.mxu0 %v600
  %2367 = vmatpush1.bf16.msra.mxu0 %v599
  %2368 = vmatprep.subr.bf16.mxu0 %v592
  %2369 = vmatpush1.bf16.msra.mxu0 %v591
  %2370 = vmatprep.subr.bf16.mxu0 %v584
  %2371 = vmatpush1.bf16.msra.mxu0 %v583
  %2372 = vmatprep.subr.bf16.mxu0 %v576
  %2373 = vmatpush1.bf16.msra.mxu0 %v575
  %2374 = vmatprep.subr.bf16.mxu0 %v696
  %2375 = vmatpush2.bf16.msra.mxu0 %v695
  %2376 = vmatprep.subr.bf16.mxu0 %v688
  %2377 = vmatpush2.bf16.msra.mxu0 %v687
  %2378 = vmatprep.subr.bf16.mxu0 %v680
  %2379 = vmatpush2.bf16.msra.mxu0 %v679
  %2380 = vmatprep.subr.bf16.mxu0 %v672
  %2381 = vmatpush2.bf16.msra.mxu0 %v671
  %2382 = vmatprep.subr.bf16.mxu0 %v664
  %2383 = vmatpush2.bf16.msra.mxu0 %v663
  %2384 = vmatprep.subr.bf16.mxu0 %v656
  %2385 = vmatpush2.bf16.msra.mxu0 %v655
  %2386 = vmatprep.subr.bf16.mxu0 %v648
  %2387 = vmatpush2.bf16.msra.mxu0 %v647
  %2388 = vmatprep.subr.bf16.mxu0 %v640
  %2389 = vmatpush2.bf16.msra.mxu0 %v639
  %2390 = vmatprep.mubr.bf16.mxu0 %v2234
  %2391 = vmatmul.mubr.bf16.gmra.mxu0 %v2233
  %v2392 = vpop.f32.mrf.mxu0
  %v2393 = vadd.f32 0.0, %v2392
  %v2394 = vpop.f32.mrf.mxu0
  %v2395 = vadd.f32 0.0, %v2394
  %v2396 = vpop.f32.mrf.mxu0
  %v2397 = vpop.f32.mrf.mxu0
  %2398 = vdwg.mxu0
  %v2399 = vadd.f32 %v2225, %v2270
  %v2400 = vadd.f32 %v2226, %v2272
  %v2401 = vadd.f32 %v2227, %v2311
  %v2402 = vadd.f32 %v2228, %v2313
  %v2403 = vadd.f32 %v2229, %v2352
  %v2404 = vadd.f32 %v2230, %v2354
  %v2405 = vadd.f32 %v2231, %v2393
  %v2406 = vadd.f32 %v2232, %v2395
  %v2407 = vxor.u32 %v2399, 2147483648
  %v2408 = vxor.u32 %v2400, 2147483648
  %v2409 = vmul.f32 %v2407, 1.442695
  %v2410 = vpow.pop %v2409
  %v2411 = vmul.f32 %v2408, 1.442695
  %v2412 = vpow.pop %v2411
  %v2413 = vadd.f32 %v2410, 1.0
  %v2414 = vadd.f32 %v2412, 1.0
  %v2415 = vrcp.pop %v2413
  %v2416 = vmul.f32 1.0, %v2415
  %v2417 = vrcp.pop %v2414
  %v2418 = vmul.f32 1.0, %v2417
  %v2419 = vxor.u32 %v2401, 2147483648
  %v2420 = vxor.u32 %v2402, 2147483648
  %v2421 = vmul.f32 %v2419, 1.442695
  %v2422 = vpow.pop %v2421
  %v2423 = vmul.f32 %v2420, 1.442695
  %v2424 = vpow.pop %v2423
  %v2425 = vadd.f32 %v2422, 1.0
  %v2426 = vadd.f32 %v2424, 1.0
  %v2427 = vrcp.pop %v2425
  %v2428 = vmul.f32 1.0, %v2427
  %v2429 = vrcp.pop %v2426
  %v2430 = vmul.f32 1.0, %v2429
  %v2431 = vtanh.pop %v2403
  %v2432 = vtanh.pop %v2404
  %v2433 = vxor.u32 %v2405, 2147483648
  %v2434 = vxor.u32 %v2406, 2147483648
  %v2435 = vmul.f32 %v2433, 1.442695
  %v2436 = vpow.pop %v2435
  %v2437 = vmul.f32 %v2434, 1.442695
  %v2438 = vpow.pop %v2437
  %v2439 = vadd.f32 %v2436, 1.0
  %v2440 = vadd.f32 %v2438, 1.0
  %v2441 = vrcp.pop %v2439
  %v2442 = vmul.f32 1.0, %v2441
  %v2443 = vrcp.pop %v2440
  %v2444 = vmul.f32 1.0, %v2443
  %v2445 = vmul.f32 %v2428, %v2214
  %v2446 = vmul.f32 %v2430, %v2215
  %v2447 = vmul.f32 %v2416, %v2431
  %v2448 = vmul.f32 %v2418, %v2432
  %v2449 = vadd.f32 %v2445, %v2447
  %v2450 = vadd.f32 %v2446, %v2448
  %v2451 = vtanh.pop %v2449
  %v2452 = vtanh.pop %v2450
  %v2453 = vmul.f32 %v2442, %v2451
  %v2454 = vmul.f32 %v2444, %v2452
  %s2455 = scalar_lea.vmem %s0, 224
  %v2456 = vld [vmem:[%s2455] sm:$0xff]
  %v2457 = vld [vmem:[%s2455 + $0x8] sm:$0xff]
  %v2458 = vld [vmem:[%s2455 + $0x10] sm:$0xff]
  %v2459 = vld [vmem:[%s2455 + $0x18] sm:$0xff]
  %v2460 = vunpack.c.l.bf16 %v2456
  %v2461 = vunpack.c.h.bf16 %v2456
  %v2462 = vunpack.c.l.bf16 %v2457
  %v2463 = vunpack.c.h.bf16 %v2457
  %v2464 = vunpack.c.l.bf16 %v2458
  %v2465 = vunpack.c.h.bf16 %v2458
  %v2466 = vunpack.c.l.bf16 %v2459
  %v2467 = vunpack.c.h.bf16 %v2459
  %v2468 = vpack.c.bf16 %v2453, %v2453
  %v2469 = vpack.c.bf16 %v2454, %v2454
  %2470 = vmatprep.subr.bf16.mxu0 %v626
  %2471 = vmatpush1.bf16.msra.mxu0 %v625
  %2472 = vmatprep.subr.bf16.mxu0 %v618
  %2473 = vmatpush1.bf16.msra.mxu0 %v617
  %2474 = vmatprep.subr.bf16.mxu0 %v610
  %2475 = vmatpush1.bf16.msra.mxu0 %v609
  %2476 = vmatprep.subr.bf16.mxu0 %v602
  %2477 = vmatpush1.bf16.msra.mxu0 %v601
  %2478 = vmatprep.subr.bf16.mxu0 %v594
  %2479 = vmatpush1.bf16.msra.mxu0 %v593
  %2480 = vmatprep.subr.bf16.mxu0 %v586
  %2481 = vmatpush1.bf16.msra.mxu0 %v585
  %2482 = vmatprep.subr.bf16.mxu0 %v578
  %2483 = vmatpush1.bf16.msra.mxu0 %v577
  %2484 = vmatprep.subr.bf16.mxu0 %v570
  %2485 = vmatpush1.bf16.msra.mxu0 %v569
  %2486 = vmatprep.subr.bf16.mxu0 %v690
  %2487 = vmatpush2.bf16.msra.mxu0 %v689
  %2488 = vmatprep.subr.bf16.mxu0 %v682
  %2489 = vmatpush2.bf16.msra.mxu0 %v681
  %2490 = vmatprep.subr.bf16.mxu0 %v674
  %2491 = vmatpush2.bf16.msra.mxu0 %v673
  %2492 = vmatprep.subr.bf16.mxu0 %v666
  %2493 = vmatpush2.bf16.msra.mxu0 %v665
  %2494 = vmatprep.subr.bf16.mxu0 %v658
  %2495 = vmatpush2.bf16.msra.mxu0 %v657
  %2496 = vmatprep.subr.bf16.mxu0 %v650
  %2497 = vmatpush2.bf16.msra.mxu0 %v649
  %2498 = vmatprep.subr.bf16.mxu0 %v642
  %2499 = vmatpush2.bf16.msra.mxu0 %v641
  %2500 = vmatprep.subr.bf16.mxu0 %v634
  %2501 = vmatpush2.bf16.msra.mxu0 %v633
  %2502 = vmatprep.mubr.bf16.mxu0 %v2469
  %2503 = vmatmul.mubr.bf16.gmra.mxu0 %v2468
  %v2504 = vpop.f32.mrf.mxu0
  %v2505 = vadd.f32 0.0, %v2504
  %v2506 = vpop.f32.mrf.mxu0
  %v2507 = vadd.f32 0.0, %v2506
  %v2508 = vpop.f32.mrf.mxu0
  %v2509 = vpop.f32.mrf.mxu0
  %2510 = vdwg.mxu0
  %2511 = vmatprep.subr.bf16.mxu0 %v628
  %2512 = vmatpush1.bf16.msra.mxu0 %v627
  %2513 = vmatprep.subr.bf16.mxu0 %v620
  %2514 = vmatpush1.bf16.msra.mxu0 %v619
  %2515 = vmatprep.subr.bf16.mxu0 %v612
  %2516 = vmatpush1.bf16.msra.mxu0 %v611
  %2517 = vmatprep.subr.bf16.mxu0 %v604
  %2518 = vmatpush1.bf16.msra.mxu0 %v603
  %2519 = vmatprep.subr.bf16.mxu0 %v596
  %2520 = vmatpush1.bf16.msra.mxu0 %v595
  %2521 = vmatprep.subr.bf16.mxu0 %v588
  %2522 = vmatpush1.bf16.msra.mxu0 %v587
  %2523 = vmatprep.subr.bf16.mxu0 %v580
  %2524 = vmatpush1.bf16.msra.mxu0 %v579
  %2525 = vmatprep.subr.bf16.mxu0 %v572
  %2526 = vmatpush1.bf16.msra.mxu0 %v571
  %2527 = vmatprep.subr.bf16.mxu0 %v692
  %2528 = vmatpush2.bf16.msra.mxu0 %v691
  %2529 = vmatprep.subr.bf16.mxu0 %v684
  %2530 = vmatpush2.bf16.msra.mxu0 %v683
  %2531 = vmatprep.subr.bf16.mxu0 %v676
  %2532 = vmatpush2.bf16.msra.mxu0 %v675
  %2533 = vmatprep.subr.bf16.mxu0 %v668
  %2534 = vmatpush2.bf16.msra.mxu0 %v667
  %2535 = vmatprep.subr.bf16.mxu0 %v660
  %2536 = vmatpush2.bf16.msra.mxu0 %v659
  %2537 = vmatprep.subr.bf16.mxu0 %v652
  %2538 = vmatpush2.bf16.msra.mxu0 %v651
  %2539 = vmatprep.subr.bf16.mxu0 %v644
  %2540 = vmatpush2.bf16.msra.mxu0 %v643
  %2541 = vmatprep.subr.bf16.mxu0 %v636
  %2542 = vmatpush2.bf16.msra.mxu0 %v635
  %2543 = vmatprep.mubr.bf16.mxu0 %v2469
  %2544 = vmatmul.mubr.bf16.gmra.mxu0 %v2468
  %v2545 = vpop.f32.mrf.mxu0
  %v2546 = vadd.f32 0.0, %v2545
  %v2547 = vpop.f32.mrf.mxu0
  %v2548 = vadd.f32 0.0, %v2547
  %v2549 = vpop.f32.mrf.mxu0
  %v2550 = vpop.f32.mrf.mxu0
  %2551 = vdwg.mxu0
  %2552 = vmatprep.subr.bf16.mxu0 %v630
  %2553 = vmatpush1.bf16.msra.mxu0 %v629
  %2554 = vmatprep.subr.bf16.mxu0 %v622
  %2555 = vmatpush1.bf16.msra.mxu0 %v621
  %2556 = vmatprep.subr.bf16.mxu0 %v614
  %2557 = vmatpush1.bf16.msra.mxu0 %v613
  %2558 = vmatprep.subr.bf16.mxu0 %v606
  %2559 = vmatpush1.bf16.msra.mxu0 %v605
  %2560 = vmatprep.subr.bf16.mxu0 %v598
  %2561 = vmatpush1.bf16.msra.mxu0 %v597
  %2562 = vmatprep.subr.bf16.mxu0 %v590
  %2563 = vmatpush1.bf16.msra.mxu0 %v589
  %2564 = vmatprep.subr.bf16.mxu0 %v582
  %2565 = vmatpush1.bf16.msra.mxu0 %v581
  %2566 = vmatprep.subr.bf16.mxu0 %v574
  %2567 = vmatpush1.bf16.msra.mxu0 %v573
  %2568 = vmatprep.subr.bf16.mxu0 %v694
  %2569 = vmatpush2.bf16.msra.mxu0 %v693
  %2570 = vmatprep.subr.bf16.mxu0 %v686
  %2571 = vmatpush2.bf16.msra.mxu0 %v685
  %2572 = vmatprep.subr.bf16.mxu0 %v678
  %2573 = vmatpush2.bf16.msra.mxu0 %v677
  %2574 = vmatprep.subr.bf16.mxu0 %v670
  %2575 = vmatpush2.bf16.msra.mxu0 %v669
  %2576 = vmatprep.subr.bf16.mxu0 %v662
  %2577 = vmatpush2.bf16.msra.mxu0 %v661
  %2578 = vmatprep.subr.bf16.mxu0 %v654
  %2579 = vmatpush2.bf16.msra.mxu0 %v653
  %2580 = vmatprep.subr.bf16.mxu0 %v646
  %2581 = vmatpush2.bf16.msra.mxu0 %v645
  %2582 = vmatprep.subr.bf16.mxu0 %v638
  %2583 = vmatpush2.bf16.msra.mxu0 %v637
  %2584 = vmatprep.mubr.bf16.mxu0 %v2469
  %2585 = vmatmul.mubr.bf16.gmra.mxu0 %v2468
  %v2586 = vpop.f32.mrf.mxu0
  %v2587 = vadd.f32 0.0, %v2586
  %v2588 = vpop.f32.mrf.mxu0
  %v2589 = vadd.f32 0.0, %v2588
  %v2590 = vpop.f32.mrf.mxu0
  %v2591 = vpop.f32.mrf.mxu0
  %2592 = vdwg.mxu0
  %2593 = vmatprep.subr.bf16.mxu0 %v632
  %2594 = vmatpush1.bf16.msra.mxu0 %v631
  %2595 = vmatprep.subr.bf16.mxu0 %v624
  %2596 = vmatpush1.bf16.msra.mxu0 %v623
  %2597 = vmatprep.subr.bf16.mxu0 %v616
  %2598 = vmatpush1.bf16.msra.mxu0 %v615
  %2599 = vmatprep.subr.bf16.mxu0 %v608
  %2600 = vmatpush1.bf16.msra.mxu0 %v607
  %2601 = vmatprep.subr.bf16.mxu0 %v600
  %2602 = vmatpush1.bf16.msra.mxu0 %v599
  %2603 = vmatprep.subr.bf16.mxu0 %v592
  %2604 = vmatpush1.bf16.msra.mxu0 %v591
  %2605 = vmatprep.subr.bf16.mxu0 %v584
  %2606 = vmatpush1.bf16.msra.mxu0 %v583
  %2607 = vmatprep.subr.bf16.mxu0 %v576
  %2608 = vmatpush1.bf16.msra.mxu0 %v575
  %2609 = vmatprep.subr.bf16.mxu0 %v696
  %2610 = vmatpush2.bf16.msra.mxu0 %v695
  %2611 = vmatprep.subr.bf16.mxu0 %v688
  %2612 = vmatpush2.bf16.msra.mxu0 %v687
  %2613 = vmatprep.subr.bf16.mxu0 %v680
  %2614 = vmatpush2.bf16.msra.mxu0 %v679
  %2615 = vmatprep.subr.bf16.mxu0 %v672
  %2616 = vmatpush2.bf16.msra.mxu0 %v671
  %2617 = vmatprep.subr.bf16.mxu0 %v664
  %2618 = vmatpush2.bf16.msra.mxu0 %v663
  %2619 = vmatprep.subr.bf16.mxu0 %v656
  %2620 = vmatpush2.bf16.msra.mxu0 %v655
  %2621 = vmatprep.subr.bf16.mxu0 %v648
  %2622 = vmatpush2.bf16.msra.mxu0 %v647
  %2623 = vmatprep.subr.bf16.mxu0 %v640
  %2624 = vmatpush2.bf16.msra.mxu0 %v639
  %2625 = vmatprep.mubr.bf16.mxu0 %v2469
  %2626 = vmatmul.mubr.bf16.gmra.mxu0 %v2468
  %v2627 = vpop.f32.mrf.mxu0
  %v2628 = vadd.f32 0.0, %v2627
  %v2629 = vpop.f32.mrf.mxu0
  %v2630 = vadd.f32 0.0, %v2629
  %v2631 = vpop.f32.mrf.mxu0
  %v2632 = vpop.f32.mrf.mxu0
  %2633 = vdwg.mxu0
  %v2634 = vadd.f32 %v2460, %v2505
  %v2635 = vadd.f32 %v2461, %v2507
  %v2636 = vadd.f32 %v2462, %v2546
  %v2637 = vadd.f32 %v2463, %v2548
  %v2638 = vadd.f32 %v2464, %v2587
  %v2639 = vadd.f32 %v2465, %v2589
  %v2640 = vadd.f32 %v2466, %v2628
  %v2641 = vadd.f32 %v2467, %v2630
  %v2642 = vxor.u32 %v2634, 2147483648
  %v2643 = vxor.u32 %v2635, 2147483648
  %v2644 = vmul.f32 %v2642, 1.442695
  %v2645 = vpow.pop %v2644
  %v2646 = vmul.f32 %v2643, 1.442695
  %v2647 = vpow.pop %v2646
  %v2648 = vadd.f32 %v2645, 1.0
  %v2649 = vadd.f32 %v2647, 1.0
  %v2650 = vrcp.pop %v2648
  %v2651 = vmul.f32 1.0, %v2650
  %v2652 = vrcp.pop %v2649
  %v2653 = vmul.f32 1.0, %v2652
  %v2654 = vxor.u32 %v2636, 2147483648
  %v2655 = vxor.u32 %v2637, 2147483648
  %v2656 = vmul.f32 %v2654, 1.442695
  %v2657 = vpow.pop %v2656
  %v2658 = vmul.f32 %v2655, 1.442695
  %v2659 = vpow.pop %v2658
  %v2660 = vadd.f32 %v2657, 1.0
  %v2661 = vadd.f32 %v2659, 1.0
  %v2662 = vrcp.pop %v2660
  %v2663 = vmul.f32 1.0, %v2662
  %v2664 = vrcp.pop %v2661
  %v2665 = vmul.f32 1.0, %v2664
  %v2666 = vtanh.pop %v2638
  %v2667 = vtanh.pop %v2639
  %v2668 = vxor.u32 %v2640, 2147483648
  %v2669 = vxor.u32 %v2641, 2147483648
  %v2670 = vmul.f32 %v2668, 1.442695
  %v2671 = vpow.pop %v2670
  %v2672 = vmul.f32 %v2669, 1.442695
  %v2673 = vpow.pop %v2672
  %v2674 = vadd.f32 %v2671, 1.0
  %v2675 = vadd.f32 %v2673, 1.0
  %v2676 = vrcp.pop %v2674
  %v2677 = vmul.f32 1.0, %v2676
  %v2678 = vrcp.pop %v2675
  %v2679 = vmul.f32 1.0, %v2678
  %v2680 = vmul.f32 %v2663, %v2449
  %v2681 = vmul.f32 %v2665, %v2450
  %v2682 = vmul.f32 %v2651, %v2666
  %v2683 = vmul.f32 %v2653, %v2667
  %v2684 = vadd.f32 %v2680, %v2682
  %v2685 = vadd.f32 %v2681, %v2683
  %v2686 = vtanh.pop %v2684
  %v2687 = vtanh.pop %v2685
  %v2688 = vmul.f32 %v2677, %v2686
  %v2689 = vmul.f32 %v2679, %v2687
  %2690 = vst [vmem:[#allocation2] sm:$0xff] %v2688
  %2691 = vst [vmem:[#allocation2 + $0x8] sm:$0xff] %v2689
  %2692 = vst [vmem:[#allocation3] sm:$0xff] %v2684
  %2693 = vst [vmem:[#allocation3 + $0x8] sm:$0xff] %v2685
  // Predicated region
  $region38: #{rnn_forward.3} parent=0 // pred_check
    %p2694 = pneg %p31
  $region39: #{rnn_forward.3} parent=0 // pred_check_branch
    %2696 = sbr.rel (%p2694) target = $region41
  $region40: #{rnn_forward.3} parent=0 // pred_region
    %v2697 = vld [vmem:[%s2] sm:$0xff]
    %v2698 = vld [vmem:[%s2 + $0x8] sm:$0xff]
    %v2699 = vld [vmem:[%s2 + $0x10] sm:$0xff]
    %v2700 = vld [vmem:[%s2 + $0x18] sm:$0xff]
    %v2701 = vld [vmem:[%s2 + $0x20] sm:$0xff]
    %v2702 = vld [vmem:[%s2 + $0x28] sm:$0xff]
    %v2703 = vld [vmem:[%s2 + $0x30] sm:$0xff]
    %v2704 = vld [vmem:[%s2 + $0x38] sm:$0xff]
    %v2705 = vld [vmem:[%s2 + $0x40] sm:$0xff]
    %v2706 = vld [vmem:[%s2 + $0x48] sm:$0xff]
    %v2707 = vld [vmem:[%s2 + $0x50] sm:$0xff]
    %v2708 = vld [vmem:[%s2 + $0x58] sm:$0xff]
    %v2709 = vld [vmem:[%s2 + $0x60] sm:$0xff]
    %v2710 = vld [vmem:[%s2 + $0x68] sm:$0xff]
    %v2711 = vld [vmem:[%s2 + $0x70] sm:$0xff]
    %v2712 = vld [vmem:[%s2 + $0x78] sm:$0xff]
    %v2713 = vld [vmem:[%s2 + $0x80] sm:$0xff]
    %v2714 = vld [vmem:[%s2 + $0x88] sm:$0xff]
    %v2715 = vld [vmem:[%s2 + $0x90] sm:$0xff]
    %v2716 = vld [vmem:[%s2 + $0x98] sm:$0xff]
    %v2717 = vld [vmem:[%s2 + $0xa0] sm:$0xff]
    %v2718 = vld [vmem:[%s2 + $0xa8] sm:$0xff]
    %v2719 = vld [vmem:[%s2 + $0xb0] sm:$0xff]
    %v2720 = vld [vmem:[%s2 + $0xb8] sm:$0xff]
    %v2721 = vld [vmem:[%s2 + $0xc0] sm:$0xff]
    %v2722 = vld [vmem:[%s2 + $0xc8] sm:$0xff]
    %v2723 = vld [vmem:[%s2 + $0xd0] sm:$0xff]
    %v2724 = vld [vmem:[%s2 + $0xd8] sm:$0xff]
    %v2725 = vld [vmem:[%s2 + $0xe0] sm:$0xff]
    %v2726 = vld [vmem:[%s2 + $0xe8] sm:$0xff]
    %v2727 = vld [vmem:[%s2 + $0xf0] sm:$0xff]
    %v2728 = vld [vmem:[%s2 + $0xf8] sm:$0xff]
    %v2729 = vld [vmem:[%s3] sm:$0x1]
    %v2731 = vlaneseq
    %v2732 = vshrl.u32 %v2731, 7
    %v2733 = vsub.s32 0, %v2732
    %v2734 = vrot.slane %v2729, %v2733
    %2736 = vmatprep.subr.mxu0 0.0
    %2737 = vmatpush1.msra.mxu0 %v2712
    %2738 = vmatprep.subr.mxu0 0.0
    %2739 = vmatpush1.msra.mxu0 %v2711
    %2740 = vmatprep.subr.mxu0 0.0
    %2741 = vmatpush1.msra.mxu0 %v2710
    %2742 = vmatprep.subr.mxu0 0.0
    %2743 = vmatpush1.msra.mxu0 %v2709
    %2744 = vmatprep.subr.mxu0 0.0
    %2745 = vmatpush1.msra.mxu0 %v2708
    %2746 = vmatprep.subr.mxu0 0.0
    %2747 = vmatpush1.msra.mxu0 %v2707
    %2748 = vmatprep.subr.mxu0 0.0
    %2749 = vmatpush1.msra.mxu0 %v2706
    %2750 = vmatprep.subr.mxu0 0.0
    %2751 = vmatpush1.msra.mxu0 %v2705
    %2752 = vmatprep.subr.mxu0 0.0
    %2753 = vmatpush1.msra.mxu0 %v2704
    %2754 = vmatprep.subr.mxu0 0.0
    %2755 = vmatpush1.msra.mxu0 %v2703
    %2756 = vmatprep.subr.mxu0 0.0
    %2757 = vmatpush1.msra.mxu0 %v2702
    %2758 = vmatprep.subr.mxu0 0.0
    %2759 = vmatpush1.msra.mxu0 %v2701
    %2760 = vmatprep.subr.mxu0 0.0
    %2761 = vmatpush1.msra.mxu0 %v2700
    %2762 = vmatprep.subr.mxu0 0.0
    %2763 = vmatpush1.msra.mxu0 %v2699
    %2764 = vmatprep.subr.mxu0 0.0
    %2765 = vmatpush1.msra.mxu0 %v2698
    %2766 = vmatprep.subr.mxu0 0.0
    %2767 = vmatpush1.msra.mxu0 %v2697
    %2768 = vmatprep.subr.mxu0 0.0
    %2769 = vmatpush2.msra.mxu0 %v2728
    %2770 = vmatprep.subr.mxu0 0.0
    %2771 = vmatpush2.msra.mxu0 %v2727
    %2772 = vmatprep.subr.mxu0 0.0
    %2773 = vmatpush2.msra.mxu0 %v2726
    %2774 = vmatprep.subr.mxu0 0.0
    %2775 = vmatpush2.msra.mxu0 %v2725
    %2776 = vmatprep.subr.mxu0 0.0
    %2777 = vmatpush2.msra.mxu0 %v2724
    %2778 = vmatprep.subr.mxu0 0.0
    %2779 = vmatpush2.msra.mxu0 %v2723
    %2780 = vmatprep.subr.mxu0 0.0
    %2781 = vmatpush2.msra.mxu0 %v2722
    %2782 = vmatprep.subr.mxu0 0.0
    %2783 = vmatpush2.msra.mxu0 %v2721
    %2784 = vmatprep.subr.mxu0 0.0
    %2785 = vmatpush2.msra.mxu0 %v2720
    %2786 = vmatprep.subr.mxu0 0.0
    %2787 = vmatpush2.msra.mxu0 %v2719
    %2788 = vmatprep.subr.mxu0 0.0
    %2789 = vmatpush2.msra.mxu0 %v2718
    %2790 = vmatprep.subr.mxu0 0.0
    %2791 = vmatpush2.msra.mxu0 %v2717
    %2792 = vmatprep.subr.mxu0 0.0
    %2793 = vmatpush2.msra.mxu0 %v2716
    %2794 = vmatprep.subr.mxu0 0.0
    %2795 = vmatpush2.msra.mxu0 %v2715
    %2796 = vmatprep.subr.mxu0 0.0
    %2797 = vmatpush2.msra.mxu0 %v2714
    %2798 = vmatprep.subr.mxu0 0.0
    %2799 = vmatpush2.msra.mxu0 %v2713
    %2800 = vmatprep.mubr.f32.mxu0 %v2689
    %2801 = vmatmul.mubr.f32.gmra.mxu0 %v2688
    %v2802 = vpop.f32.mrf.mxu0
    %v2803 = vadd.f32 %v2734, %v2802
    %v2804 = vpop.f32.mrf.mxu0
    %2805 = vdwg.mxu0
    %vm2806 = vcmp.gt.f32.partialorder %v2803, 0.0
    %v2807 = vmul.f32 %v2803, 0.01
    %v2808 = vsel %vm2806, %v2803, %v2807
    %v2809 = vld [vmem:[%s4] sm:$0xff]
    %v2810 = vld [vmem:[%s4 + $0x8] sm:$0xff]
    %v2811 = vld [vmem:[%s4 + $0x10] sm:$0xff]
    %v2812 = vld [vmem:[%s4 + $0x18] sm:$0xff]
    %v2813 = vld [vmem:[%s4 + $0x20] sm:$0xff]
    %v2814 = vld [vmem:[%s4 + $0x28] sm:$0xff]
    %v2815 = vld [vmem:[%s4 + $0x30] sm:$0xff]
    %v2816 = vld [vmem:[%s4 + $0x38] sm:$0xff]
    %v2817 = vld [vmem:[%s4 + $0x40] sm:$0xff]
    %v2818 = vld [vmem:[%s4 + $0x48] sm:$0xff]
    %v2819 = vld [vmem:[%s4 + $0x50] sm:$0xff]
    %v2820 = vld [vmem:[%s4 + $0x58] sm:$0xff]
    %v2821 = vld [vmem:[%s4 + $0x60] sm:$0xff]
    %v2822 = vld [vmem:[%s4 + $0x68] sm:$0xff]
    %v2823 = vld [vmem:[%s4 + $0x70] sm:$0xff]
    %v2824 = vld [vmem:[%s4 + $0x78] sm:$0xff]
    %v2825 = vld [vmem:[%s5] sm:$0x1]
    %v2827 = vlaneseq
    %v2828 = vshrl.u32 %v2827, 7
    %v2829 = vsub.s32 0, %v2828
    %v2830 = vrot.slane %v2825, %v2829
    %2832 = vmatprep.subr.mxu0 0.0
    %2833 = vmatpush1.msra.mxu0 %v2824
    %2834 = vmatprep.subr.mxu0 0.0
    %2835 = vmatpush1.msra.mxu0 %v2823
    %2836 = vmatprep.subr.mxu0 0.0
    %2837 = vmatpush1.msra.mxu0 %v2822
    %2838 = vmatprep.subr.mxu0 0.0
    %2839 = vmatpush1.msra.mxu0 %v2821
    %2840 = vmatprep.subr.mxu0 0.0
    %2841 = vmatpush1.msra.mxu0 %v2820
    %2842 = vmatprep.subr.mxu0 0.0
    %2843 = vmatpush1.msra.mxu0 %v2819
    %2844 = vmatprep.subr.mxu0 0.0
    %2845 = vmatpush1.msra.mxu0 %v2818
    %2846 = vmatprep.subr.mxu0 0.0
    %2847 = vmatpush1.msra.mxu0 %v2817
    %2848 = vmatprep.subr.mxu0 0.0
    %2849 = vmatpush1.msra.mxu0 %v2816
    %2850 = vmatprep.subr.mxu0 0.0
    %2851 = vmatpush1.msra.mxu0 %v2815
    %2852 = vmatprep.subr.mxu0 0.0
    %2853 = vmatpush1.msra.mxu0 %v2814
    %2854 = vmatprep.subr.mxu0 0.0
    %2855 = vmatpush1.msra.mxu0 %v2813
    %2856 = vmatprep.subr.mxu0 0.0
    %2857 = vmatpush1.msra.mxu0 %v2812
    %2858 = vmatprep.subr.mxu0 0.0
    %2859 = vmatpush1.msra.mxu0 %v2811
    %2860 = vmatprep.subr.mxu0 0.0
    %2861 = vmatpush1.msra.mxu0 %v2810
    %2862 = vmatprep.subr.mxu0 0.0
    %2863 = vmatpush1.msra.mxu0 %v2809
    %2864 = vmatprep.subr.mxu0 0.0
    %2865 = vmatpush2.msra.mxu0 0.0
    %2866 = vmatprep.subr.mxu0 0.0
    %2867 = vmatpush2.msra.mxu0 0.0
    %2868 = vmatprep.subr.mxu0 0.0
    %2869 = vmatpush2.msra.mxu0 0.0
    %2870 = vmatprep.subr.mxu0 0.0
    %2871 = vmatpush2.msra.mxu0 0.0
    %2872 = vmatprep.subr.mxu0 0.0
    %2873 = vmatpush2.msra.mxu0 0.0
    %2874 = vmatprep.subr.mxu0 0.0
    %2875 = vmatpush2.msra.mxu0 0.0
    %2876 = vmatprep.subr.mxu0 0.0
    %2877 = vmatpush2.msra.mxu0 0.0
    %2878 = vmatprep.subr.mxu0 0.0
    %2879 = vmatpush2.msra.mxu0 0.0
    %2880 = vmatprep.subr.mxu0 0.0
    %2881 = vmatpush2.msra.mxu0 0.0
    %2882 = vmatprep.subr.mxu0 0.0
    %2883 = vmatpush2.msra.mxu0 0.0
    %2884 = vmatprep.subr.mxu0 0.0
    %2885 = vmatpush2.msra.mxu0 0.0
    %2886 = vmatprep.subr.mxu0 0.0
    %2887 = vmatpush2.msra.mxu0 0.0
    %2888 = vmatprep.subr.mxu0 0.0
    %2889 = vmatpush2.msra.mxu0 0.0
    %2890 = vmatprep.subr.mxu0 0.0
    %2891 = vmatpush2.msra.mxu0 0.0
    %2892 = vmatprep.subr.mxu0 0.0
    %2893 = vmatpush2.msra.mxu0 0.0
    %2894 = vmatprep.subr.mxu0 0.0
    %2895 = vmatpush2.msra.mxu0 0.0
    %2896 = vmatprep.mubr.f32.mxu0 0.0
    %2897 = vmatmul.mubr.f32.gmra.mxu0 %v2808
    %v2898 = vpop.f32.mrf.mxu0
    %v2899 = vadd.f32 %v2830, %v2898
    %v2900 = vpop.f32.mrf.mxu0
    %2901 = vdwg.mxu0
    %vm2902 = vcmp.gt.f32.partialorder %v2899, 0.0
    %v2903 = vmul.f32 %v2899, 0.01
    %v2904 = vsel %vm2902, %v2899, %v2903
    %v2905 = vld [vmem:[%s6] sm:$0xff]
    %v2906 = vld [vmem:[%s6 + $0x8] sm:$0xff]
    %v2907 = vld [vmem:[%s6 + $0x10] sm:$0xff]
    %v2908 = vld [vmem:[%s6 + $0x18] sm:$0xff]
    %v2909 = vld [vmem:[%s6 + $0x20] sm:$0xff]
    %v2910 = vld [vmem:[%s6 + $0x28] sm:$0xff]
    %v2911 = vld [vmem:[%s6 + $0x30] sm:$0xff]
    %v2912 = vld [vmem:[%s6 + $0x38] sm:$0xff]
    %v2913 = vld [vmem:[#allocation4] sm:$0x1]
    %v2915 = vlaneseq
    %v2916 = vshrl.u32 %v2915, 7
    %v2917 = vsub.s32 0, %v2916
    %v2918 = vrot.slane %v2913, %v2917
    %vm2920 = vcmask 523264
    %v2922 = vsel %vm2920, %v2904, 0
    %2924 = vmatprep.subr.mxu0 0.0
    %2925 = vmatpush1.msra.mxu0 0.0
    %2926 = vmatprep.subr.mxu0 0.0
    %2927 = vmatpush1.msra.mxu0 0.0
    %2928 = vmatprep.subr.mxu0 0.0
    %2929 = vmatpush1.msra.mxu0 0.0
    %2930 = vmatprep.subr.mxu0 0.0
    %2931 = vmatpush1.msra.mxu0 0.0
    %2932 = vmatprep.subr.mxu0 0.0
    %2933 = vmatpush1.msra.mxu0 0.0
    %2934 = vmatprep.subr.mxu0 0.0
    %2935 = vmatpush1.msra.mxu0 0.0
    %2936 = vmatprep.subr.mxu0 0.0
    %2937 = vmatpush1.msra.mxu0 0.0
    %2938 = vmatprep.subr.mxu0 0.0
    %2939 = vmatpush1.msra.mxu0 0.0
    %2940 = vmatprep.subr.mxu0 0.0
    %2941 = vmatpush1.msra.mxu0 %v2912
    %2942 = vmatprep.subr.mxu0 0.0
    %2943 = vmatpush1.msra.mxu0 %v2911
    %2944 = vmatprep.subr.mxu0 0.0
    %2945 = vmatpush1.msra.mxu0 %v2910
    %2946 = vmatprep.subr.mxu0 0.0
    %2947 = vmatpush1.msra.mxu0 %v2909
    %2948 = vmatprep.subr.mxu0 0.0
    %2949 = vmatpush1.msra.mxu0 %v2908
    %2950 = vmatprep.subr.mxu0 0.0
    %2951 = vmatpush1.msra.mxu0 %v2907
    %2952 = vmatprep.subr.mxu0 0.0
    %2953 = vmatpush1.msra.mxu0 %v2906
    %2954 = vmatprep.subr.mxu0 0.0
    %2955 = vmatpush1.msra.mxu0 %v2905
    %2956 = vmatprep.subr.mxu0 0.0
    %2957 = vmatpush2.msra.mxu0 0.0
    %2958 = vmatprep.subr.mxu0 0.0
    %2959 = vmatpush2.msra.mxu0 0.0
    %2960 = vmatprep.subr.mxu0 0.0
    %2961 = vmatpush2.msra.mxu0 0.0
    %2962 = vmatprep.subr.mxu0 0.0
    %2963 = vmatpush2.msra.mxu0 0.0
    %2964 = vmatprep.subr.mxu0 0.0
    %2965 = vmatpush2.msra.mxu0 0.0
    %2966 = vmatprep.subr.mxu0 0.0
    %2967 = vmatpush2.msra.mxu0 0.0
    %2968 = vmatprep.subr.mxu0 0.0
    %2969 = vmatpush2.msra.mxu0 0.0
    %2970 = vmatprep.subr.mxu0 0.0
    %2971 = vmatpush2.msra.mxu0 0.0
    %2972 = vmatprep.subr.mxu0 0.0
    %2973 = vmatpush2.msra.mxu0 0.0
    %2974 = vmatprep.subr.mxu0 0.0
    %2975 = vmatpush2.msra.mxu0 0.0
    %2976 = vmatprep.subr.mxu0 0.0
    %2977 = vmatpush2.msra.mxu0 0.0
    %2978 = vmatprep.subr.mxu0 0.0
    %2979 = vmatpush2.msra.mxu0 0.0
    %2980 = vmatprep.subr.mxu0 0.0
    %2981 = vmatpush2.msra.mxu0 0.0
    %2982 = vmatprep.subr.mxu0 0.0
    %2983 = vmatpush2.msra.mxu0 0.0
    %2984 = vmatprep.subr.mxu0 0.0
    %2985 = vmatpush2.msra.mxu0 0.0
    %2986 = vmatprep.subr.mxu0 0.0
    %2987 = vmatpush2.msra.mxu0 0.0
    %2988 = vmatprep.mubr.f32.mxu0 0.0
    %2989 = vmatmul.mubr.f32.gmra.mxu0 %v2922
    %v2990 = vpop.f32.mrf.mxu0
    %v2991 = vadd.f32 %v2918, %v2990
    %v2992 = vpop.f32.mrf.mxu0
    %2993 = vdwg.mxu0
    %vm2994 = vcmask 7168
    %2995 = vst.msk [vmem:[%s8] sm:$0xff] %vm2994, %v2991
  $region41: #{rnn_forward.3} parent=0 // pred_fallthru
    _
  // Predicated region
  $region42: #{rnn_forward.3} parent=0 // pred_check
    _
  $region43: #{rnn_forward.3} parent=0 // pred_check_branch
    %2997 = sbr.rel (0) target = $region45
  $region44: #{rnn_forward.3} parent=0 // pred_region
    _
  $region45: #{rnn_forward.3} parent=0 // pred_fallthru
    _
  // Predicated region
  $region46: #{rnn_forward.3} parent=0 // pred_check
    _
  $region47: #{rnn_forward.3} parent=0 // pred_check_branch
    %2999 = sbr.rel (0) target = $region49
  $region48: #{rnn_forward.3} parent=0 // pred_region
    _
  $region49: #{rnn_forward.3} parent=0 // pred_fallthru
    _

</llo_original>
